<compile_context>
chip_gen: v7x
topology: tpu7x:2x2x1
jax: 0.10.0
libtpu: 0.0.40
codegen_flags: <defaults>
</compile_context>

<pallas_src>
import functools

import jax
import jax.numpy as jnp
from jax import lax
from jax.experimental import pallas as pl
from jax.experimental.pallas import tpu as pltpu

# ----------------------------- problem sizes --------------------------------
NUM_GRAPHS = 2
NODES_PER_GRAPH = 8
N = NUM_GRAPHS * NODES_PER_GRAPH            # 16 node slots (static max, valid-masked)
E = 2 * NUM_GRAPHS * NODES_PER_GRAPH        # 32 directed input edges
NUM_FEATURES = 16
NHID = 32
NUM_CLASSES = 4
NEG = -1e30
BIG = 1e9


# ----------------------------- fused kernel ---------------------------------
def edgenet_kernel(
    x_ref, adj_ref, boh_nb_ref, boh_bn_ref,
    c1w_ref, c1b_ref, c2w_ref, c2b_ref, c3w_ref, c3b_ref,
    p1s_ref, p1d_ref, p1b_ref,
    p2s_ref, p2d_ref, p2b_ref,
    p3s_ref, p3d_ref, p3b_ref,
    l1w_ref, l1b_ref, l2w_ref, l2b_ref, l3w_ref, l3b_ref,
    out_ref,
):
    f32 = jnp.float32
    eye = (lax.broadcasted_iota(jnp.int32, (N, N), 0)
           == lax.broadcasted_iota(jnp.int32, (N, N), 1)).astype(f32)
    iota_r = lax.broadcasted_iota(jnp.int32, (N, 1), 0).astype(f32)   # [N,1]
    iota_c = lax.broadcasted_iota(jnp.int32, (1, N), 1).astype(f32)   # [1,N]
    flat_idx = (lax.broadcasted_iota(jnp.int32, (N, N), 0).astype(f32) * float(N)
                + lax.broadcasted_iota(jnp.int32, (N, N), 1).astype(f32))

    def to_col(v_r):
        # [N,1] -> [1,N] without a narrow transpose (diag trick + sublane reduce).
        return jnp.sum(eye * v_r, axis=0, keepdims=True)

    def gcn_relu(h, adj, valid_r, valid_c, cw, cb):
        # A_hat = D^-1/2 (A_offdiag + I_valid) D^-1/2, built in-register (no scatter).
        a = adj * (1.0 - eye) + eye * valid_r
        deg_r = jnp.sum(a, axis=1, keepdims=True)
        deg_c = jnp.sum(a, axis=0, keepdims=True)
        dinv_r = jnp.where(valid_r > 0.0, lax.rsqrt(jnp.maximum(deg_r, 1e-12)), 0.0)
        dinv_c = jnp.where(valid_c > 0.0, lax.rsqrt(jnp.maximum(deg_c, 1e-12)), 0.0)
        ahat = dinv_r * a * dinv_c
        xw = jnp.dot(h, cw, preferred_element_type=f32)
        agg = jnp.dot(ahat, xw, preferred_element_type=f32)
        return jnp.maximum(agg + cb, 0.0) * valid_r

    def edge_pool(h, adj, valid_r, valid_c, w_src, w_dst, pb):
        # Raw directed-edge scores R[s,d] = h[s]·w_src + h[d]·w_dst + b  (MXU).
        s_src = jnp.dot(h, w_src, preferred_element_type=f32)        # [N,1]
        s_dst = jnp.dot(h, w_dst, preferred_element_type=f32)        # [N,1]
        raw = s_src + to_col(s_dst) + pb                             # [N,N]
        # Per-destination softmax over existing edges (columns), then + 0.5.
        masked_raw = jnp.where(adj > 0.0, raw, NEG)
        colmax = jnp.max(masked_raw, axis=0, keepdims=True)          # [1,N]
        ex = jnp.where(adj > 0.0, jnp.exp(masked_raw - colmax), 0.0)
        colsum = jnp.sum(ex, axis=0, keepdims=True)
        scores = ex * pl.reciprocal(colsum + 1e-16, approx=True) + 0.5

        # Greedy maximal matching by descending score, fully vectorized:
        # each step picks the best still-eligible edge and removes its endpoints.
        def merge_body(_, carry):
            rem_r, rem_c, sel = carry
            elig = (adj * rem_r * rem_c) > 0.0
            masked = jnp.where(elig, scores, NEG)
            m = jnp.max(jnp.max(masked, axis=1, keepdims=True), axis=0, keepdims=True)
            is_max = elig & (masked >= m)
            cand = jnp.where(is_max, flat_idx, BIG)
            best = jnp.min(jnp.min(cand, axis=1, keepdims=True), axis=0, keepdims=True)
            s_i = jnp.floor(best * (1.0 / N))
            d_i = best - s_i * N
            pick = (is_max & (flat_idx == best)).astype(f32)
            sel = sel + pick * scores
            rem_r = (rem_r
                     * (1.0 - (iota_r == s_i).astype(f32))
                     * (1.0 - (iota_r == d_i).astype(f32)))
            rem_c = (rem_c
                     * (1.0 - (iota_c == s_i).astype(f32))
                     * (1.0 - (iota_c == d_i).astype(f32)))
            return rem_r, rem_c, sel

        rem_r, rem_c, sel = lax.fori_loop(
            0, N, merge_body, (valid_r, valid_c, jnp.zeros((N, N), f32)))

        sel_i = (sel > 0.0).astype(f32)                       # picked-edge indicator
        offd = sel_i * (1.0 - eye)
        matched_r = jnp.max(sel_i, axis=1, keepdims=True)     # contraction representatives
        keep_r = valid_r * rem_r                              # untouched valid nodes
        new_valid_r = matched_r + keep_r
        new_valid_c = to_col(new_valid_r)
        # Q[m,n] = 1 iff old node n maps to new node m (representative keeps its slot).
        q = eye * new_valid_r + offd
        score_vec = jnp.sum(sel, axis=1, keepdims=True) + keep_r
        new_h = jnp.dot(q, h, preferred_element_type=f32) * score_vec    # scatter-add * score
        qa = jnp.dot(q, adj, preferred_element_type=f32)
        qaqt = lax.dot_general(qa, q, (((1,), (1,)), ((), ())),
                               preferred_element_type=f32)               # Q A Q^T
        new_adj = (qaqt > 0.0).astype(f32)                               # coalesce duplicates
        return new_h, new_adj, new_valid_r, new_valid_c

    def readout(h, valid_r, valid_c, boh_nb, boh_bn):
        goh_bn = boh_bn * valid_c                             # [B,N]
        cnt = jnp.sum(goh_bn, axis=1, keepdims=True)          # [B,1]
        inv_cnt = jnp.where(cnt > 0.0, 1.0 / jnp.maximum(cnt, 1.0), 0.0)
        gap = jnp.dot(goh_bn, h, preferred_element_type=f32) * inv_cnt   # mean pool (MXU)
        gmps = []
        for g in range(NUM_GRAPHS):
            mcol = boh_nb[:, g:g + 1] * valid_r               # [N,1]
            gm = jnp.max(jnp.where(mcol > 0.0, h, NEG), axis=0, keepdims=True)
            gmps.append(jnp.where(cnt[g:g + 1, :] > 0.0, gm, 0.0))
        gmp = jnp.concatenate(gmps, axis=0)                   # [B,H]
        return jnp.concatenate([gmp, gap], axis=1)            # [B,2H]

    h = x_ref[...]
    adj = adj_ref[...]
    boh_nb = boh_nb_ref[...]
    boh_bn = boh_bn_ref[...]
    valid_r = jnp.ones((N, 1), f32)
    valid_c = jnp.ones((1, N), f32)

    blocks = (
        (c1w_ref[...], c1b_ref[...], p1s_ref[...], p1d_ref[...], p1b_ref[...]),
        (c2w_ref[...], c2b_ref[...], p2s_ref[...], p2d_ref[...], p2b_ref[...]),
        (c3w_ref[...], c3b_ref[...], p3s_ref[...], p3d_ref[...], p3b_ref[...]),
    )

    xs = jnp.zeros((NUM_GRAPHS, 2 * NHID), f32)
    for cw, cb, ps, pd, pb in blocks:
        h = gcn_relu(h, adj, valid_r, valid_c, cw, cb)
        h, adj, valid_r, valid_c = edge_pool(h, adj, valid_r, valid_c, ps, pd, pb)
        xs = xs + readout(h, valid_r, valid_c, boh_nb, boh_bn)

    h1 = jnp.maximum(
        jnp.dot(xs, l1w_ref[...], preferred_element_type=f32) + l1b_ref[...], 0.0)
    # dropout: identity (eval mode)
    h2 = jnp.maximum(
        jnp.dot(h1, l2w_ref[...], preferred_element_type=f32) + l2b_ref[...], 0.0)
    logits = jnp.dot(h2, l3w_ref[...], preferred_element_type=f32) + l3b_ref[...]
    zmax = jnp.max(logits, axis=-1, keepdims=True)
    z = logits - zmax
    out_ref[...] = z - jnp.log(jnp.sum(jnp.exp(z), axis=-1, keepdims=True))


# ----------------------------- wrapper ---------------------------------------
def edgenet_forward(params, x, edge_index, batch):
    nodes = jnp.arange(N, dtype=edge_index.dtype)
    src_oh = (edge_index[0][:, None] == nodes[None, :]).astype(jnp.float32)    # [E,N]
    dst_oh = (edge_index[1][:, None] == nodes[None, :]).astype(jnp.float32)    # [E,N]
    adj = (jnp.einsum("es,ed->sd", src_oh, dst_oh) > 0.0).astype(jnp.float32)  # [N,N] dense A
    graphs = jnp.arange(NUM_GRAPHS, dtype=batch.dtype)
    boh_nb = (batch[:, None] == graphs[None, :]).astype(jnp.float32)           # [N,B]
    boh_bn = (graphs[:, None] == batch[None, :]).astype(jnp.float32)           # [B,N]

    def split(w):
        return w[:NHID, :], w[NHID:, :]

    p1s, p1d = split(params["pool1_w"])
    p2s, p2d = split(params["pool2_w"])
    p3s, p3d = split(params["pool3_w"])

    args = (
        x, adj, boh_nb, boh_bn,
        params["conv1_w"], params["conv1_b"],
        params["conv2_w"], params["conv2_b"],
        params["conv3_w"], params["conv3_b"],
        p1s, p1d, params["pool1_b"],
        p2s, p2d, params["pool2_b"],
        p3s, p3d, params["pool3_b"],
        params["lin1_w"], params["lin1_b"],
        params["lin2_w"], params["lin2_b"],
        params["lin3_w"], params["lin3_b"],
    )
    return pl.pallas_call(
        edgenet_kernel,
        out_shape=jax.ShapeDtypeStruct((NUM_GRAPHS, NUM_CLASSES), jnp.float32),
        in_specs=[pl.BlockSpec(memory_space=pltpu.MemorySpace.VMEM)] * len(args),
        out_specs=pl.BlockSpec(memory_space=pltpu.MemorySpace.VMEM),
    )(*args)


# ----------------------------- params & inputs ------------------------------
def init_params(key):
    ks = jax.random.split(key, 9)

    def w(k, shape, scale=0.2):
        return (scale * jax.random.normal(k, shape)).astype(jnp.float32)

    return {
        "conv1_w": w(ks[0], (NUM_FEATURES, NHID)),
        "conv1_b": jnp.zeros((1, NHID), jnp.float32),
        "conv2_w": w(ks[1], (NHID, NHID)),
        "conv2_b": jnp.zeros((1, NHID), jnp.float32),
        "conv3_w": w(ks[2], (NHID, NHID)),
        "conv3_b": jnp.zeros((1, NHID), jnp.float32),
        # EdgePooling score head: Linear(2*nhid, 1) stored as [2*nhid, 1].
        "pool1_w": w(ks[3], (2 * NHID, 1)),
        "pool1_b": jnp.zeros((1, 1), jnp.float32),
        "pool2_w": w(ks[4], (2 * NHID, 1)),
        "pool2_b": jnp.zeros((1, 1), jnp.float32),
        "pool3_w": w(ks[5], (2 * NHID, 1)),
        "pool3_b": jnp.zeros((1, 1), jnp.float32),
        "lin1_w": w(ks[6], (2 * NHID, NHID)),
        "lin1_b": jnp.zeros((1, NHID), jnp.float32),
        "lin2_w": w(ks[7], (NHID, NHID // 2)),
        "lin2_b": jnp.zeros((1, NHID // 2), jnp.float32),
        "lin3_w": w(ks[8], (NHID // 2, NUM_CLASSES)),
        "lin3_b": jnp.zeros((1, NUM_CLASSES), jnp.float32),
    }


def make_inputs(key):
    x = jax.random.normal(key, (N, NUM_FEATURES), dtype=jnp.float32)
    src, dst = [], []
    for g in range(NUM_GRAPHS):
        for k in range(NODES_PER_GRAPH):
            u = g * NODES_PER_GRAPH + k
            v = g * NODES_PER_GRAPH + (k + 1) % NODES_PER_GRAPH
            src += [u, v]
            dst += [v, u]
    edge_index = jnp.array([src, dst], dtype=jnp.int32)
    batch = jnp.array([g for g in range(NUM_GRAPHS) for _ in range(NODES_PER_GRAPH)],
                      dtype=jnp.int32)
    return x, edge_index, batch


if __name__ == "__main__":
    key = jax.random.PRNGKey(0)
    kp, kx = jax.random.split(key)
    params = init_params(kp)
    x, edge_index, batch = make_inputs(kx)

    fwd = jax.jit(functools.partial(edgenet_forward, params))
    out = fwd(x, edge_index, batch)
    out = jax.block_until_ready(out)

    assert out.shape == (NUM_GRAPHS, NUM_CLASSES)
    assert bool(jnp.all(jnp.isfinite(out)))
    print("KERNEL_OK")
</pallas_src>

<mosaic_0001>
module attributes {stable_mosaic.version = 11 : i64} {
  func.func @edgenet_kernel(%arg0: memref<16x16xf32, #tpu.memory_space<vmem>>, %arg1: memref<16x16xf32, #tpu.memory_space<vmem>>, %arg2: memref<16x2xf32, #tpu.memory_space<vmem>>, %arg3: memref<2x16xf32, #tpu.memory_space<vmem>>, %arg4: memref<16x32xf32, #tpu.memory_space<vmem>>, %arg5: memref<1x32xf32, #tpu.memory_space<vmem>>, %arg6: memref<32x32xf32, #tpu.memory_space<vmem>>, %arg7: memref<1x32xf32, #tpu.memory_space<vmem>>, %arg8: memref<32x32xf32, #tpu.memory_space<vmem>>, %arg9: memref<1x32xf32, #tpu.memory_space<vmem>>, %arg10: memref<32x1xf32, #tpu.memory_space<vmem>>, %arg11: memref<32x1xf32, #tpu.memory_space<vmem>>, %arg12: memref<1x1xf32, #tpu.memory_space<vmem>>, %arg13: memref<32x1xf32, #tpu.memory_space<vmem>>, %arg14: memref<32x1xf32, #tpu.memory_space<vmem>>, %arg15: memref<1x1xf32, #tpu.memory_space<vmem>>, %arg16: memref<32x1xf32, #tpu.memory_space<vmem>>, %arg17: memref<32x1xf32, #tpu.memory_space<vmem>>, %arg18: memref<1x1xf32, #tpu.memory_space<vmem>>, %arg19: memref<64x32xf32, #tpu.memory_space<vmem>>, %arg20: memref<1x32xf32, #tpu.memory_space<vmem>>, %arg21: memref<32x16xf32, #tpu.memory_space<vmem>>, %arg22: memref<1x16xf32, #tpu.memory_space<vmem>>, %arg23: memref<16x4xf32, #tpu.memory_space<vmem>>, %arg24: memref<1x4xf32, #tpu.memory_space<vmem>>, %arg25: memref<2x4xf32, #tpu.memory_space<vmem>>) attributes {dimension_semantics = [], scalar_prefetch = 0 : i64, scratch_operands = 0 : i64, tpu.core_type = #tpu.core_type<tc>} {
    %0 = tpu.iota {dimensions = array<i32: 0>} : vector<16x16xi32>
    %1 = tpu.iota {dimensions = array<i32: 1>} : vector<16x16xi32>
    %2 = arith.cmpi eq, %0, %1 : vector<16x16xi32>
    %3 = arith.extui %2 : vector<16x16xi1> to vector<16x16xi32>
    %4 = arith.sitofp %3 : vector<16x16xi32> to vector<16x16xf32>
    %5 = tpu.iota {dimensions = array<i32: 0>} : vector<16x1xi32>
    %6 = arith.sitofp %5 : vector<16x1xi32> to vector<16x1xf32>
    %7 = tpu.iota {dimensions = array<i32: 1>} : vector<1x16xi32>
    %8 = arith.sitofp %7 : vector<1x16xi32> to vector<1x16xf32>
    %9 = tpu.iota {dimensions = array<i32: 0>} : vector<16x16xi32>
    %10 = arith.sitofp %9 : vector<16x16xi32> to vector<16x16xf32>
    %cst = arith.constant 1.600000e+01 : f32
    %11 = vector.broadcast %cst : f32 to vector<16x16xf32>
    %12 = arith.mulf %10, %11 : vector<16x16xf32>
    %13 = tpu.iota {dimensions = array<i32: 1>} : vector<16x16xi32>
    %14 = arith.sitofp %13 : vector<16x16xi32> to vector<16x16xf32>
    %15 = arith.addf %12, %14 : vector<16x16xf32>
    %c0 = arith.constant 0 : index
    %c0_0 = arith.constant 0 : index
    %16 = vector.load %arg0[%c0, %c0_0] : memref<16x16xf32, #tpu.memory_space<vmem>>, vector<16x16xf32>
    %c0_1 = arith.constant 0 : index
    %c0_2 = arith.constant 0 : index
    %17 = vector.load %arg1[%c0_1, %c0_2] : memref<16x16xf32, #tpu.memory_space<vmem>>, vector<16x16xf32>
    %c0_3 = arith.constant 0 : index
    %c0_4 = arith.constant 0 : index
    %18 = vector.load %arg2[%c0_3, %c0_4] : memref<16x2xf32, #tpu.memory_space<vmem>>, vector<16x2xf32>
    %c0_5 = arith.constant 0 : index
    %c0_6 = arith.constant 0 : index
    %19 = vector.load %arg3[%c0_5, %c0_6] : memref<2x16xf32, #tpu.memory_space<vmem>>, vector<2x16xf32>
    %cst_7 = arith.constant 1.000000e+00 : f32
    %20 = vector.broadcast %cst_7 : f32 to vector<16x1xf32>
    %cst_8 = arith.constant 1.000000e+00 : f32
    %21 = vector.broadcast %cst_8 : f32 to vector<1x16xf32>
    %c0_9 = arith.constant 0 : index
    %c0_10 = arith.constant 0 : index
    %22 = vector.load %arg4[%c0_9, %c0_10] : memref<16x32xf32, #tpu.memory_space<vmem>>, vector<16x32xf32>
    %c0_11 = arith.constant 0 : index
    %c0_12 = arith.constant 0 : index
    %23 = vector.load %arg5[%c0_11, %c0_12] : memref<1x32xf32, #tpu.memory_space<vmem>>, vector<1x32xf32>
    %c0_13 = arith.constant 0 : index
    %c0_14 = arith.constant 0 : index
    %24 = vector.load %arg10[%c0_13, %c0_14] : memref<32x1xf32, #tpu.memory_space<vmem>>, vector<32x1xf32>
    %c0_15 = arith.constant 0 : index
    %c0_16 = arith.constant 0 : index
    %25 = vector.load %arg11[%c0_15, %c0_16] : memref<32x1xf32, #tpu.memory_space<vmem>>, vector<32x1xf32>
    %c0_17 = arith.constant 0 : index
    %c0_18 = arith.constant 0 : index
    %26 = vector.load %arg12[%c0_17, %c0_18] : memref<1x1xf32, #tpu.memory_space<vmem>>, vector<1x1xf32>
    %c0_19 = arith.constant 0 : index
    %c0_20 = arith.constant 0 : index
    %27 = vector.load %arg6[%c0_19, %c0_20] : memref<32x32xf32, #tpu.memory_space<vmem>>, vector<32x32xf32>
    %c0_21 = arith.constant 0 : index
    %c0_22 = arith.constant 0 : index
    %28 = vector.load %arg7[%c0_21, %c0_22] : memref<1x32xf32, #tpu.memory_space<vmem>>, vector<1x32xf32>
    %c0_23 = arith.constant 0 : index
    %c0_24 = arith.constant 0 : index
    %29 = vector.load %arg13[%c0_23, %c0_24] : memref<32x1xf32, #tpu.memory_space<vmem>>, vector<32x1xf32>
    %c0_25 = arith.constant 0 : index
    %c0_26 = arith.constant 0 : index
    %30 = vector.load %arg14[%c0_25, %c0_26] : memref<32x1xf32, #tpu.memory_space<vmem>>, vector<32x1xf32>
    %c0_27 = arith.constant 0 : index
    %c0_28 = arith.constant 0 : index
    %31 = vector.load %arg15[%c0_27, %c0_28] : memref<1x1xf32, #tpu.memory_space<vmem>>, vector<1x1xf32>
    %c0_29 = arith.constant 0 : index
    %c0_30 = arith.constant 0 : index
    %32 = vector.load %arg8[%c0_29, %c0_30] : memref<32x32xf32, #tpu.memory_space<vmem>>, vector<32x32xf32>
    %c0_31 = arith.constant 0 : index
    %c0_32 = arith.constant 0 : index
    %33 = vector.load %arg9[%c0_31, %c0_32] : memref<1x32xf32, #tpu.memory_space<vmem>>, vector<1x32xf32>
    %c0_33 = arith.constant 0 : index
    %c0_34 = arith.constant 0 : index
    %34 = vector.load %arg16[%c0_33, %c0_34] : memref<32x1xf32, #tpu.memory_space<vmem>>, vector<32x1xf32>
    %c0_35 = arith.constant 0 : index
    %c0_36 = arith.constant 0 : index
    %35 = vector.load %arg17[%c0_35, %c0_36] : memref<32x1xf32, #tpu.memory_space<vmem>>, vector<32x1xf32>
    %c0_37 = arith.constant 0 : index
    %c0_38 = arith.constant 0 : index
    %36 = vector.load %arg18[%c0_37, %c0_38] : memref<1x1xf32, #tpu.memory_space<vmem>>, vector<1x1xf32>
    %cst_39 = arith.constant 0.000000e+00 : f32
    %37 = vector.broadcast %cst_39 : f32 to vector<2x64xf32>
    %cst_40 = arith.constant 1.000000e+00 : f32
    %38 = vector.broadcast %cst_40 : f32 to vector<16x16xf32>
    %39 = arith.subf %38, %4 : vector<16x16xf32>
    %40 = arith.mulf %17, %39 : vector<16x16xf32>
    %41 = vector.broadcast %20 : vector<16x1xf32> to vector<16x16xf32>
    %42 = arith.mulf %4, %41 : vector<16x16xf32>
    %43 = arith.addf %40, %42 : vector<16x16xf32>
    %cst_41 = arith.constant dense<0.000000e+00> : vector<16xf32>
    %44 = vector.multi_reduction <add>, %43, %cst_41 [1] : vector<16x16xf32> to vector<16xf32>
    %45 = vector.shape_cast %44 : vector<16xf32> to vector<16x1xf32>
    %cst_42 = arith.constant dense<0.000000e+00> : vector<16xf32>
    %46 = vector.multi_reduction <add>, %43, %cst_42 [0] : vector<16x16xf32> to vector<16xf32>
    %47 = vector.shape_cast %46 : vector<16xf32> to vector<1x16xf32>
    %cst_43 = arith.constant 0.000000e+00 : f32
    %48 = vector.broadcast %cst_43 : f32 to vector<16x1xf32>
    %49 = arith.cmpf ogt, %20, %48 : vector<16x1xf32>
    %cst_44 = arith.constant 9.99999996E-13 : f32
    %50 = vector.broadcast %cst_44 : f32 to vector<16x1xf32>
    %51 = arith.maximumf %45, %50 : vector<16x1xf32>
    %52 = math.rsqrt %51 : vector<16x1xf32>
    %cst_45 = arith.constant 0.000000e+00 : f32
    %53 = vector.broadcast %cst_45 : f32 to vector<16x1xf32>
    %54 = arith.select %49, %52, %53 : vector<16x1xi1>, vector<16x1xf32>
    %cst_46 = arith.constant 0.000000e+00 : f32
    %55 = vector.broadcast %cst_46 : f32 to vector<1x16xf32>
    %56 = arith.cmpf ogt, %21, %55 : vector<1x16xf32>
    %cst_47 = arith.constant 9.99999996E-13 : f32
    %57 = vector.broadcast %cst_47 : f32 to vector<1x16xf32>
    %58 = arith.maximumf %47, %57 : vector<1x16xf32>
    %59 = math.rsqrt %58 : vector<1x16xf32>
    %cst_48 = arith.constant 0.000000e+00 : f32
    %60 = vector.broadcast %cst_48 : f32 to vector<1x16xf32>
    %61 = arith.select %56, %59, %60 : vector<1x16xi1>, vector<1x16xf32>
    %62 = vector.broadcast %54 : vector<16x1xf32> to vector<16x16xf32>
    %63 = arith.mulf %62, %43 : vector<16x16xf32>
    %64 = vector.broadcast %61 : vector<1x16xf32> to vector<16x16xf32>
    %65 = arith.mulf %63, %64 : vector<16x16xf32>
    %cst_49 = arith.constant dense<0.000000e+00> : vector<16x32xf32>
    %66 = tpu.matmul %16, %22, %cst_49 {dimension_numbers = #tpu.dot_dimension_numbers<[1], [0], [0], [1], [0, 0, 1, 1], [], []>} : vector<16x16xf32>, vector<16x32xf32>, vector<16x32xf32> -> vector<16x32xf32>
    %cst_50 = arith.constant dense<0.000000e+00> : vector<16x32xf32>
    %67 = tpu.matmul %65, %66, %cst_50 {dimension_numbers = #tpu.dot_dimension_numbers<[1], [0], [0], [1], [0, 0, 1, 1], [], []>} : vector<16x16xf32>, vector<16x32xf32>, vector<16x32xf32> -> vector<16x32xf32>
    %68 = vector.broadcast %23 : vector<1x32xf32> to vector<16x32xf32>
    %69 = arith.addf %67, %68 : vector<16x32xf32>
    %cst_51 = arith.constant 0.000000e+00 : f32
    %70 = vector.broadcast %cst_51 : f32 to vector<16x32xf32>
    %71 = arith.maximumf %69, %70 : vector<16x32xf32>
    %72 = vector.broadcast %20 : vector<16x1xf32> to vector<16x32xf32>
    %73 = arith.mulf %71, %72 : vector<16x32xf32>
    %cst_52 = arith.constant dense<0.000000e+00> : vector<16x1xf32>
    %74 = tpu.matmul %73, %24, %cst_52 {dimension_numbers = #tpu.dot_dimension_numbers<[1], [0], [0], [1], [0, 0, 1, 1], [], []>} : vector<16x32xf32>, vector<32x1xf32>, vector<16x1xf32> -> vector<16x1xf32>
    %cst_53 = arith.constant dense<0.000000e+00> : vector<16x1xf32>
    %75 = tpu.matmul %73, %25, %cst_53 {dimension_numbers = #tpu.dot_dimension_numbers<[1], [0], [0], [1], [0, 0, 1, 1], [], []>} : vector<16x32xf32>, vector<32x1xf32>, vector<16x1xf32> -> vector<16x1xf32>
    %76 = vector.broadcast %75 : vector<16x1xf32> to vector<16x16xf32>
    %77 = arith.mulf %4, %76 : vector<16x16xf32>
    %cst_54 = arith.constant dense<0.000000e+00> : vector<16xf32>
    %78 = vector.multi_reduction <add>, %77, %cst_54 [0] : vector<16x16xf32> to vector<16xf32>
    %79 = vector.shape_cast %78 : vector<16xf32> to vector<1x16xf32>
    %80 = vector.broadcast %74 : vector<16x1xf32> to vector<16x16xf32>
    %81 = vector.broadcast %79 : vector<1x16xf32> to vector<16x16xf32>
    %82 = arith.addf %80, %81 : vector<16x16xf32>
    %83 = vector.broadcast %26 : vector<1x1xf32> to vector<16x16xf32>
    %84 = arith.addf %82, %83 : vector<16x16xf32>
    %cst_55 = arith.constant 0.000000e+00 : f32
    %85 = vector.broadcast %cst_55 : f32 to vector<16x16xf32>
    %86 = arith.cmpf ogt, %17, %85 : vector<16x16xf32>
    %cst_56 = arith.constant -1.000000e+30 : f32
    %87 = vector.broadcast %cst_56 : f32 to vector<16x16xf32>
    %88 = arith.select %86, %84, %87 : vector<16x16xi1>, vector<16x16xf32>
    %cst_57 = arith.constant dense<0xFF800000> : vector<16xf32>
    %89 = vector.multi_reduction <maximumf>, %88, %cst_57 [0] : vector<16x16xf32> to vector<16xf32>
    %90 = vector.shape_cast %89 : vector<16xf32> to vector<1x16xf32>
    %cst_58 = arith.constant 0.000000e+00 : f32
    %91 = vector.broadcast %cst_58 : f32 to vector<16x16xf32>
    %92 = arith.cmpf ogt, %17, %91 : vector<16x16xf32>
    %93 = vector.broadcast %90 : vector<1x16xf32> to vector<16x16xf32>
    %94 = arith.subf %88, %93 : vector<16x16xf32>
    %95 = math.exp %94 : vector<16x16xf32>
    %cst_59 = arith.constant 0.000000e+00 : f32
    %96 = vector.broadcast %cst_59 : f32 to vector<16x16xf32>
    %97 = arith.select %92, %95, %96 : vector<16x16xi1>, vector<16x16xf32>
    %cst_60 = arith.constant dense<0.000000e+00> : vector<16xf32>
    %98 = vector.multi_reduction <add>, %97, %cst_60 [0] : vector<16x16xf32> to vector<16xf32>
    %99 = vector.shape_cast %98 : vector<16xf32> to vector<1x16xf32>
    %cst_61 = arith.constant 1.000000e-16 : f32
    %100 = vector.broadcast %cst_61 : f32 to vector<1x16xf32>
    %101 = arith.addf %99, %100 : vector<1x16xf32>
    %102 = tpu.reciprocal %101 {approx = true} : vector<1x16xf32> -> vector<1x16xf32>
    %103 = vector.broadcast %102 : vector<1x16xf32> to vector<16x16xf32>
    %104 = arith.mulf %97, %103 : vector<16x16xf32>
    %cst_62 = arith.constant 5.000000e-01 : f32
    %105 = vector.broadcast %cst_62 : f32 to vector<16x16xf32>
    %106 = arith.addf %104, %105 : vector<16x16xf32>
    %cst_63 = arith.constant 0.000000e+00 : f32
    %107 = vector.broadcast %cst_63 : f32 to vector<16x16xf32>
    %c0_i32 = arith.constant 0 : i32
    %c16_i32 = arith.constant 16 : i32
    %108 = arith.addi %c0_i32, %c16_i32 : i32
    %c1_i32 = arith.constant 1 : i32
    %109:3 = scf.for %arg26 = %c0_i32 to %108 step %c1_i32 iter_args(%arg27 = %20, %arg28 = %21, %arg29 = %107) -> (vector<16x1xf32>, vector<1x16xf32>, vector<16x16xf32>)  : i32 {
      %524 = vector.broadcast %arg27 : vector<16x1xf32> to vector<16x16xf32>
      %525 = arith.mulf %17, %524 : vector<16x16xf32>
      %526 = vector.broadcast %arg28 : vector<1x16xf32> to vector<16x16xf32>
      %527 = arith.mulf %525, %526 : vector<16x16xf32>
      %cst_211 = arith.constant 0.000000e+00 : f32
      %528 = vector.broadcast %cst_211 : f32 to vector<16x16xf32>
      %529 = arith.cmpf ogt, %527, %528 : vector<16x16xf32>
      %cst_212 = arith.constant -1.000000e+30 : f32
      %530 = vector.broadcast %cst_212 : f32 to vector<16x16xf32>
      %531 = arith.select %529, %106, %530 : vector<16x16xi1>, vector<16x16xf32>
      %cst_213 = arith.constant dense<0xFF800000> : vector<16xf32>
      %532 = vector.multi_reduction <maximumf>, %531, %cst_213 [1] : vector<16x16xf32> to vector<16xf32>
      %533 = vector.shape_cast %532 : vector<16xf32> to vector<16x1xf32>
      %cst_214 = arith.constant dense<0xFF800000> : vector<1xf32>
      %534 = vector.multi_reduction <maximumf>, %533, %cst_214 [0] : vector<16x1xf32> to vector<1xf32>
      %535 = vector.shape_cast %534 : vector<1xf32> to vector<1x1xf32>
      %536 = vector.broadcast %535 : vector<1x1xf32> to vector<16x16xf32>
      %537 = arith.cmpf oge, %531, %536 : vector<16x16xf32>
      %538 = arith.andi %529, %537 : vector<16x16xi1>
      %cst_215 = arith.constant 1.000000e+09 : f32
      %539 = vector.broadcast %cst_215 : f32 to vector<16x16xf32>
      %540 = arith.select %538, %15, %539 : vector<16x16xi1>, vector<16x16xf32>
      %cst_216 = arith.constant dense<0x7F800000> : vector<16xf32>
      %541 = vector.multi_reduction <minimumf>, %540, %cst_216 [1] : vector<16x16xf32> to vector<16xf32>
      %542 = vector.shape_cast %541 : vector<16xf32> to vector<16x1xf32>
      %cst_217 = arith.constant dense<0x7F800000> : vector<1xf32>
      %543 = vector.multi_reduction <minimumf>, %542, %cst_217 [0] : vector<16x1xf32> to vector<1xf32>
      %544 = vector.shape_cast %543 : vector<1xf32> to vector<1x1xf32>
      %cst_218 = arith.constant 6.250000e-02 : f32
      %545 = vector.broadcast %cst_218 : f32 to vector<1x1xf32>
      %546 = arith.mulf %544, %545 : vector<1x1xf32>
      %547 = math.floor %546 : vector<1x1xf32>
      %cst_219 = arith.constant 1.600000e+01 : f32
      %548 = vector.broadcast %cst_219 : f32 to vector<1x1xf32>
      %549 = arith.mulf %547, %548 : vector<1x1xf32>
      %550 = arith.subf %544, %549 : vector<1x1xf32>
      %551 = vector.broadcast %544 : vector<1x1xf32> to vector<16x16xf32>
      %552 = arith.cmpf oeq, %15, %551 : vector<16x16xf32>
      %553 = arith.andi %538, %552 : vector<16x16xi1>
      %554 = arith.extui %553 : vector<16x16xi1> to vector<16x16xi32>
      %555 = arith.sitofp %554 : vector<16x16xi32> to vector<16x16xf32>
      %556 = arith.mulf %555, %106 : vector<16x16xf32>
      %557 = arith.addf %arg29, %556 : vector<16x16xf32>
      %558 = vector.broadcast %547 : vector<1x1xf32> to vector<16x1xf32>
      %559 = arith.cmpf oeq, %6, %558 : vector<16x1xf32>
      %560 = arith.extui %559 : vector<16x1xi1> to vector<16x1xi32>
      %561 = arith.sitofp %560 : vector<16x1xi32> to vector<16x1xf32>
      %cst_220 = arith.constant 1.000000e+00 : f32
      %562 = vector.broadcast %cst_220 : f32 to vector<16x1xf32>
      %563 = arith.subf %562, %561 : vector<16x1xf32>
      %564 = arith.mulf %arg27, %563 : vector<16x1xf32>
      %565 = vector.broadcast %550 : vector<1x1xf32> to vector<16x1xf32>
      %566 = arith.cmpf oeq, %6, %565 : vector<16x1xf32>
      %567 = arith.extui %566 : vector<16x1xi1> to vector<16x1xi32>
      %568 = arith.sitofp %567 : vector<16x1xi32> to vector<16x1xf32>
      %cst_221 = arith.constant 1.000000e+00 : f32
      %569 = vector.broadcast %cst_221 : f32 to vector<16x1xf32>
      %570 = arith.subf %569, %568 : vector<16x1xf32>
      %571 = arith.mulf %564, %570 : vector<16x1xf32>
      %572 = vector.broadcast %547 : vector<1x1xf32> to vector<1x16xf32>
      %573 = arith.cmpf oeq, %8, %572 : vector<1x16xf32>
      %574 = arith.extui %573 : vector<1x16xi1> to vector<1x16xi32>
      %575 = arith.sitofp %574 : vector<1x16xi32> to vector<1x16xf32>
      %cst_222 = arith.constant 1.000000e+00 : f32
      %576 = vector.broadcast %cst_222 : f32 to vector<1x16xf32>
      %577 = arith.subf %576, %575 : vector<1x16xf32>
      %578 = arith.mulf %arg28, %577 : vector<1x16xf32>
      %579 = vector.broadcast %550 : vector<1x1xf32> to vector<1x16xf32>
      %580 = arith.cmpf oeq, %8, %579 : vector<1x16xf32>
      %581 = arith.extui %580 : vector<1x16xi1> to vector<1x16xi32>
      %582 = arith.sitofp %581 : vector<1x16xi32> to vector<1x16xf32>
      %cst_223 = arith.constant 1.000000e+00 : f32
      %583 = vector.broadcast %cst_223 : f32 to vector<1x16xf32>
      %584 = arith.subf %583, %582 : vector<1x16xf32>
      %585 = arith.mulf %578, %584 : vector<1x16xf32>
      scf.yield %571, %585, %557 : vector<16x1xf32>, vector<1x16xf32>, vector<16x16xf32>
    }
    %cst_64 = arith.constant 0.000000e+00 : f32
    %110 = vector.broadcast %cst_64 : f32 to vector<16x16xf32>
    %111 = arith.cmpf ogt, %109#2, %110 : vector<16x16xf32>
    %112 = arith.extui %111 : vector<16x16xi1> to vector<16x16xi32>
    %113 = arith.sitofp %112 : vector<16x16xi32> to vector<16x16xf32>
    %cst_65 = arith.constant 1.000000e+00 : f32
    %114 = vector.broadcast %cst_65 : f32 to vector<16x16xf32>
    %115 = arith.subf %114, %4 : vector<16x16xf32>
    %116 = arith.mulf %113, %115 : vector<16x16xf32>
    %cst_66 = arith.constant dense<0xFF800000> : vector<16xf32>
    %117 = vector.multi_reduction <maximumf>, %113, %cst_66 [1] : vector<16x16xf32> to vector<16xf32>
    %118 = vector.shape_cast %117 : vector<16xf32> to vector<16x1xf32>
    %119 = arith.mulf %20, %109#0 : vector<16x1xf32>
    %120 = arith.addf %118, %119 : vector<16x1xf32>
    %121 = vector.broadcast %120 : vector<16x1xf32> to vector<16x16xf32>
    %122 = arith.mulf %4, %121 : vector<16x16xf32>
    %cst_67 = arith.constant dense<0.000000e+00> : vector<16xf32>
    %123 = vector.multi_reduction <add>, %122, %cst_67 [0] : vector<16x16xf32> to vector<16xf32>
    %124 = vector.shape_cast %123 : vector<16xf32> to vector<1x16xf32>
    %125 = vector.broadcast %120 : vector<16x1xf32> to vector<16x16xf32>
    %126 = arith.mulf %4, %125 : vector<16x16xf32>
    %127 = arith.addf %126, %116 : vector<16x16xf32>
    %cst_68 = arith.constant dense<0.000000e+00> : vector<16xf32>
    %128 = vector.multi_reduction <add>, %109#2, %cst_68 [1] : vector<16x16xf32> to vector<16xf32>
    %129 = vector.shape_cast %128 : vector<16xf32> to vector<16x1xf32>
    %130 = arith.addf %129, %119 : vector<16x1xf32>
    %cst_69 = arith.constant dense<0.000000e+00> : vector<16x32xf32>
    %131 = tpu.matmul %127, %73, %cst_69 {dimension_numbers = #tpu.dot_dimension_numbers<[1], [0], [0], [1], [0, 0, 1, 1], [], []>} : vector<16x16xf32>, vector<16x32xf32>, vector<16x32xf32> -> vector<16x32xf32>
    %132 = vector.broadcast %130 : vector<16x1xf32> to vector<16x32xf32>
    %133 = arith.mulf %131, %132 : vector<16x32xf32>
    %cst_70 = arith.constant dense<0.000000e+00> : vector<16x16xf32>
    %134 = tpu.matmul %127, %17, %cst_70 {dimension_numbers = #tpu.dot_dimension_numbers<[1], [0], [0], [1], [0, 0, 1, 1], [], []>} : vector<16x16xf32>, vector<16x16xf32>, vector<16x16xf32> -> vector<16x16xf32>
    %cst_71 = arith.constant dense<0.000000e+00> : vector<16x16xf32>
    %135 = tpu.matmul %134, %127, %cst_71 {dimension_numbers = #tpu.dot_dimension_numbers<[1], [1], [0], [0], [0, 0, 1, 0], [], []>} : vector<16x16xf32>, vector<16x16xf32>, vector<16x16xf32> -> vector<16x16xf32>
    %cst_72 = arith.constant 0.000000e+00 : f32
    %136 = vector.broadcast %cst_72 : f32 to vector<16x16xf32>
    %137 = arith.cmpf ogt, %135, %136 : vector<16x16xf32>
    %138 = arith.extui %137 : vector<16x16xi1> to vector<16x16xi32>
    %139 = arith.sitofp %138 : vector<16x16xi32> to vector<16x16xf32>
    %140 = vector.broadcast %124 : vector<1x16xf32> to vector<2x16xf32>
    %141 = arith.mulf %19, %140 : vector<2x16xf32>
    %cst_73 = arith.constant dense<0.000000e+00> : vector<2xf32>
    %142 = vector.multi_reduction <add>, %141, %cst_73 [1] : vector<2x16xf32> to vector<2xf32>
    %143 = vector.shape_cast %142 : vector<2xf32> to vector<2x1xf32>
    %cst_74 = arith.constant 0.000000e+00 : f32
    %144 = vector.broadcast %cst_74 : f32 to vector<2x1xf32>
    %145 = arith.cmpf ogt, %143, %144 : vector<2x1xf32>
    %cst_75 = arith.constant 1.000000e+00 : f32
    %146 = vector.broadcast %cst_75 : f32 to vector<2x1xf32>
    %147 = arith.maximumf %143, %146 : vector<2x1xf32>
    %cst_76 = arith.constant 1.000000e+00 : f32
    %148 = vector.broadcast %cst_76 : f32 to vector<2x1xf32>
    %149 = arith.divf %148, %147 : vector<2x1xf32>
    %cst_77 = arith.constant 0.000000e+00 : f32
    %150 = vector.broadcast %cst_77 : f32 to vector<2x1xf32>
    %151 = arith.select %145, %149, %150 : vector<2x1xi1>, vector<2x1xf32>
    %cst_78 = arith.constant dense<0.000000e+00> : vector<2x32xf32>
    %152 = tpu.matmul %141, %133, %cst_78 {dimension_numbers = #tpu.dot_dimension_numbers<[1], [0], [0], [1], [0, 0, 1, 1], [], []>} : vector<2x16xf32>, vector<16x32xf32>, vector<2x32xf32> -> vector<2x32xf32>
    %153 = vector.broadcast %151 : vector<2x1xf32> to vector<2x32xf32>
    %154 = arith.mulf %152, %153 : vector<2x32xf32>
    %155 = vector.extract_strided_slice %18 {offsets = [0, 0], sizes = [16, 1], strides = [1, 1]} : vector<16x2xf32> to vector<16x1xf32>
    %156 = arith.mulf %155, %120 : vector<16x1xf32>
    %cst_79 = arith.constant 0.000000e+00 : f32
    %157 = vector.broadcast %cst_79 : f32 to vector<16x1xf32>
    %158 = arith.cmpf ogt, %156, %157 : vector<16x1xf32>
    %cst_80 = arith.constant -1.000000e+30 : f32
    %159 = vector.shape_cast %158 : vector<16x1xi1> to vector<16x1xi1>
    %160 = vector.broadcast %159 : vector<16x1xi1> to vector<16x32xi1>
    %161 = vector.broadcast %cst_80 : f32 to vector<16x32xf32>
    %162 = arith.select %160, %133, %161 : vector<16x32xi1>, vector<16x32xf32>
    %cst_81 = arith.constant dense<0xFF800000> : vector<32xf32>
    %163 = vector.multi_reduction <maximumf>, %162, %cst_81 [0] : vector<16x32xf32> to vector<32xf32>
    %164 = vector.shape_cast %163 : vector<32xf32> to vector<1x32xf32>
    %165 = vector.extract_strided_slice %143 {offsets = [0, 0], sizes = [1, 1], strides = [1, 1]} : vector<2x1xf32> to vector<1x1xf32>
    %cst_82 = arith.constant 0.000000e+00 : f32
    %166 = vector.broadcast %cst_82 : f32 to vector<1x1xf32>
    %167 = arith.cmpf ogt, %165, %166 : vector<1x1xf32>
    %cst_83 = arith.constant 0.000000e+00 : f32
    %168 = vector.shape_cast %167 : vector<1x1xi1> to vector<1x1xi1>
    %169 = vector.broadcast %168 : vector<1x1xi1> to vector<1x32xi1>
    %170 = vector.broadcast %cst_83 : f32 to vector<1x32xf32>
    %171 = arith.select %169, %164, %170 : vector<1x32xi1>, vector<1x32xf32>
    %172 = vector.extract_strided_slice %18 {offsets = [0, 1], sizes = [16, 1], strides = [1, 1]} : vector<16x2xf32> to vector<16x1xf32>
    %173 = arith.mulf %172, %120 : vector<16x1xf32>
    %cst_84 = arith.constant 0.000000e+00 : f32
    %174 = vector.broadcast %cst_84 : f32 to vector<16x1xf32>
    %175 = arith.cmpf ogt, %173, %174 : vector<16x1xf32>
    %cst_85 = arith.constant -1.000000e+30 : f32
    %176 = vector.shape_cast %175 : vector<16x1xi1> to vector<16x1xi1>
    %177 = vector.broadcast %176 : vector<16x1xi1> to vector<16x32xi1>
    %178 = vector.broadcast %cst_85 : f32 to vector<16x32xf32>
    %179 = arith.select %177, %133, %178 : vector<16x32xi1>, vector<16x32xf32>
    %cst_86 = arith.constant dense<0xFF800000> : vector<32xf32>
    %180 = vector.multi_reduction <maximumf>, %179, %cst_86 [0] : vector<16x32xf32> to vector<32xf32>
    %181 = vector.shape_cast %180 : vector<32xf32> to vector<1x32xf32>
    %182 = vector.extract_strided_slice %143 {offsets = [1, 0], sizes = [1, 1], strides = [1, 1]} : vector<2x1xf32> to vector<1x1xf32>
    %cst_87 = arith.constant 0.000000e+00 : f32
    %183 = vector.broadcast %cst_87 : f32 to vector<1x1xf32>
    %184 = arith.cmpf ogt, %182, %183 : vector<1x1xf32>
    %cst_88 = arith.constant 0.000000e+00 : f32
    %185 = vector.shape_cast %184 : vector<1x1xi1> to vector<1x1xi1>
    %186 = vector.broadcast %185 : vector<1x1xi1> to vector<1x32xi1>
    %187 = vector.broadcast %cst_88 : f32 to vector<1x32xf32>
    %188 = arith.select %186, %181, %187 : vector<1x32xi1>, vector<1x32xf32>
    %189 = tpu.concatenate %171, %188 in 0 : vector<1x32xf32>, vector<1x32xf32> -> vector<2x32xf32>
    %190 = tpu.concatenate %189, %154 in 1 : vector<2x32xf32>, vector<2x32xf32> -> vector<2x64xf32>
    %191 = arith.addf %37, %190 : vector<2x64xf32>
    %cst_89 = arith.constant 1.000000e+00 : f32
    %192 = vector.broadcast %cst_89 : f32 to vector<16x16xf32>
    %193 = arith.subf %192, %4 : vector<16x16xf32>
    %194 = arith.mulf %139, %193 : vector<16x16xf32>
    %195 = vector.broadcast %120 : vector<16x1xf32> to vector<16x16xf32>
    %196 = arith.mulf %4, %195 : vector<16x16xf32>
    %197 = arith.addf %194, %196 : vector<16x16xf32>
    %cst_90 = arith.constant dense<0.000000e+00> : vector<16xf32>
    %198 = vector.multi_reduction <add>, %197, %cst_90 [1] : vector<16x16xf32> to vector<16xf32>
    %199 = vector.shape_cast %198 : vector<16xf32> to vector<16x1xf32>
    %cst_91 = arith.constant dense<0.000000e+00> : vector<16xf32>
    %200 = vector.multi_reduction <add>, %197, %cst_91 [0] : vector<16x16xf32> to vector<16xf32>
    %201 = vector.shape_cast %200 : vector<16xf32> to vector<1x16xf32>
    %cst_92 = arith.constant 0.000000e+00 : f32
    %202 = vector.broadcast %cst_92 : f32 to vector<16x1xf32>
    %203 = arith.cmpf ogt, %120, %202 : vector<16x1xf32>
    %cst_93 = arith.constant 9.99999996E-13 : f32
    %204 = vector.broadcast %cst_93 : f32 to vector<16x1xf32>
    %205 = arith.maximumf %199, %204 : vector<16x1xf32>
    %206 = math.rsqrt %205 : vector<16x1xf32>
    %cst_94 = arith.constant 0.000000e+00 : f32
    %207 = vector.broadcast %cst_94 : f32 to vector<16x1xf32>
    %208 = arith.select %203, %206, %207 : vector<16x1xi1>, vector<16x1xf32>
    %cst_95 = arith.constant 0.000000e+00 : f32
    %209 = vector.broadcast %cst_95 : f32 to vector<1x16xf32>
    %210 = arith.cmpf ogt, %124, %209 : vector<1x16xf32>
    %cst_96 = arith.constant 9.99999996E-13 : f32
    %211 = vector.broadcast %cst_96 : f32 to vector<1x16xf32>
    %212 = arith.maximumf %201, %211 : vector<1x16xf32>
    %213 = math.rsqrt %212 : vector<1x16xf32>
    %cst_97 = arith.constant 0.000000e+00 : f32
    %214 = vector.broadcast %cst_97 : f32 to vector<1x16xf32>
    %215 = arith.select %210, %213, %214 : vector<1x16xi1>, vector<1x16xf32>
    %216 = vector.broadcast %208 : vector<16x1xf32> to vector<16x16xf32>
    %217 = arith.mulf %216, %197 : vector<16x16xf32>
    %218 = vector.broadcast %215 : vector<1x16xf32> to vector<16x16xf32>
    %219 = arith.mulf %217, %218 : vector<16x16xf32>
    %cst_98 = arith.constant dense<0.000000e+00> : vector<16x32xf32>
    %220 = tpu.matmul %133, %27, %cst_98 {dimension_numbers = #tpu.dot_dimension_numbers<[1], [0], [0], [1], [0, 0, 1, 1], [], []>} : vector<16x32xf32>, vector<32x32xf32>, vector<16x32xf32> -> vector<16x32xf32>
    %cst_99 = arith.constant dense<0.000000e+00> : vector<16x32xf32>
    %221 = tpu.matmul %219, %220, %cst_99 {dimension_numbers = #tpu.dot_dimension_numbers<[1], [0], [0], [1], [0, 0, 1, 1], [], []>} : vector<16x16xf32>, vector<16x32xf32>, vector<16x32xf32> -> vector<16x32xf32>
    %222 = vector.broadcast %28 : vector<1x32xf32> to vector<16x32xf32>
    %223 = arith.addf %221, %222 : vector<16x32xf32>
    %cst_100 = arith.constant 0.000000e+00 : f32
    %224 = vector.broadcast %cst_100 : f32 to vector<16x32xf32>
    %225 = arith.maximumf %223, %224 : vector<16x32xf32>
    %226 = vector.broadcast %120 : vector<16x1xf32> to vector<16x32xf32>
    %227 = arith.mulf %225, %226 : vector<16x32xf32>
    %cst_101 = arith.constant dense<0.000000e+00> : vector<16x1xf32>
    %228 = tpu.matmul %227, %29, %cst_101 {dimension_numbers = #tpu.dot_dimension_numbers<[1], [0], [0], [1], [0, 0, 1, 1], [], []>} : vector<16x32xf32>, vector<32x1xf32>, vector<16x1xf32> -> vector<16x1xf32>
    %cst_102 = arith.constant dense<0.000000e+00> : vector<16x1xf32>
    %229 = tpu.matmul %227, %30, %cst_102 {dimension_numbers = #tpu.dot_dimension_numbers<[1], [0], [0], [1], [0, 0, 1, 1], [], []>} : vector<16x32xf32>, vector<32x1xf32>, vector<16x1xf32> -> vector<16x1xf32>
    %230 = vector.broadcast %229 : vector<16x1xf32> to vector<16x16xf32>
    %231 = arith.mulf %4, %230 : vector<16x16xf32>
    %cst_103 = arith.constant dense<0.000000e+00> : vector<16xf32>
    %232 = vector.multi_reduction <add>, %231, %cst_103 [0] : vector<16x16xf32> to vector<16xf32>
    %233 = vector.shape_cast %232 : vector<16xf32> to vector<1x16xf32>
    %234 = vector.broadcast %228 : vector<16x1xf32> to vector<16x16xf32>
    %235 = vector.broadcast %233 : vector<1x16xf32> to vector<16x16xf32>
    %236 = arith.addf %234, %235 : vector<16x16xf32>
    %237 = vector.broadcast %31 : vector<1x1xf32> to vector<16x16xf32>
    %238 = arith.addf %236, %237 : vector<16x16xf32>
    %cst_104 = arith.constant 0.000000e+00 : f32
    %239 = vector.broadcast %cst_104 : f32 to vector<16x16xf32>
    %240 = arith.cmpf ogt, %139, %239 : vector<16x16xf32>
    %cst_105 = arith.constant -1.000000e+30 : f32
    %241 = vector.broadcast %cst_105 : f32 to vector<16x16xf32>
    %242 = arith.select %240, %238, %241 : vector<16x16xi1>, vector<16x16xf32>
    %cst_106 = arith.constant dense<0xFF800000> : vector<16xf32>
    %243 = vector.multi_reduction <maximumf>, %242, %cst_106 [0] : vector<16x16xf32> to vector<16xf32>
    %244 = vector.shape_cast %243 : vector<16xf32> to vector<1x16xf32>
    %cst_107 = arith.constant 0.000000e+00 : f32
    %245 = vector.broadcast %cst_107 : f32 to vector<16x16xf32>
    %246 = arith.cmpf ogt, %139, %245 : vector<16x16xf32>
    %247 = vector.broadcast %244 : vector<1x16xf32> to vector<16x16xf32>
    %248 = arith.subf %242, %247 : vector<16x16xf32>
    %249 = math.exp %248 : vector<16x16xf32>
    %cst_108 = arith.constant 0.000000e+00 : f32
    %250 = vector.broadcast %cst_108 : f32 to vector<16x16xf32>
    %251 = arith.select %246, %249, %250 : vector<16x16xi1>, vector<16x16xf32>
    %cst_109 = arith.constant dense<0.000000e+00> : vector<16xf32>
    %252 = vector.multi_reduction <add>, %251, %cst_109 [0] : vector<16x16xf32> to vector<16xf32>
    %253 = vector.shape_cast %252 : vector<16xf32> to vector<1x16xf32>
    %cst_110 = arith.constant 1.000000e-16 : f32
    %254 = vector.broadcast %cst_110 : f32 to vector<1x16xf32>
    %255 = arith.addf %253, %254 : vector<1x16xf32>
    %256 = tpu.reciprocal %255 {approx = true} : vector<1x16xf32> -> vector<1x16xf32>
    %257 = vector.broadcast %256 : vector<1x16xf32> to vector<16x16xf32>
    %258 = arith.mulf %251, %257 : vector<16x16xf32>
    %cst_111 = arith.constant 5.000000e-01 : f32
    %259 = vector.broadcast %cst_111 : f32 to vector<16x16xf32>
    %260 = arith.addf %258, %259 : vector<16x16xf32>
    %cst_112 = arith.constant 0.000000e+00 : f32
    %261 = vector.broadcast %cst_112 : f32 to vector<16x16xf32>
    %c0_i32_113 = arith.constant 0 : i32
    %c16_i32_114 = arith.constant 16 : i32
    %262 = arith.addi %c0_i32_113, %c16_i32_114 : i32
    %c1_i32_115 = arith.constant 1 : i32
    %263:3 = scf.for %arg26 = %c0_i32_113 to %262 step %c1_i32_115 iter_args(%arg27 = %120, %arg28 = %124, %arg29 = %261) -> (vector<16x1xf32>, vector<1x16xf32>, vector<16x16xf32>)  : i32 {
      %524 = vector.broadcast %arg27 : vector<16x1xf32> to vector<16x16xf32>
      %525 = arith.mulf %139, %524 : vector<16x16xf32>
      %526 = vector.broadcast %arg28 : vector<1x16xf32> to vector<16x16xf32>
      %527 = arith.mulf %525, %526 : vector<16x16xf32>
      %cst_211 = arith.constant 0.000000e+00 : f32
      %528 = vector.broadcast %cst_211 : f32 to vector<16x16xf32>
      %529 = arith.cmpf ogt, %527, %528 : vector<16x16xf32>
      %cst_212 = arith.constant -1.000000e+30 : f32
      %530 = vector.broadcast %cst_212 : f32 to vector<16x16xf32>
      %531 = arith.select %529, %260, %530 : vector<16x16xi1>, vector<16x16xf32>
      %cst_213 = arith.constant dense<0xFF800000> : vector<16xf32>
      %532 = vector.multi_reduction <maximumf>, %531, %cst_213 [1] : vector<16x16xf32> to vector<16xf32>
      %533 = vector.shape_cast %532 : vector<16xf32> to vector<16x1xf32>
      %cst_214 = arith.constant dense<0xFF800000> : vector<1xf32>
      %534 = vector.multi_reduction <maximumf>, %533, %cst_214 [0] : vector<16x1xf32> to vector<1xf32>
      %535 = vector.shape_cast %534 : vector<1xf32> to vector<1x1xf32>
      %536 = vector.broadcast %535 : vector<1x1xf32> to vector<16x16xf32>
      %537 = arith.cmpf oge, %531, %536 : vector<16x16xf32>
      %538 = arith.andi %529, %537 : vector<16x16xi1>
      %cst_215 = arith.constant 1.000000e+09 : f32
      %539 = vector.broadcast %cst_215 : f32 to vector<16x16xf32>
      %540 = arith.select %538, %15, %539 : vector<16x16xi1>, vector<16x16xf32>
      %cst_216 = arith.constant dense<0x7F800000> : vector<16xf32>
      %541 = vector.multi_reduction <minimumf>, %540, %cst_216 [1] : vector<16x16xf32> to vector<16xf32>
      %542 = vector.shape_cast %541 : vector<16xf32> to vector<16x1xf32>
      %cst_217 = arith.constant dense<0x7F800000> : vector<1xf32>
      %543 = vector.multi_reduction <minimumf>, %542, %cst_217 [0] : vector<16x1xf32> to vector<1xf32>
      %544 = vector.shape_cast %543 : vector<1xf32> to vector<1x1xf32>
      %cst_218 = arith.constant 6.250000e-02 : f32
      %545 = vector.broadcast %cst_218 : f32 to vector<1x1xf32>
      %546 = arith.mulf %544, %545 : vector<1x1xf32>
      %547 = math.floor %546 : vector<1x1xf32>
      %cst_219 = arith.constant 1.600000e+01 : f32
      %548 = vector.broadcast %cst_219 : f32 to vector<1x1xf32>
      %549 = arith.mulf %547, %548 : vector<1x1xf32>
      %550 = arith.subf %544, %549 : vector<1x1xf32>
      %551 = vector.broadcast %544 : vector<1x1xf32> to vector<16x16xf32>
      %552 = arith.cmpf oeq, %15, %551 : vector<16x16xf32>
      %553 = arith.andi %538, %552 : vector<16x16xi1>
      %554 = arith.extui %553 : vector<16x16xi1> to vector<16x16xi32>
      %555 = arith.sitofp %554 : vector<16x16xi32> to vector<16x16xf32>
      %556 = arith.mulf %555, %260 : vector<16x16xf32>
      %557 = arith.addf %arg29, %556 : vector<16x16xf32>
      %558 = vector.broadcast %547 : vector<1x1xf32> to vector<16x1xf32>
      %559 = arith.cmpf oeq, %6, %558 : vector<16x1xf32>
      %560 = arith.extui %559 : vector<16x1xi1> to vector<16x1xi32>
      %561 = arith.sitofp %560 : vector<16x1xi32> to vector<16x1xf32>
      %cst_220 = arith.constant 1.000000e+00 : f32
      %562 = vector.broadcast %cst_220 : f32 to vector<16x1xf32>
      %563 = arith.subf %562, %561 : vector<16x1xf32>
      %564 = arith.mulf %arg27, %563 : vector<16x1xf32>
      %565 = vector.broadcast %550 : vector<1x1xf32> to vector<16x1xf32>
      %566 = arith.cmpf oeq, %6, %565 : vector<16x1xf32>
      %567 = arith.extui %566 : vector<16x1xi1> to vector<16x1xi32>
      %568 = arith.sitofp %567 : vector<16x1xi32> to vector<16x1xf32>
      %cst_221 = arith.constant 1.000000e+00 : f32
      %569 = vector.broadcast %cst_221 : f32 to vector<16x1xf32>
      %570 = arith.subf %569, %568 : vector<16x1xf32>
      %571 = arith.mulf %564, %570 : vector<16x1xf32>
      %572 = vector.broadcast %547 : vector<1x1xf32> to vector<1x16xf32>
      %573 = arith.cmpf oeq, %8, %572 : vector<1x16xf32>
      %574 = arith.extui %573 : vector<1x16xi1> to vector<1x16xi32>
      %575 = arith.sitofp %574 : vector<1x16xi32> to vector<1x16xf32>
      %cst_222 = arith.constant 1.000000e+00 : f32
      %576 = vector.broadcast %cst_222 : f32 to vector<1x16xf32>
      %577 = arith.subf %576, %575 : vector<1x16xf32>
      %578 = arith.mulf %arg28, %577 : vector<1x16xf32>
      %579 = vector.broadcast %550 : vector<1x1xf32> to vector<1x16xf32>
      %580 = arith.cmpf oeq, %8, %579 : vector<1x16xf32>
      %581 = arith.extui %580 : vector<1x16xi1> to vector<1x16xi32>
      %582 = arith.sitofp %581 : vector<1x16xi32> to vector<1x16xf32>
      %cst_223 = arith.constant 1.000000e+00 : f32
      %583 = vector.broadcast %cst_223 : f32 to vector<1x16xf32>
      %584 = arith.subf %583, %582 : vector<1x16xf32>
      %585 = arith.mulf %578, %584 : vector<1x16xf32>
      scf.yield %571, %585, %557 : vector<16x1xf32>, vector<1x16xf32>, vector<16x16xf32>
    }
    %cst_116 = arith.constant 0.000000e+00 : f32
    %264 = vector.broadcast %cst_116 : f32 to vector<16x16xf32>
    %265 = arith.cmpf ogt, %263#2, %264 : vector<16x16xf32>
    %266 = arith.extui %265 : vector<16x16xi1> to vector<16x16xi32>
    %267 = arith.sitofp %266 : vector<16x16xi32> to vector<16x16xf32>
    %cst_117 = arith.constant 1.000000e+00 : f32
    %268 = vector.broadcast %cst_117 : f32 to vector<16x16xf32>
    %269 = arith.subf %268, %4 : vector<16x16xf32>
    %270 = arith.mulf %267, %269 : vector<16x16xf32>
    %cst_118 = arith.constant dense<0xFF800000> : vector<16xf32>
    %271 = vector.multi_reduction <maximumf>, %267, %cst_118 [1] : vector<16x16xf32> to vector<16xf32>
    %272 = vector.shape_cast %271 : vector<16xf32> to vector<16x1xf32>
    %273 = arith.mulf %120, %263#0 : vector<16x1xf32>
    %274 = arith.addf %272, %273 : vector<16x1xf32>
    %275 = vector.broadcast %274 : vector<16x1xf32> to vector<16x16xf32>
    %276 = arith.mulf %4, %275 : vector<16x16xf32>
    %cst_119 = arith.constant dense<0.000000e+00> : vector<16xf32>
    %277 = vector.multi_reduction <add>, %276, %cst_119 [0] : vector<16x16xf32> to vector<16xf32>
    %278 = vector.shape_cast %277 : vector<16xf32> to vector<1x16xf32>
    %279 = vector.broadcast %274 : vector<16x1xf32> to vector<16x16xf32>
    %280 = arith.mulf %4, %279 : vector<16x16xf32>
    %281 = arith.addf %280, %270 : vector<16x16xf32>
    %cst_120 = arith.constant dense<0.000000e+00> : vector<16xf32>
    %282 = vector.multi_reduction <add>, %263#2, %cst_120 [1] : vector<16x16xf32> to vector<16xf32>
    %283 = vector.shape_cast %282 : vector<16xf32> to vector<16x1xf32>
    %284 = arith.addf %283, %273 : vector<16x1xf32>
    %cst_121 = arith.constant dense<0.000000e+00> : vector<16x32xf32>
    %285 = tpu.matmul %281, %227, %cst_121 {dimension_numbers = #tpu.dot_dimension_numbers<[1], [0], [0], [1], [0, 0, 1, 1], [], []>} : vector<16x16xf32>, vector<16x32xf32>, vector<16x32xf32> -> vector<16x32xf32>
    %286 = vector.broadcast %284 : vector<16x1xf32> to vector<16x32xf32>
    %287 = arith.mulf %285, %286 : vector<16x32xf32>
    %cst_122 = arith.constant dense<0.000000e+00> : vector<16x16xf32>
    %288 = tpu.matmul %281, %139, %cst_122 {dimension_numbers = #tpu.dot_dimension_numbers<[1], [0], [0], [1], [0, 0, 1, 1], [], []>} : vector<16x16xf32>, vector<16x16xf32>, vector<16x16xf32> -> vector<16x16xf32>
    %cst_123 = arith.constant dense<0.000000e+00> : vector<16x16xf32>
    %289 = tpu.matmul %288, %281, %cst_123 {dimension_numbers = #tpu.dot_dimension_numbers<[1], [1], [0], [0], [0, 0, 1, 0], [], []>} : vector<16x16xf32>, vector<16x16xf32>, vector<16x16xf32> -> vector<16x16xf32>
    %cst_124 = arith.constant 0.000000e+00 : f32
    %290 = vector.broadcast %cst_124 : f32 to vector<16x16xf32>
    %291 = arith.cmpf ogt, %289, %290 : vector<16x16xf32>
    %292 = arith.extui %291 : vector<16x16xi1> to vector<16x16xi32>
    %293 = arith.sitofp %292 : vector<16x16xi32> to vector<16x16xf32>
    %294 = vector.broadcast %278 : vector<1x16xf32> to vector<2x16xf32>
    %295 = arith.mulf %19, %294 : vector<2x16xf32>
    %cst_125 = arith.constant dense<0.000000e+00> : vector<2xf32>
    %296 = vector.multi_reduction <add>, %295, %cst_125 [1] : vector<2x16xf32> to vector<2xf32>
    %297 = vector.shape_cast %296 : vector<2xf32> to vector<2x1xf32>
    %cst_126 = arith.constant 0.000000e+00 : f32
    %298 = vector.broadcast %cst_126 : f32 to vector<2x1xf32>
    %299 = arith.cmpf ogt, %297, %298 : vector<2x1xf32>
    %cst_127 = arith.constant 1.000000e+00 : f32
    %300 = vector.broadcast %cst_127 : f32 to vector<2x1xf32>
    %301 = arith.maximumf %297, %300 : vector<2x1xf32>
    %cst_128 = arith.constant 1.000000e+00 : f32
    %302 = vector.broadcast %cst_128 : f32 to vector<2x1xf32>
    %303 = arith.divf %302, %301 : vector<2x1xf32>
    %cst_129 = arith.constant 0.000000e+00 : f32
    %304 = vector.broadcast %cst_129 : f32 to vector<2x1xf32>
    %305 = arith.select %299, %303, %304 : vector<2x1xi1>, vector<2x1xf32>
    %cst_130 = arith.constant dense<0.000000e+00> : vector<2x32xf32>
    %306 = tpu.matmul %295, %287, %cst_130 {dimension_numbers = #tpu.dot_dimension_numbers<[1], [0], [0], [1], [0, 0, 1, 1], [], []>} : vector<2x16xf32>, vector<16x32xf32>, vector<2x32xf32> -> vector<2x32xf32>
    %307 = vector.broadcast %305 : vector<2x1xf32> to vector<2x32xf32>
    %308 = arith.mulf %306, %307 : vector<2x32xf32>
    %309 = vector.extract_strided_slice %18 {offsets = [0, 0], sizes = [16, 1], strides = [1, 1]} : vector<16x2xf32> to vector<16x1xf32>
    %310 = arith.mulf %309, %274 : vector<16x1xf32>
    %cst_131 = arith.constant 0.000000e+00 : f32
    %311 = vector.broadcast %cst_131 : f32 to vector<16x1xf32>
    %312 = arith.cmpf ogt, %310, %311 : vector<16x1xf32>
    %cst_132 = arith.constant -1.000000e+30 : f32
    %313 = vector.shape_cast %312 : vector<16x1xi1> to vector<16x1xi1>
    %314 = vector.broadcast %313 : vector<16x1xi1> to vector<16x32xi1>
    %315 = vector.broadcast %cst_132 : f32 to vector<16x32xf32>
    %316 = arith.select %314, %287, %315 : vector<16x32xi1>, vector<16x32xf32>
    %cst_133 = arith.constant dense<0xFF800000> : vector<32xf32>
    %317 = vector.multi_reduction <maximumf>, %316, %cst_133 [0] : vector<16x32xf32> to vector<32xf32>
    %318 = vector.shape_cast %317 : vector<32xf32> to vector<1x32xf32>
    %319 = vector.extract_strided_slice %297 {offsets = [0, 0], sizes = [1, 1], strides = [1, 1]} : vector<2x1xf32> to vector<1x1xf32>
    %cst_134 = arith.constant 0.000000e+00 : f32
    %320 = vector.broadcast %cst_134 : f32 to vector<1x1xf32>
    %321 = arith.cmpf ogt, %319, %320 : vector<1x1xf32>
    %cst_135 = arith.constant 0.000000e+00 : f32
    %322 = vector.shape_cast %321 : vector<1x1xi1> to vector<1x1xi1>
    %323 = vector.broadcast %322 : vector<1x1xi1> to vector<1x32xi1>
    %324 = vector.broadcast %cst_135 : f32 to vector<1x32xf32>
    %325 = arith.select %323, %318, %324 : vector<1x32xi1>, vector<1x32xf32>
    %326 = vector.extract_strided_slice %18 {offsets = [0, 1], sizes = [16, 1], strides = [1, 1]} : vector<16x2xf32> to vector<16x1xf32>
    %327 = arith.mulf %326, %274 : vector<16x1xf32>
    %cst_136 = arith.constant 0.000000e+00 : f32
    %328 = vector.broadcast %cst_136 : f32 to vector<16x1xf32>
    %329 = arith.cmpf ogt, %327, %328 : vector<16x1xf32>
    %cst_137 = arith.constant -1.000000e+30 : f32
    %330 = vector.shape_cast %329 : vector<16x1xi1> to vector<16x1xi1>
    %331 = vector.broadcast %330 : vector<16x1xi1> to vector<16x32xi1>
    %332 = vector.broadcast %cst_137 : f32 to vector<16x32xf32>
    %333 = arith.select %331, %287, %332 : vector<16x32xi1>, vector<16x32xf32>
    %cst_138 = arith.constant dense<0xFF800000> : vector<32xf32>
    %334 = vector.multi_reduction <maximumf>, %333, %cst_138 [0] : vector<16x32xf32> to vector<32xf32>
    %335 = vector.shape_cast %334 : vector<32xf32> to vector<1x32xf32>
    %336 = vector.extract_strided_slice %297 {offsets = [1, 0], sizes = [1, 1], strides = [1, 1]} : vector<2x1xf32> to vector<1x1xf32>
    %cst_139 = arith.constant 0.000000e+00 : f32
    %337 = vector.broadcast %cst_139 : f32 to vector<1x1xf32>
    %338 = arith.cmpf ogt, %336, %337 : vector<1x1xf32>
    %cst_140 = arith.constant 0.000000e+00 : f32
    %339 = vector.shape_cast %338 : vector<1x1xi1> to vector<1x1xi1>
    %340 = vector.broadcast %339 : vector<1x1xi1> to vector<1x32xi1>
    %341 = vector.broadcast %cst_140 : f32 to vector<1x32xf32>
    %342 = arith.select %340, %335, %341 : vector<1x32xi1>, vector<1x32xf32>
    %343 = tpu.concatenate %325, %342 in 0 : vector<1x32xf32>, vector<1x32xf32> -> vector<2x32xf32>
    %344 = tpu.concatenate %343, %308 in 1 : vector<2x32xf32>, vector<2x32xf32> -> vector<2x64xf32>
    %345 = arith.addf %191, %344 : vector<2x64xf32>
    %cst_141 = arith.constant 1.000000e+00 : f32
    %346 = vector.broadcast %cst_141 : f32 to vector<16x16xf32>
    %347 = arith.subf %346, %4 : vector<16x16xf32>
    %348 = arith.mulf %293, %347 : vector<16x16xf32>
    %349 = vector.broadcast %274 : vector<16x1xf32> to vector<16x16xf32>
    %350 = arith.mulf %4, %349 : vector<16x16xf32>
    %351 = arith.addf %348, %350 : vector<16x16xf32>
    %cst_142 = arith.constant dense<0.000000e+00> : vector<16xf32>
    %352 = vector.multi_reduction <add>, %351, %cst_142 [1] : vector<16x16xf32> to vector<16xf32>
    %353 = vector.shape_cast %352 : vector<16xf32> to vector<16x1xf32>
    %cst_143 = arith.constant dense<0.000000e+00> : vector<16xf32>
    %354 = vector.multi_reduction <add>, %351, %cst_143 [0] : vector<16x16xf32> to vector<16xf32>
    %355 = vector.shape_cast %354 : vector<16xf32> to vector<1x16xf32>
    %cst_144 = arith.constant 0.000000e+00 : f32
    %356 = vector.broadcast %cst_144 : f32 to vector<16x1xf32>
    %357 = arith.cmpf ogt, %274, %356 : vector<16x1xf32>
    %cst_145 = arith.constant 9.99999996E-13 : f32
    %358 = vector.broadcast %cst_145 : f32 to vector<16x1xf32>
    %359 = arith.maximumf %353, %358 : vector<16x1xf32>
    %360 = math.rsqrt %359 : vector<16x1xf32>
    %cst_146 = arith.constant 0.000000e+00 : f32
    %361 = vector.broadcast %cst_146 : f32 to vector<16x1xf32>
    %362 = arith.select %357, %360, %361 : vector<16x1xi1>, vector<16x1xf32>
    %cst_147 = arith.constant 0.000000e+00 : f32
    %363 = vector.broadcast %cst_147 : f32 to vector<1x16xf32>
    %364 = arith.cmpf ogt, %278, %363 : vector<1x16xf32>
    %cst_148 = arith.constant 9.99999996E-13 : f32
    %365 = vector.broadcast %cst_148 : f32 to vector<1x16xf32>
    %366 = arith.maximumf %355, %365 : vector<1x16xf32>
    %367 = math.rsqrt %366 : vector<1x16xf32>
    %cst_149 = arith.constant 0.000000e+00 : f32
    %368 = vector.broadcast %cst_149 : f32 to vector<1x16xf32>
    %369 = arith.select %364, %367, %368 : vector<1x16xi1>, vector<1x16xf32>
    %370 = vector.broadcast %362 : vector<16x1xf32> to vector<16x16xf32>
    %371 = arith.mulf %370, %351 : vector<16x16xf32>
    %372 = vector.broadcast %369 : vector<1x16xf32> to vector<16x16xf32>
    %373 = arith.mulf %371, %372 : vector<16x16xf32>
    %cst_150 = arith.constant dense<0.000000e+00> : vector<16x32xf32>
    %374 = tpu.matmul %287, %32, %cst_150 {dimension_numbers = #tpu.dot_dimension_numbers<[1], [0], [0], [1], [0, 0, 1, 1], [], []>} : vector<16x32xf32>, vector<32x32xf32>, vector<16x32xf32> -> vector<16x32xf32>
    %cst_151 = arith.constant dense<0.000000e+00> : vector<16x32xf32>
    %375 = tpu.matmul %373, %374, %cst_151 {dimension_numbers = #tpu.dot_dimension_numbers<[1], [0], [0], [1], [0, 0, 1, 1], [], []>} : vector<16x16xf32>, vector<16x32xf32>, vector<16x32xf32> -> vector<16x32xf32>
    %376 = vector.broadcast %33 : vector<1x32xf32> to vector<16x32xf32>
    %377 = arith.addf %375, %376 : vector<16x32xf32>
    %cst_152 = arith.constant 0.000000e+00 : f32
    %378 = vector.broadcast %cst_152 : f32 to vector<16x32xf32>
    %379 = arith.maximumf %377, %378 : vector<16x32xf32>
    %380 = vector.broadcast %274 : vector<16x1xf32> to vector<16x32xf32>
    %381 = arith.mulf %379, %380 : vector<16x32xf32>
    %cst_153 = arith.constant dense<0.000000e+00> : vector<16x1xf32>
    %382 = tpu.matmul %381, %34, %cst_153 {dimension_numbers = #tpu.dot_dimension_numbers<[1], [0], [0], [1], [0, 0, 1, 1], [], []>} : vector<16x32xf32>, vector<32x1xf32>, vector<16x1xf32> -> vector<16x1xf32>
    %cst_154 = arith.constant dense<0.000000e+00> : vector<16x1xf32>
    %383 = tpu.matmul %381, %35, %cst_154 {dimension_numbers = #tpu.dot_dimension_numbers<[1], [0], [0], [1], [0, 0, 1, 1], [], []>} : vector<16x32xf32>, vector<32x1xf32>, vector<16x1xf32> -> vector<16x1xf32>
    %384 = vector.broadcast %383 : vector<16x1xf32> to vector<16x16xf32>
    %385 = arith.mulf %4, %384 : vector<16x16xf32>
    %cst_155 = arith.constant dense<0.000000e+00> : vector<16xf32>
    %386 = vector.multi_reduction <add>, %385, %cst_155 [0] : vector<16x16xf32> to vector<16xf32>
    %387 = vector.shape_cast %386 : vector<16xf32> to vector<1x16xf32>
    %388 = vector.broadcast %382 : vector<16x1xf32> to vector<16x16xf32>
    %389 = vector.broadcast %387 : vector<1x16xf32> to vector<16x16xf32>
    %390 = arith.addf %388, %389 : vector<16x16xf32>
    %391 = vector.broadcast %36 : vector<1x1xf32> to vector<16x16xf32>
    %392 = arith.addf %390, %391 : vector<16x16xf32>
    %cst_156 = arith.constant 0.000000e+00 : f32
    %393 = vector.broadcast %cst_156 : f32 to vector<16x16xf32>
    %394 = arith.cmpf ogt, %293, %393 : vector<16x16xf32>
    %cst_157 = arith.constant -1.000000e+30 : f32
    %395 = vector.broadcast %cst_157 : f32 to vector<16x16xf32>
    %396 = arith.select %394, %392, %395 : vector<16x16xi1>, vector<16x16xf32>
    %cst_158 = arith.constant dense<0xFF800000> : vector<16xf32>
    %397 = vector.multi_reduction <maximumf>, %396, %cst_158 [0] : vector<16x16xf32> to vector<16xf32>
    %398 = vector.shape_cast %397 : vector<16xf32> to vector<1x16xf32>
    %cst_159 = arith.constant 0.000000e+00 : f32
    %399 = vector.broadcast %cst_159 : f32 to vector<16x16xf32>
    %400 = arith.cmpf ogt, %293, %399 : vector<16x16xf32>
    %401 = vector.broadcast %398 : vector<1x16xf32> to vector<16x16xf32>
    %402 = arith.subf %396, %401 : vector<16x16xf32>
    %403 = math.exp %402 : vector<16x16xf32>
    %cst_160 = arith.constant 0.000000e+00 : f32
    %404 = vector.broadcast %cst_160 : f32 to vector<16x16xf32>
    %405 = arith.select %400, %403, %404 : vector<16x16xi1>, vector<16x16xf32>
    %cst_161 = arith.constant dense<0.000000e+00> : vector<16xf32>
    %406 = vector.multi_reduction <add>, %405, %cst_161 [0] : vector<16x16xf32> to vector<16xf32>
    %407 = vector.shape_cast %406 : vector<16xf32> to vector<1x16xf32>
    %cst_162 = arith.constant 1.000000e-16 : f32
    %408 = vector.broadcast %cst_162 : f32 to vector<1x16xf32>
    %409 = arith.addf %407, %408 : vector<1x16xf32>
    %410 = tpu.reciprocal %409 {approx = true} : vector<1x16xf32> -> vector<1x16xf32>
    %411 = vector.broadcast %410 : vector<1x16xf32> to vector<16x16xf32>
    %412 = arith.mulf %405, %411 : vector<16x16xf32>
    %cst_163 = arith.constant 5.000000e-01 : f32
    %413 = vector.broadcast %cst_163 : f32 to vector<16x16xf32>
    %414 = arith.addf %412, %413 : vector<16x16xf32>
    %cst_164 = arith.constant 0.000000e+00 : f32
    %415 = vector.broadcast %cst_164 : f32 to vector<16x16xf32>
    %c0_i32_165 = arith.constant 0 : i32
    %c16_i32_166 = arith.constant 16 : i32
    %416 = arith.addi %c0_i32_165, %c16_i32_166 : i32
    %c1_i32_167 = arith.constant 1 : i32
    %417:3 = scf.for %arg26 = %c0_i32_165 to %416 step %c1_i32_167 iter_args(%arg27 = %274, %arg28 = %278, %arg29 = %415) -> (vector<16x1xf32>, vector<1x16xf32>, vector<16x16xf32>)  : i32 {
      %524 = vector.broadcast %arg27 : vector<16x1xf32> to vector<16x16xf32>
      %525 = arith.mulf %293, %524 : vector<16x16xf32>
      %526 = vector.broadcast %arg28 : vector<1x16xf32> to vector<16x16xf32>
      %527 = arith.mulf %525, %526 : vector<16x16xf32>
      %cst_211 = arith.constant 0.000000e+00 : f32
      %528 = vector.broadcast %cst_211 : f32 to vector<16x16xf32>
      %529 = arith.cmpf ogt, %527, %528 : vector<16x16xf32>
      %cst_212 = arith.constant -1.000000e+30 : f32
      %530 = vector.broadcast %cst_212 : f32 to vector<16x16xf32>
      %531 = arith.select %529, %414, %530 : vector<16x16xi1>, vector<16x16xf32>
      %cst_213 = arith.constant dense<0xFF800000> : vector<16xf32>
      %532 = vector.multi_reduction <maximumf>, %531, %cst_213 [1] : vector<16x16xf32> to vector<16xf32>
      %533 = vector.shape_cast %532 : vector<16xf32> to vector<16x1xf32>
      %cst_214 = arith.constant dense<0xFF800000> : vector<1xf32>
      %534 = vector.multi_reduction <maximumf>, %533, %cst_214 [0] : vector<16x1xf32> to vector<1xf32>
      %535 = vector.shape_cast %534 : vector<1xf32> to vector<1x1xf32>
      %536 = vector.broadcast %535 : vector<1x1xf32> to vector<16x16xf32>
      %537 = arith.cmpf oge, %531, %536 : vector<16x16xf32>
      %538 = arith.andi %529, %537 : vector<16x16xi1>
      %cst_215 = arith.constant 1.000000e+09 : f32
      %539 = vector.broadcast %cst_215 : f32 to vector<16x16xf32>
      %540 = arith.select %538, %15, %539 : vector<16x16xi1>, vector<16x16xf32>
      %cst_216 = arith.constant dense<0x7F800000> : vector<16xf32>
      %541 = vector.multi_reduction <minimumf>, %540, %cst_216 [1] : vector<16x16xf32> to vector<16xf32>
      %542 = vector.shape_cast %541 : vector<16xf32> to vector<16x1xf32>
      %cst_217 = arith.constant dense<0x7F800000> : vector<1xf32>
      %543 = vector.multi_reduction <minimumf>, %542, %cst_217 [0] : vector<16x1xf32> to vector<1xf32>
      %544 = vector.shape_cast %543 : vector<1xf32> to vector<1x1xf32>
      %cst_218 = arith.constant 6.250000e-02 : f32
      %545 = vector.broadcast %cst_218 : f32 to vector<1x1xf32>
      %546 = arith.mulf %544, %545 : vector<1x1xf32>
      %547 = math.floor %546 : vector<1x1xf32>
      %cst_219 = arith.constant 1.600000e+01 : f32
      %548 = vector.broadcast %cst_219 : f32 to vector<1x1xf32>
      %549 = arith.mulf %547, %548 : vector<1x1xf32>
      %550 = arith.subf %544, %549 : vector<1x1xf32>
      %551 = vector.broadcast %544 : vector<1x1xf32> to vector<16x16xf32>
      %552 = arith.cmpf oeq, %15, %551 : vector<16x16xf32>
      %553 = arith.andi %538, %552 : vector<16x16xi1>
      %554 = arith.extui %553 : vector<16x16xi1> to vector<16x16xi32>
      %555 = arith.sitofp %554 : vector<16x16xi32> to vector<16x16xf32>
      %556 = arith.mulf %555, %414 : vector<16x16xf32>
      %557 = arith.addf %arg29, %556 : vector<16x16xf32>
      %558 = vector.broadcast %547 : vector<1x1xf32> to vector<16x1xf32>
      %559 = arith.cmpf oeq, %6, %558 : vector<16x1xf32>
      %560 = arith.extui %559 : vector<16x1xi1> to vector<16x1xi32>
      %561 = arith.sitofp %560 : vector<16x1xi32> to vector<16x1xf32>
      %cst_220 = arith.constant 1.000000e+00 : f32
      %562 = vector.broadcast %cst_220 : f32 to vector<16x1xf32>
      %563 = arith.subf %562, %561 : vector<16x1xf32>
      %564 = arith.mulf %arg27, %563 : vector<16x1xf32>
      %565 = vector.broadcast %550 : vector<1x1xf32> to vector<16x1xf32>
      %566 = arith.cmpf oeq, %6, %565 : vector<16x1xf32>
      %567 = arith.extui %566 : vector<16x1xi1> to vector<16x1xi32>
      %568 = arith.sitofp %567 : vector<16x1xi32> to vector<16x1xf32>
      %cst_221 = arith.constant 1.000000e+00 : f32
      %569 = vector.broadcast %cst_221 : f32 to vector<16x1xf32>
      %570 = arith.subf %569, %568 : vector<16x1xf32>
      %571 = arith.mulf %564, %570 : vector<16x1xf32>
      %572 = vector.broadcast %547 : vector<1x1xf32> to vector<1x16xf32>
      %573 = arith.cmpf oeq, %8, %572 : vector<1x16xf32>
      %574 = arith.extui %573 : vector<1x16xi1> to vector<1x16xi32>
      %575 = arith.sitofp %574 : vector<1x16xi32> to vector<1x16xf32>
      %cst_222 = arith.constant 1.000000e+00 : f32
      %576 = vector.broadcast %cst_222 : f32 to vector<1x16xf32>
      %577 = arith.subf %576, %575 : vector<1x16xf32>
      %578 = arith.mulf %arg28, %577 : vector<1x16xf32>
      %579 = vector.broadcast %550 : vector<1x1xf32> to vector<1x16xf32>
      %580 = arith.cmpf oeq, %8, %579 : vector<1x16xf32>
      %581 = arith.extui %580 : vector<1x16xi1> to vector<1x16xi32>
      %582 = arith.sitofp %581 : vector<1x16xi32> to vector<1x16xf32>
      %cst_223 = arith.constant 1.000000e+00 : f32
      %583 = vector.broadcast %cst_223 : f32 to vector<1x16xf32>
      %584 = arith.subf %583, %582 : vector<1x16xf32>
      %585 = arith.mulf %578, %584 : vector<1x16xf32>
      scf.yield %571, %585, %557 : vector<16x1xf32>, vector<1x16xf32>, vector<16x16xf32>
    }
    %cst_168 = arith.constant 0.000000e+00 : f32
    %418 = vector.broadcast %cst_168 : f32 to vector<16x16xf32>
    %419 = arith.cmpf ogt, %417#2, %418 : vector<16x16xf32>
    %420 = arith.extui %419 : vector<16x16xi1> to vector<16x16xi32>
    %421 = arith.sitofp %420 : vector<16x16xi32> to vector<16x16xf32>
    %cst_169 = arith.constant 1.000000e+00 : f32
    %422 = vector.broadcast %cst_169 : f32 to vector<16x16xf32>
    %423 = arith.subf %422, %4 : vector<16x16xf32>
    %424 = arith.mulf %421, %423 : vector<16x16xf32>
    %cst_170 = arith.constant dense<0xFF800000> : vector<16xf32>
    %425 = vector.multi_reduction <maximumf>, %421, %cst_170 [1] : vector<16x16xf32> to vector<16xf32>
    %426 = vector.shape_cast %425 : vector<16xf32> to vector<16x1xf32>
    %427 = arith.mulf %274, %417#0 : vector<16x1xf32>
    %428 = arith.addf %426, %427 : vector<16x1xf32>
    %429 = vector.broadcast %428 : vector<16x1xf32> to vector<16x16xf32>
    %430 = arith.mulf %4, %429 : vector<16x16xf32>
    %cst_171 = arith.constant dense<0.000000e+00> : vector<16xf32>
    %431 = vector.multi_reduction <add>, %430, %cst_171 [0] : vector<16x16xf32> to vector<16xf32>
    %432 = vector.shape_cast %431 : vector<16xf32> to vector<1x16xf32>
    %433 = vector.broadcast %428 : vector<16x1xf32> to vector<16x16xf32>
    %434 = arith.mulf %4, %433 : vector<16x16xf32>
    %435 = arith.addf %434, %424 : vector<16x16xf32>
    %cst_172 = arith.constant dense<0.000000e+00> : vector<16xf32>
    %436 = vector.multi_reduction <add>, %417#2, %cst_172 [1] : vector<16x16xf32> to vector<16xf32>
    %437 = vector.shape_cast %436 : vector<16xf32> to vector<16x1xf32>
    %438 = arith.addf %437, %427 : vector<16x1xf32>
    %cst_173 = arith.constant dense<0.000000e+00> : vector<16x32xf32>
    %439 = tpu.matmul %435, %381, %cst_173 {dimension_numbers = #tpu.dot_dimension_numbers<[1], [0], [0], [1], [0, 0, 1, 1], [], []>} : vector<16x16xf32>, vector<16x32xf32>, vector<16x32xf32> -> vector<16x32xf32>
    %440 = vector.broadcast %438 : vector<16x1xf32> to vector<16x32xf32>
    %441 = arith.mulf %439, %440 : vector<16x32xf32>
    %442 = vector.broadcast %432 : vector<1x16xf32> to vector<2x16xf32>
    %443 = arith.mulf %19, %442 : vector<2x16xf32>
    %cst_174 = arith.constant dense<0.000000e+00> : vector<2xf32>
    %444 = vector.multi_reduction <add>, %443, %cst_174 [1] : vector<2x16xf32> to vector<2xf32>
    %445 = vector.shape_cast %444 : vector<2xf32> to vector<2x1xf32>
    %cst_175 = arith.constant 0.000000e+00 : f32
    %446 = vector.broadcast %cst_175 : f32 to vector<2x1xf32>
    %447 = arith.cmpf ogt, %445, %446 : vector<2x1xf32>
    %cst_176 = arith.constant 1.000000e+00 : f32
    %448 = vector.broadcast %cst_176 : f32 to vector<2x1xf32>
    %449 = arith.maximumf %445, %448 : vector<2x1xf32>
    %cst_177 = arith.constant 1.000000e+00 : f32
    %450 = vector.broadcast %cst_177 : f32 to vector<2x1xf32>
    %451 = arith.divf %450, %449 : vector<2x1xf32>
    %cst_178 = arith.constant 0.000000e+00 : f32
    %452 = vector.broadcast %cst_178 : f32 to vector<2x1xf32>
    %453 = arith.select %447, %451, %452 : vector<2x1xi1>, vector<2x1xf32>
    %cst_179 = arith.constant dense<0.000000e+00> : vector<2x32xf32>
    %454 = tpu.matmul %443, %441, %cst_179 {dimension_numbers = #tpu.dot_dimension_numbers<[1], [0], [0], [1], [0, 0, 1, 1], [], []>} : vector<2x16xf32>, vector<16x32xf32>, vector<2x32xf32> -> vector<2x32xf32>
    %455 = vector.broadcast %453 : vector<2x1xf32> to vector<2x32xf32>
    %456 = arith.mulf %454, %455 : vector<2x32xf32>
    %457 = vector.extract_strided_slice %18 {offsets = [0, 0], sizes = [16, 1], strides = [1, 1]} : vector<16x2xf32> to vector<16x1xf32>
    %458 = arith.mulf %457, %428 : vector<16x1xf32>
    %cst_180 = arith.constant 0.000000e+00 : f32
    %459 = vector.broadcast %cst_180 : f32 to vector<16x1xf32>
    %460 = arith.cmpf ogt, %458, %459 : vector<16x1xf32>
    %cst_181 = arith.constant -1.000000e+30 : f32
    %461 = vector.shape_cast %460 : vector<16x1xi1> to vector<16x1xi1>
    %462 = vector.broadcast %461 : vector<16x1xi1> to vector<16x32xi1>
    %463 = vector.broadcast %cst_181 : f32 to vector<16x32xf32>
    %464 = arith.select %462, %441, %463 : vector<16x32xi1>, vector<16x32xf32>
    %cst_182 = arith.constant dense<0xFF800000> : vector<32xf32>
    %465 = vector.multi_reduction <maximumf>, %464, %cst_182 [0] : vector<16x32xf32> to vector<32xf32>
    %466 = vector.shape_cast %465 : vector<32xf32> to vector<1x32xf32>
    %467 = vector.extract_strided_slice %445 {offsets = [0, 0], sizes = [1, 1], strides = [1, 1]} : vector<2x1xf32> to vector<1x1xf32>
    %cst_183 = arith.constant 0.000000e+00 : f32
    %468 = vector.broadcast %cst_183 : f32 to vector<1x1xf32>
    %469 = arith.cmpf ogt, %467, %468 : vector<1x1xf32>
    %cst_184 = arith.constant 0.000000e+00 : f32
    %470 = vector.shape_cast %469 : vector<1x1xi1> to vector<1x1xi1>
    %471 = vector.broadcast %470 : vector<1x1xi1> to vector<1x32xi1>
    %472 = vector.broadcast %cst_184 : f32 to vector<1x32xf32>
    %473 = arith.select %471, %466, %472 : vector<1x32xi1>, vector<1x32xf32>
    %474 = vector.extract_strided_slice %18 {offsets = [0, 1], sizes = [16, 1], strides = [1, 1]} : vector<16x2xf32> to vector<16x1xf32>
    %475 = arith.mulf %474, %428 : vector<16x1xf32>
    %cst_185 = arith.constant 0.000000e+00 : f32
    %476 = vector.broadcast %cst_185 : f32 to vector<16x1xf32>
    %477 = arith.cmpf ogt, %475, %476 : vector<16x1xf32>
    %cst_186 = arith.constant -1.000000e+30 : f32
    %478 = vector.shape_cast %477 : vector<16x1xi1> to vector<16x1xi1>
    %479 = vector.broadcast %478 : vector<16x1xi1> to vector<16x32xi1>
    %480 = vector.broadcast %cst_186 : f32 to vector<16x32xf32>
    %481 = arith.select %479, %441, %480 : vector<16x32xi1>, vector<16x32xf32>
    %cst_187 = arith.constant dense<0xFF800000> : vector<32xf32>
    %482 = vector.multi_reduction <maximumf>, %481, %cst_187 [0] : vector<16x32xf32> to vector<32xf32>
    %483 = vector.shape_cast %482 : vector<32xf32> to vector<1x32xf32>
    %484 = vector.extract_strided_slice %445 {offsets = [1, 0], sizes = [1, 1], strides = [1, 1]} : vector<2x1xf32> to vector<1x1xf32>
    %cst_188 = arith.constant 0.000000e+00 : f32
    %485 = vector.broadcast %cst_188 : f32 to vector<1x1xf32>
    %486 = arith.cmpf ogt, %484, %485 : vector<1x1xf32>
    %cst_189 = arith.constant 0.000000e+00 : f32
    %487 = vector.shape_cast %486 : vector<1x1xi1> to vector<1x1xi1>
    %488 = vector.broadcast %487 : vector<1x1xi1> to vector<1x32xi1>
    %489 = vector.broadcast %cst_189 : f32 to vector<1x32xf32>
    %490 = arith.select %488, %483, %489 : vector<1x32xi1>, vector<1x32xf32>
    %491 = tpu.concatenate %473, %490 in 0 : vector<1x32xf32>, vector<1x32xf32> -> vector<2x32xf32>
    %492 = tpu.concatenate %491, %456 in 1 : vector<2x32xf32>, vector<2x32xf32> -> vector<2x64xf32>
    %493 = arith.addf %345, %492 : vector<2x64xf32>
    %c0_190 = arith.constant 0 : index
    %c0_191 = arith.constant 0 : index
    %494 = vector.load %arg19[%c0_190, %c0_191] : memref<64x32xf32, #tpu.memory_space<vmem>>, vector<64x32xf32>
    %cst_192 = arith.constant dense<0.000000e+00> : vector<2x32xf32>
    %495 = tpu.matmul %493, %494, %cst_192 {dimension_numbers = #tpu.dot_dimension_numbers<[1], [0], [0], [1], [0, 0, 1, 1], [], []>} : vector<2x64xf32>, vector<64x32xf32>, vector<2x32xf32> -> vector<2x32xf32>
    %c0_193 = arith.constant 0 : index
    %c0_194 = arith.constant 0 : index
    %496 = vector.load %arg20[%c0_193, %c0_194] : memref<1x32xf32, #tpu.memory_space<vmem>>, vector<1x32xf32>
    %497 = vector.broadcast %496 : vector<1x32xf32> to vector<2x32xf32>
    %498 = arith.addf %495, %497 : vector<2x32xf32>
    %cst_195 = arith.constant 0.000000e+00 : f32
    %499 = vector.broadcast %cst_195 : f32 to vector<2x32xf32>
    %500 = arith.maximumf %498, %499 : vector<2x32xf32>
    %c0_196 = arith.constant 0 : index
    %c0_197 = arith.constant 0 : index
    %501 = vector.load %arg21[%c0_196, %c0_197] : memref<32x16xf32, #tpu.memory_space<vmem>>, vector<32x16xf32>
    %cst_198 = arith.constant dense<0.000000e+00> : vector<2x16xf32>
    %502 = tpu.matmul %500, %501, %cst_198 {dimension_numbers = #tpu.dot_dimension_numbers<[1], [0], [0], [1], [0, 0, 1, 1], [], []>} : vector<2x32xf32>, vector<32x16xf32>, vector<2x16xf32> -> vector<2x16xf32>
    %c0_199 = arith.constant 0 : index
    %c0_200 = arith.constant 0 : index
    %503 = vector.load %arg22[%c0_199, %c0_200] : memref<1x16xf32, #tpu.memory_space<vmem>>, vector<1x16xf32>
    %504 = vector.broadcast %503 : vector<1x16xf32> to vector<2x16xf32>
    %505 = arith.addf %502, %504 : vector<2x16xf32>
    %cst_201 = arith.constant 0.000000e+00 : f32
    %506 = vector.broadcast %cst_201 : f32 to vector<2x16xf32>
    %507 = arith.maximumf %505, %506 : vector<2x16xf32>
    %c0_202 = arith.constant 0 : index
    %c0_203 = arith.constant 0 : index
    %508 = vector.load %arg23[%c0_202, %c0_203] : memref<16x4xf32, #tpu.memory_space<vmem>>, vector<16x4xf32>
    %cst_204 = arith.constant dense<0.000000e+00> : vector<2x4xf32>
    %509 = tpu.matmul %507, %508, %cst_204 {dimension_numbers = #tpu.dot_dimension_numbers<[1], [0], [0], [1], [0, 0, 1, 1], [], []>} : vector<2x16xf32>, vector<16x4xf32>, vector<2x4xf32> -> vector<2x4xf32>
    %c0_205 = arith.constant 0 : index
    %c0_206 = arith.constant 0 : index
    %510 = vector.load %arg24[%c0_205, %c0_206] : memref<1x4xf32, #tpu.memory_space<vmem>>, vector<1x4xf32>
    %511 = vector.broadcast %510 : vector<1x4xf32> to vector<2x4xf32>
    %512 = arith.addf %509, %511 : vector<2x4xf32>
    %cst_207 = arith.constant dense<0xFF800000> : vector<2xf32>
    %513 = vector.multi_reduction <maximumf>, %512, %cst_207 [1] : vector<2x4xf32> to vector<2xf32>
    %514 = vector.shape_cast %513 : vector<2xf32> to vector<2x1xf32>
    %515 = vector.broadcast %514 : vector<2x1xf32> to vector<2x4xf32>
    %516 = arith.subf %512, %515 : vector<2x4xf32>
    %517 = math.exp %516 : vector<2x4xf32>
    %cst_208 = arith.constant dense<0.000000e+00> : vector<2xf32>
    %518 = vector.multi_reduction <add>, %517, %cst_208 [1] : vector<2x4xf32> to vector<2xf32>
    %519 = vector.shape_cast %518 : vector<2xf32> to vector<2x1xf32>
    %520 = math.log %519 : vector<2x1xf32>
    %521 = vector.broadcast %520 : vector<2x1xf32> to vector<2x4xf32>
    %522 = arith.subf %516, %521 : vector<2x4xf32>
    %c0_209 = arith.constant 0 : index
    %c0_210 = arith.constant 0 : index
    %523 = vector.load %arg25[%c0_209, %c0_210] : memref<2x4xf32, #tpu.memory_space<vmem>>, vector<2x4xf32>
    tpu.vector_store %arg25[%c0_209, %c0_210], %522 {strides = array<i32>} : memref<2x4xf32, #tpu.memory_space<vmem>>, vector<2x4xf32>,
    return
  }
}

</mosaic_0001>

<llo_original>
// kernel: edgenet_forward.1
$region0: #{edgenet_forward.1}
  #allocation0 [shape = 'u32[]', space=smem, size = 0x4, offset = 0x4, fixed_abs, tag = 'smem constant byte address 0x4 - core index']
  #allocation1 [shape = 'u32[144,128]{1,0:T(1,128)}', space=vmem, size = 0x12000, scoped, tag = 'internal scratch']
  #allocation2 [shape = 'f32[1,1]{1,0:T(1,128)S(1)}', space=vmem, size = 0x200, scoped, tag = 'scoped memory for edgenet_forward.1']
  #allocation3 [shape = 'f32[1,1]{1,0:T(1,128)S(1)}', space=vmem, size = 0x200, scoped, tag = 'scoped memory for edgenet_forward.1']
  #allocation4 [shape = 'f32[1,1]{1,0:T(1,128)S(1)}', space=vmem, size = 0x200, scoped, tag = 'scoped memory for edgenet_forward.1']
  %s0 = inlined_call_operand.hbm [shape: f32[16,16], index: 0, kind: input, shape index: {}]
  %s1 = inlined_call_operand.vmem [shape: f32[16,16], index: 1, kind: input, shape index: {}]
  %s2 = inlined_call_operand.vmem [shape: f32[16,2], index: 2, kind: input, shape index: {}]
  %s3 = inlined_call_operand.vmem [shape: f32[2,16], index: 3, kind: input, shape index: {}]
  %s4 = inlined_call_operand.vmem [shape: f32[16,32], index: 4, kind: input, shape index: {}]
  %s5 = inlined_call_operand.vmem [shape: f32[1,32], index: 5, kind: input, shape index: {}, may-alias: {5,7,9,20}]
  %s6 = inlined_call_operand.vmem [shape: f32[32,32], index: 6, kind: input, shape index: {}]
  %s7 = inlined_call_operand.vmem [shape: f32[1,32], index: 7, kind: input, shape index: {}, may-alias: {5,7,9,20}]
  %s8 = inlined_call_operand.vmem [shape: f32[32,32], index: 8, kind: input, shape index: {}]
  %s9 = inlined_call_operand.vmem [shape: f32[1,32], index: 9, kind: input, shape index: {}, may-alias: {5,7,9,20}]
  %s10 = inlined_call_operand.vmem [shape: f32[32,1], index: 10, kind: input, shape index: {}]
  %s11 = inlined_call_operand.vmem [shape: f32[32,1], index: 11, kind: input, shape index: {}]
  %s12 = inlined_call_operand.<no memory space> [shape: f32[1,1], index: 12, kind: input, shape index: {}, may-alias: {12,15,18}]
  %s13 = inlined_call_operand.vmem [shape: f32[32,1], index: 13, kind: input, shape index: {}]
  %s14 = inlined_call_operand.vmem [shape: f32[32,1], index: 14, kind: input, shape index: {}]
  %s15 = inlined_call_operand.<no memory space> [shape: f32[1,1], index: 15, kind: input, shape index: {}, may-alias: {12,15,18}]
  %s16 = inlined_call_operand.hbm [shape: f32[32,1], index: 16, kind: input, shape index: {}]
  %s17 = inlined_call_operand.hbm [shape: f32[32,1], index: 17, kind: input, shape index: {}]
  %s18 = inlined_call_operand.<no memory space> [shape: f32[1,1], index: 18, kind: input, shape index: {}, may-alias: {12,15,18}]
  %s19 = inlined_call_operand.vmem [shape: f32[64,32], index: 19, kind: input, shape index: {}]
  %s20 = inlined_call_operand.vmem [shape: f32[1,32], index: 20, kind: input, shape index: {}, may-alias: {5,7,9,20}]
  %s21 = inlined_call_operand.vmem [shape: f32[32,16], index: 21, kind: input, shape index: {}]
  %s22 = inlined_call_operand.vmem [shape: f32[1,16], index: 22, kind: input, shape index: {}]
  %s23 = inlined_call_operand.vmem [shape: f32[16,4], index: 23, kind: input, shape index: {}]
  %s24 = inlined_call_operand.vmem [shape: f32[1,4], index: 24, kind: input, shape index: {}]
  %s25 = inlined_call_operand.hbm [shape: f32[2,4], index: 25, kind: output, shape index: {}]
  %s26 = sld [smem:[#allocation0]]
  $region143: #{edgenet_forward.1} parent=0
    _
  %s28 = ssub.s32 1, %s26
  %s29 = scalar_select 0, %s28, %s26
  %v30 = vstv %s12
  %31 = vst [vmem:[#allocation2] sm:$0x1] %v30
  %v32 = vstv %s15
  %33 = vst [vmem:[#allocation3] sm:$0x1] %v32
  %v34 = vstv %s18
  %35 = vst [vmem:[#allocation4] sm:$0x1] %v34
  $region1: #{edgenet_forward.1} parent=0
    #allocation5 [shape = 'u8[8192]{0}', space=vmem, size = 0x2000, scoped, tag = 'input window, operand 0, single buffered']
    #allocation6 [shape = 's32[1]{0}', space=sflag, size = 0x4, scoped, tag = 'scoped memory for edgenet_forward.1']
    #allocation7 [shape = 's32[1]{0}', space=sflag, size = 0x4, scoped, tag = 'scoped memory for edgenet_forward.1']
    #allocation8 [shape = 'u8[16384]{0}', space=vmem, size = 0x4000, scoped, tag = 'input window, operand 16, single buffered']
    #allocation9 [shape = 's32[1]{0}', space=sflag, size = 0x4, scoped, tag = 'scoped memory for edgenet_forward.1']
    #allocation10 [shape = 'u8[16384]{0}', space=vmem, size = 0x4000, scoped, tag = 'input window, operand 17, single buffered']
    #allocation11 [shape = 'u8[1024]{0}', space=vmem, size = 0x400, scoped, tag = 'output window, operand 0, single buffered']
    %36 = vsyncpa [#allocation6], 0
    %37 = vsyncpa [#allocation9], 0
    %38 = vsyncpa [#allocation7], 0
    // Predicated region
    $region2: #{edgenet_forward.1} parent=1 // pred_check
      _
    $region3: #{edgenet_forward.1} parent=1 // pred_check_branch
      %40 = sbr.rel (0) target = $region5
    $region4: #{edgenet_forward.1} parent=1 // pred_region
      %s42 = ssub.s32 256, 256
      %43 = vsyncadd [#allocation6], %s42
      %s44 = sshll.u32 [#allocation5], 4
      %s45 = int_to_ptr.vmem [resolvable:$true] %s44
      %50 = dma.hbm_to_vmem [thread:$0]  %s0, 256, %s45, [#allocation6], 128, 128, 8
    $region5: #{edgenet_forward.1} parent=1 // pred_fallthru
      _
    // Predicated region
    $region6: #{edgenet_forward.1} parent=1 // pred_check
      _
    $region7: #{edgenet_forward.1} parent=1 // pred_check_branch
      %52 = sbr.rel (0) target = $region9
    $region8: #{edgenet_forward.1} parent=1 // pred_region
      _
    $region9: #{edgenet_forward.1} parent=1 // pred_fallthru
      _
    // Predicated region
    $region10: #{edgenet_forward.1} parent=1 // pred_check
      _
    $region11: #{edgenet_forward.1} parent=1 // pred_check_branch
      %54 = sbr.rel (0) target = $region13
    $region12: #{edgenet_forward.1} parent=1 // pred_region
      _
    $region13: #{edgenet_forward.1} parent=1 // pred_fallthru
      _
    // Predicated region
    $region14: #{edgenet_forward.1} parent=1 // pred_check
      _
    $region15: #{edgenet_forward.1} parent=1 // pred_check_branch
      %56 = sbr.rel (0) target = $region17
    $region16: #{edgenet_forward.1} parent=1 // pred_region
      _
    $region17: #{edgenet_forward.1} parent=1 // pred_fallthru
      _
    // Predicated region
    $region18: #{edgenet_forward.1} parent=1 // pred_check
      _
    $region19: #{edgenet_forward.1} parent=1 // pred_check_branch
      %58 = sbr.rel (0) target = $region21
    $region20: #{edgenet_forward.1} parent=1 // pred_region
      _
    $region21: #{edgenet_forward.1} parent=1 // pred_fallthru
      _
    // Predicated region
    $region22: #{edgenet_forward.1} parent=1 // pred_check
      _
    $region23: #{edgenet_forward.1} parent=1 // pred_check_branch
      %60 = sbr.rel (0) target = $region25
    $region24: #{edgenet_forward.1} parent=1 // pred_region
      _
    $region25: #{edgenet_forward.1} parent=1 // pred_fallthru
      _
    // Predicated region
    $region26: #{edgenet_forward.1} parent=1 // pred_check
      _
    $region27: #{edgenet_forward.1} parent=1 // pred_check_branch
      %62 = sbr.rel (0) target = $region29
    $region28: #{edgenet_forward.1} parent=1 // pred_region
      _
    $region29: #{edgenet_forward.1} parent=1 // pred_fallthru
      _
    // Predicated region
    $region30: #{edgenet_forward.1} parent=1 // pred_check
      _
    $region31: #{edgenet_forward.1} parent=1 // pred_check_branch
      %64 = sbr.rel (0) target = $region33
    $region32: #{edgenet_forward.1} parent=1 // pred_region
      _
    $region33: #{edgenet_forward.1} parent=1 // pred_fallthru
      _
    // Predicated region
    $region34: #{edgenet_forward.1} parent=1 // pred_check
      _
    $region35: #{edgenet_forward.1} parent=1 // pred_check_branch
      %66 = sbr.rel (0) target = $region37
    $region36: #{edgenet_forward.1} parent=1 // pred_region
      _
    $region37: #{edgenet_forward.1} parent=1 // pred_fallthru
      _
    // Predicated region
    $region38: #{edgenet_forward.1} parent=1 // pred_check
      _
    $region39: #{edgenet_forward.1} parent=1 // pred_check_branch
      %68 = sbr.rel (0) target = $region41
    $region40: #{edgenet_forward.1} parent=1 // pred_region
      _
    $region41: #{edgenet_forward.1} parent=1 // pred_fallthru
      _
    // Predicated region
    $region42: #{edgenet_forward.1} parent=1 // pred_check
      _
    $region43: #{edgenet_forward.1} parent=1 // pred_check_branch
      %70 = sbr.rel (0) target = $region45
    $region44: #{edgenet_forward.1} parent=1 // pred_region
      _
    $region45: #{edgenet_forward.1} parent=1 // pred_fallthru
      _
    // Predicated region
    $region46: #{edgenet_forward.1} parent=1 // pred_check
      _
    $region47: #{edgenet_forward.1} parent=1 // pred_check_branch
      %72 = sbr.rel (0) target = $region49
    $region48: #{edgenet_forward.1} parent=1 // pred_region
      _
    $region49: #{edgenet_forward.1} parent=1 // pred_fallthru
      _
    // Predicated region
    $region50: #{edgenet_forward.1} parent=1 // pred_check
      _
    $region51: #{edgenet_forward.1} parent=1 // pred_check_branch
      %74 = sbr.rel (0) target = $region53
    $region52: #{edgenet_forward.1} parent=1 // pred_region
      _
    $region53: #{edgenet_forward.1} parent=1 // pred_fallthru
      _
    // Predicated region
    $region54: #{edgenet_forward.1} parent=1 // pred_check
      _
    $region55: #{edgenet_forward.1} parent=1 // pred_check_branch
      %76 = sbr.rel (0) target = $region57
    $region56: #{edgenet_forward.1} parent=1 // pred_region
      _
    $region57: #{edgenet_forward.1} parent=1 // pred_fallthru
      _
    // Predicated region
    $region58: #{edgenet_forward.1} parent=1 // pred_check
      _
    $region59: #{edgenet_forward.1} parent=1 // pred_check_branch
      %78 = sbr.rel (0) target = $region61
    $region60: #{edgenet_forward.1} parent=1 // pred_region
      _
    $region61: #{edgenet_forward.1} parent=1 // pred_fallthru
      _
    // Predicated region
    $region62: #{edgenet_forward.1} parent=1 // pred_check
      _
    $region63: #{edgenet_forward.1} parent=1 // pred_check_branch
      %80 = sbr.rel (0) target = $region65
    $region64: #{edgenet_forward.1} parent=1 // pred_region
      _
    $region65: #{edgenet_forward.1} parent=1 // pred_fallthru
      _
    // Predicated region
    $region66: #{edgenet_forward.1} parent=1 // pred_check
      _
    $region67: #{edgenet_forward.1} parent=1 // pred_check_branch
      %82 = sbr.rel (0) target = $region69
    $region68: #{edgenet_forward.1} parent=1 // pred_region
      %s84 = ssub.s32 512, 512
      %85 = vsyncadd [#allocation9], %s84
      %s86 = sshll.u32 [#allocation8], 4
      %s87 = int_to_ptr.vmem [resolvable:$true] %s86
      %92 = dma.hbm_to_vmem [thread:$0]  %s16, 512, %s87, [#allocation9], 128, 128, 8
    $region69: #{edgenet_forward.1} parent=1 // pred_fallthru
      _
    // Predicated region
    $region70: #{edgenet_forward.1} parent=1 // pred_check
      _
    $region71: #{edgenet_forward.1} parent=1 // pred_check_branch
      %94 = sbr.rel (0) target = $region73
    $region72: #{edgenet_forward.1} parent=1 // pred_region
      %s96 = ssub.s32 512, 512
      %97 = vsyncadd [#allocation9], %s96
      %s98 = sshll.u32 [#allocation10], 4
      %s99 = int_to_ptr.vmem [resolvable:$true] %s98
      %104 = dma.hbm_to_vmem [thread:$0]  %s17, 512, %s99, [#allocation9], 128, 128, 8
    $region73: #{edgenet_forward.1} parent=1 // pred_fallthru
      _
    // Predicated region
    $region74: #{edgenet_forward.1} parent=1 // pred_check
      _
    $region75: #{edgenet_forward.1} parent=1 // pred_check_branch
      %106 = sbr.rel (0) target = $region77
    $region76: #{edgenet_forward.1} parent=1 // pred_region
      _
    $region77: #{edgenet_forward.1} parent=1 // pred_fallthru
      _
    // Predicated region
    $region78: #{edgenet_forward.1} parent=1 // pred_check
      _
    $region79: #{edgenet_forward.1} parent=1 // pred_check_branch
      %108 = sbr.rel (0) target = $region81
    $region80: #{edgenet_forward.1} parent=1 // pred_region
      _
    $region81: #{edgenet_forward.1} parent=1 // pred_fallthru
      _
    // Predicated region
    $region82: #{edgenet_forward.1} parent=1 // pred_check
      _
    $region83: #{edgenet_forward.1} parent=1 // pred_check_branch
      %110 = sbr.rel (0) target = $region85
    $region84: #{edgenet_forward.1} parent=1 // pred_region
      _
    $region85: #{edgenet_forward.1} parent=1 // pred_fallthru
      _
    // Predicated region
    $region86: #{edgenet_forward.1} parent=1 // pred_check
      _
    $region87: #{edgenet_forward.1} parent=1 // pred_check_branch
      %112 = sbr.rel (0) target = $region89
    $region88: #{edgenet_forward.1} parent=1 // pred_region
      _
    $region89: #{edgenet_forward.1} parent=1 // pred_fallthru
      _
    // Predicated region
    $region90: #{edgenet_forward.1} parent=1 // pred_check
      _
    $region91: #{edgenet_forward.1} parent=1 // pred_check_branch
      %114 = sbr.rel (0) target = $region93
    $region92: #{edgenet_forward.1} parent=1 // pred_region
      _
    $region93: #{edgenet_forward.1} parent=1 // pred_fallthru
      _
    // Predicated region
    $region94: #{edgenet_forward.1} parent=1 // pred_check
      _
    $region95: #{edgenet_forward.1} parent=1 // pred_check_branch
      %116 = sbr.rel (0) target = $region97
    $region96: #{edgenet_forward.1} parent=1 // pred_region
      _
    $region97: #{edgenet_forward.1} parent=1 // pred_fallthru
      _
    // Predicated region
    $region98: #{edgenet_forward.1} parent=1 // pred_check
      _
    $region99: #{edgenet_forward.1} parent=1 // pred_check_branch
      %118 = sbr.rel (0) target = $region101
    $region100: #{edgenet_forward.1} parent=1 // pred_region
      _
    $region101: #{edgenet_forward.1} parent=1 // pred_fallthru
      _
    // Predicated region
    $region102: #{edgenet_forward.1} parent=1 // pred_check
      _
    $region103: #{edgenet_forward.1} parent=1 // pred_check_branch
      %120 = sbr.rel (0) target = $region105
    $region104: #{edgenet_forward.1} parent=1 // pred_region
      %121 = dma.done [#allocation6], 256
    $region105: #{edgenet_forward.1} parent=1 // pred_fallthru
      _
    // Predicated region
    $region106: #{edgenet_forward.1} parent=1 // pred_check
      _
    $region107: #{edgenet_forward.1} parent=1 // pred_check_branch
      %123 = sbr.rel (0) target = $region109
    $region108: #{edgenet_forward.1} parent=1 // pred_region
      %124 = dma.done [#allocation9], 512
    $region109: #{edgenet_forward.1} parent=1 // pred_fallthru
      _
    // Predicated region
    $region110: #{edgenet_forward.1} parent=1 // pred_check
      _
    $region111: #{edgenet_forward.1} parent=1 // pred_check_branch
      %126 = sbr.rel (0) target = $region113
    $region112: #{edgenet_forward.1} parent=1 // pred_region
      %127 = dma.done [#allocation9], 512
    $region113: #{edgenet_forward.1} parent=1 // pred_fallthru
      _
    %v128 = vlaneseq
    %v129 = vshrl.u32 %v128, 7
    %v130 = vadd.s32 %v129, 8
    %v131 = vlaneseq
    %v132 = vand.u32 %v131, 127
    %vm133 = vcmp.eq.s32.totalorder %v129, %v132
    %vm134 = vcmp.eq.s32.totalorder %v130, %v132
    %v135 = vsel %vm133, 1, 0
    %v136 = vsel %vm134, 1, 0
    %v137 = vcvt.s32.f32 %v135
    %v138 = vcvt.s32.f32 %v136
    %v139 = vcvt.s32.f32 %v129
    %v140 = vcvt.s32.f32 %v130
    %v141 = vcvt.s32.f32 %v132
    %v142 = vmul.f32 %v139, 16.0
    %v143 = vmul.f32 %v140, 16.0
    %v144 = vadd.f32 %v142, %v141
    %v145 = vadd.f32 %v143, %v141
    %v146 = vld [vmem:[#allocation5] sm:$0xff]
    %v147 = vld [vmem:[#allocation5 + $0x8] sm:$0xff]
    %v148 = vld [vmem:[%s1] sm:$0xff]
    %v149 = vld [vmem:[%s1 + $0x8] sm:$0xff]
    %v150 = vld [vmem:[%s2] sm:$0xff]
    %v151 = vld [vmem:[%s2 + $0x8] sm:$0xff]
    %v152 = vld [vmem:[%s3] sm:$0x3]
    %v153 = vld [vmem:[%s4] sm:$0xff]
    %v154 = vld [vmem:[%s4 + $0x8] sm:$0xff]
    %v155 = vld [vmem:[%s5] sm:$0x1]
    %v156 = vld [vmem:[%s10] sm:$0xff]
    %v157 = vld [vmem:[%s10 + $0x8] sm:$0xff]
    %v158 = vld [vmem:[%s10 + $0x10] sm:$0xff]
    %v159 = vld [vmem:[%s10 + $0x18] sm:$0xff]
    %v160 = vld [vmem:[%s11] sm:$0xff]
    %v161 = vld [vmem:[%s11 + $0x8] sm:$0xff]
    %v162 = vld [vmem:[%s11 + $0x10] sm:$0xff]
    %v163 = vld [vmem:[%s11 + $0x18] sm:$0xff]
    %v164 = vld [vmem:[#allocation2] sm:$0x1]
    %v165 = vld [vmem:[%s6] sm:$0xff]
    %v166 = vld [vmem:[%s6 + $0x8] sm:$0xff]
    %v167 = vld [vmem:[%s6 + $0x10] sm:$0xff]
    %v168 = vld [vmem:[%s6 + $0x18] sm:$0xff]
    %v169 = vld [vmem:[%s7] sm:$0x1]
    %v170 = vld [vmem:[%s13] sm:$0xff]
    %v171 = vld [vmem:[%s13 + $0x8] sm:$0xff]
    %v172 = vld [vmem:[%s13 + $0x10] sm:$0xff]
    %v173 = vld [vmem:[%s13 + $0x18] sm:$0xff]
    %v174 = vld [vmem:[%s14] sm:$0xff]
    %v175 = vld [vmem:[%s14 + $0x8] sm:$0xff]
    %v176 = vld [vmem:[%s14 + $0x10] sm:$0xff]
    %v177 = vld [vmem:[%s14 + $0x18] sm:$0xff]
    %v178 = vld [vmem:[#allocation3] sm:$0x1]
    %v179 = vld [vmem:[%s8] sm:$0xff]
    %v180 = vld [vmem:[%s8 + $0x8] sm:$0xff]
    %v181 = vld [vmem:[%s8 + $0x10] sm:$0xff]
    %v182 = vld [vmem:[%s8 + $0x18] sm:$0xff]
    %v183 = vld [vmem:[%s9] sm:$0x1]
    %v184 = vld [vmem:[#allocation8] sm:$0xff]
    %v185 = vld [vmem:[#allocation8 + $0x8] sm:$0xff]
    %v186 = vld [vmem:[#allocation8 + $0x10] sm:$0xff]
    %v187 = vld [vmem:[#allocation8 + $0x18] sm:$0xff]
    %v188 = vld [vmem:[#allocation10] sm:$0xff]
    %v189 = vld [vmem:[#allocation10 + $0x8] sm:$0xff]
    %v190 = vld [vmem:[#allocation10 + $0x10] sm:$0xff]
    %v191 = vld [vmem:[#allocation10 + $0x18] sm:$0xff]
    %v192 = vld [vmem:[#allocation4] sm:$0x1]
    %v193 = vsub.f32 1.0, %v137
    %v194 = vsub.f32 1.0, %v138
    %v195 = vmul.f32 %v148, %v193
    %v196 = vmul.f32 %v149, %v194
    %v197 = vadd.f32 %v195, %v137
    %v198 = vadd.f32 %v196, %v138
    %vm199 = vcmask 130048
    %v200 = vsel %vm199, %v197, 0.0
    %201 = vadd.xlane.f32.xlu0 %v200
    %v202 = vpop.xlane.xlu0 %201
    %v203 = vsel %vm199, %v198, 0.0
    %204 = vadd.xlane.f32.xlu0 %v203
    %v205 = vpop.xlane.xlu0 %204
    %v206 = vadd.f32 %v200, %v203
    %v207 = vrot.slane %v206, 4
    %v208 = vadd.f32 %v206, %v207
    %v209 = vrot.slane %v208, 2
    %v210 = vadd.f32 %v208, %v209
    %v211 = vrot.slane %v210, 1
    %v212 = vadd.f32 %v210, %v211
    %vm213 = vcmp.gt.f32.partialorder 1.0, 0.0
    %v214 = vmax.f32 %v202, 1e-12
    %v215 = vmax.f32 %v205, 1e-12
    %v216 = vrsqrt.pop %v214
    %v217 = vrsqrt.pop %v215
    %v218 = vsel %vm213, %v216, 0.0
    %v219 = vsel %vm213, %v217, 0.0
    %v220 = vmax.f32 %v212, 1e-12
    %v221 = vrsqrt.pop %v220
    %v222 = vsel %vm213, %v221, 0.0
    %v223 = vmul.f32 %v218, %v197
    %v224 = vmul.f32 %v219, %v198
    %v225 = vmul.f32 %v223, %v222
    %v226 = vmul.f32 %v224, %v222
    %v228 = vsel %vm199, %v146, 0
    %v231 = vsel %vm199, %v147, 0
    %233 = vmatprep.subr.mxu0 0.0
    %234 = vmatpush1.msra.mxu0 %v153
    %235 = vmatprep.subr.mxu0 0.0
    %236 = vmatpush1.msra.mxu0 %v154
    %237 = vmatprep.subr.mxu0 0.0
    %238 = vmatpush1.msra.mxu0 0.0
    %239 = vmatprep.subr.mxu0 0.0
    %240 = vmatpush1.msra.mxu0 0.0
    %241 = vmatprep.subr.mxu0 0.0
    %242 = vmatpush1.msra.mxu0 0.0
    %243 = vmatprep.subr.mxu0 0.0
    %244 = vmatpush1.msra.mxu0 0.0
    %245 = vmatprep.subr.mxu0 0.0
    %246 = vmatpush1.msra.mxu0 0.0
    %247 = vmatprep.subr.mxu0 0.0
    %248 = vmatpush1.msra.mxu0 0.0
    %249 = vmatprep.subr.mxu0 0.0
    %250 = vmatpush1.msra.mxu0 0.0
    %251 = vmatprep.subr.mxu0 0.0
    %252 = vmatpush1.msra.mxu0 0.0
    %253 = vmatprep.subr.mxu0 0.0
    %254 = vmatpush1.msra.mxu0 0.0
    %255 = vmatprep.subr.mxu0 0.0
    %256 = vmatpush1.msra.mxu0 0.0
    %257 = vmatprep.subr.mxu0 0.0
    %258 = vmatpush1.msra.mxu0 0.0
    %259 = vmatprep.subr.mxu0 0.0
    %260 = vmatpush1.msra.mxu0 0.0
    %261 = vmatprep.subr.mxu0 0.0
    %262 = vmatpush1.msra.mxu0 0.0
    %263 = vmatprep.subr.mxu0 0.0
    %264 = vmatpush1.msra.mxu0 0.0
    %265 = vmatprep.subr.mxu0 0.0
    %266 = vmatpush1.msra.mxu0 0.0
    %267 = vmatprep.subr.mxu0 0.0
    %268 = vmatpush1.msra.mxu0 0.0
    %269 = vmatprep.subr.mxu0 0.0
    %270 = vmatpush1.msra.mxu0 0.0
    %271 = vmatprep.subr.mxu0 0.0
    %272 = vmatpush1.msra.mxu0 0.0
    %273 = vmatprep.subr.mxu0 0.0
    %274 = vmatpush1.msra.mxu0 0.0
    %275 = vmatprep.subr.mxu0 0.0
    %276 = vmatpush1.msra.mxu0 0.0
    %277 = vmatprep.subr.mxu0 0.0
    %278 = vmatpush1.msra.mxu0 0.0
    %279 = vmatprep.subr.mxu0 0.0
    %280 = vmatpush1.msra.mxu0 0.0
    %281 = vmatprep.subr.mxu0 0.0
    %282 = vmatpush1.msra.mxu0 0.0
    %283 = vmatprep.subr.mxu0 0.0
    %284 = vmatpush1.msra.mxu0 0.0
    %285 = vmatprep.subr.mxu0 0.0
    %286 = vmatpush1.msra.mxu0 0.0
    %287 = vmatprep.subr.mxu0 0.0
    %288 = vmatpush1.msra.mxu0 0.0
    %289 = vmatprep.subr.mxu0 0.0
    %290 = vmatpush1.msra.mxu0 0.0
    %291 = vmatprep.subr.mxu0 0.0
    %292 = vmatpush1.msra.mxu0 0.0
    %293 = vmatprep.subr.mxu0 0.0
    %294 = vmatpush1.msra.mxu0 0.0
    %295 = vmatprep.subr.mxu0 0.0
    %296 = vmatpush1.msra.mxu0 0.0
    %297 = vmatprep.mubr.f32.mxu0 0.0
    %298 = vmatmul.mubr.f32.gmra.mrb[0].mxu0 %v228
    %v299 = vpop.f32.mrb[0].mxu0
    %v300 = vadd.f32 0.0, %v299
    %v301 = vpop.f32.mrb[0].mxu0
    %302 = vmatprep.mubr.f32.mxu0 0.0
    %303 = vmatmul.mubr.f32.gmra.mrb[0].mxu0 %v231
    %v304 = vpop.f32.mrb[0].mxu0
    %v305 = vadd.f32 0.0, %v304
    %v306 = vpop.f32.mrb[0].mxu0
    %307 = vdwg.mxu0
    %v309 = vlaneseq
    %v310 = vshrl.u32 %v309, 7
    %v311 = vsub.s32 0, %v310
    %v312 = vrot.slane %v155, %v311
    %v315 = vsel %vm199, %v225, 0
    %v318 = vsel %vm199, %v226, 0
    %320 = vmatprep.subr.mxu0 0.0
    %321 = vmatpush1.msra.mxu0 %v300
    %322 = vmatprep.subr.mxu0 0.0
    %323 = vmatpush1.msra.mxu0 %v305
    %324 = vmatprep.subr.mxu0 0.0
    %325 = vmatpush1.msra.mxu0 0.0
    %326 = vmatprep.subr.mxu0 0.0
    %327 = vmatpush1.msra.mxu0 0.0
    %328 = vmatprep.subr.mxu0 0.0
    %329 = vmatpush1.msra.mxu0 0.0
    %330 = vmatprep.subr.mxu0 0.0
    %331 = vmatpush1.msra.mxu0 0.0
    %332 = vmatprep.subr.mxu0 0.0
    %333 = vmatpush1.msra.mxu0 0.0
    %334 = vmatprep.subr.mxu0 0.0
    %335 = vmatpush1.msra.mxu0 0.0
    %336 = vmatprep.subr.mxu0 0.0
    %337 = vmatpush1.msra.mxu0 0.0
    %338 = vmatprep.subr.mxu0 0.0
    %339 = vmatpush1.msra.mxu0 0.0
    %340 = vmatprep.subr.mxu0 0.0
    %341 = vmatpush1.msra.mxu0 0.0
    %342 = vmatprep.subr.mxu0 0.0
    %343 = vmatpush1.msra.mxu0 0.0
    %344 = vmatprep.subr.mxu0 0.0
    %345 = vmatpush1.msra.mxu0 0.0
    %346 = vmatprep.subr.mxu0 0.0
    %347 = vmatpush1.msra.mxu0 0.0
    %348 = vmatprep.subr.mxu0 0.0
    %349 = vmatpush1.msra.mxu0 0.0
    %350 = vmatprep.subr.mxu0 0.0
    %351 = vmatpush1.msra.mxu0 0.0
    %352 = vmatprep.subr.mxu0 0.0
    %353 = vmatpush1.msra.mxu0 0.0
    %354 = vmatprep.subr.mxu0 0.0
    %355 = vmatpush1.msra.mxu0 0.0
    %356 = vmatprep.subr.mxu0 0.0
    %357 = vmatpush1.msra.mxu0 0.0
    %358 = vmatprep.subr.mxu0 0.0
    %359 = vmatpush1.msra.mxu0 0.0
    %360 = vmatprep.subr.mxu0 0.0
    %361 = vmatpush1.msra.mxu0 0.0
    %362 = vmatprep.subr.mxu0 0.0
    %363 = vmatpush1.msra.mxu0 0.0
    %364 = vmatprep.subr.mxu0 0.0
    %365 = vmatpush1.msra.mxu0 0.0
    %366 = vmatprep.subr.mxu0 0.0
    %367 = vmatpush1.msra.mxu0 0.0
    %368 = vmatprep.subr.mxu0 0.0
    %369 = vmatpush1.msra.mxu0 0.0
    %370 = vmatprep.subr.mxu0 0.0
    %371 = vmatpush1.msra.mxu0 0.0
    %372 = vmatprep.subr.mxu0 0.0
    %373 = vmatpush1.msra.mxu0 0.0
    %374 = vmatprep.subr.mxu0 0.0
    %375 = vmatpush1.msra.mxu0 0.0
    %376 = vmatprep.subr.mxu0 0.0
    %377 = vmatpush1.msra.mxu0 0.0
    %378 = vmatprep.subr.mxu0 0.0
    %379 = vmatpush1.msra.mxu0 0.0
    %380 = vmatprep.subr.mxu0 0.0
    %381 = vmatpush1.msra.mxu0 0.0
    %382 = vmatprep.subr.mxu0 0.0
    %383 = vmatpush1.msra.mxu0 0.0
    %384 = vmatprep.mubr.f32.mxu0 0.0
    %385 = vmatmul.mubr.f32.gmra.mrb[0].mxu0 %v315
    %v386 = vpop.f32.mrb[0].mxu0
    %v387 = vadd.f32 %v312, %v386
    %v388 = vpop.f32.mrb[0].mxu0
    %389 = vmatprep.mubr.f32.mxu0 0.0
    %390 = vmatmul.mubr.f32.gmra.mrb[0].mxu0 %v318
    %v391 = vpop.f32.mrb[0].mxu0
    %v392 = vadd.f32 %v312, %v391
    %v393 = vpop.f32.mrb[0].mxu0
    %394 = vdwg.mxu0
    %v395 = vmax.f32 %v387, 0.0
    %v396 = vmax.f32 %v392, 0.0
    %vm397 = vcmask 261120
    %v399 = vsel %vm397, %v395, 0
    %v402 = vsel %vm397, %v396, 0
    %404 = vmatprep.subr.mxu0 0.0
    %405 = vmatpush1.msra.mxu0 %v156
    %406 = vmatprep.subr.mxu0 0.0
    %407 = vmatpush1.msra.mxu0 %v157
    %408 = vmatprep.subr.mxu0 0.0
    %409 = vmatpush1.msra.mxu0 %v158
    %410 = vmatprep.subr.mxu0 0.0
    %411 = vmatpush1.msra.mxu0 %v159
    %412 = vmatprep.subr.mxu0 0.0
    %413 = vmatpush1.msra.mxu0 0.0
    %414 = vmatprep.subr.mxu0 0.0
    %415 = vmatpush1.msra.mxu0 0.0
    %416 = vmatprep.subr.mxu0 0.0
    %417 = vmatpush1.msra.mxu0 0.0
    %418 = vmatprep.subr.mxu0 0.0
    %419 = vmatpush1.msra.mxu0 0.0
    %420 = vmatprep.subr.mxu0 0.0
    %421 = vmatpush1.msra.mxu0 0.0
    %422 = vmatprep.subr.mxu0 0.0
    %423 = vmatpush1.msra.mxu0 0.0
    %424 = vmatprep.subr.mxu0 0.0
    %425 = vmatpush1.msra.mxu0 0.0
    %426 = vmatprep.subr.mxu0 0.0
    %427 = vmatpush1.msra.mxu0 0.0
    %428 = vmatprep.subr.mxu0 0.0
    %429 = vmatpush1.msra.mxu0 0.0
    %430 = vmatprep.subr.mxu0 0.0
    %431 = vmatpush1.msra.mxu0 0.0
    %432 = vmatprep.subr.mxu0 0.0
    %433 = vmatpush1.msra.mxu0 0.0
    %434 = vmatprep.subr.mxu0 0.0
    %435 = vmatpush1.msra.mxu0 0.0
    %436 = vmatprep.subr.mxu0 0.0
    %437 = vmatpush1.msra.mxu0 0.0
    %438 = vmatprep.subr.mxu0 0.0
    %439 = vmatpush1.msra.mxu0 0.0
    %440 = vmatprep.subr.mxu0 0.0
    %441 = vmatpush1.msra.mxu0 0.0
    %442 = vmatprep.subr.mxu0 0.0
    %443 = vmatpush1.msra.mxu0 0.0
    %444 = vmatprep.subr.mxu0 0.0
    %445 = vmatpush1.msra.mxu0 0.0
    %446 = vmatprep.subr.mxu0 0.0
    %447 = vmatpush1.msra.mxu0 0.0
    %448 = vmatprep.subr.mxu0 0.0
    %449 = vmatpush1.msra.mxu0 0.0
    %450 = vmatprep.subr.mxu0 0.0
    %451 = vmatpush1.msra.mxu0 0.0
    %452 = vmatprep.subr.mxu0 0.0
    %453 = vmatpush1.msra.mxu0 0.0
    %454 = vmatprep.subr.mxu0 0.0
    %455 = vmatpush1.msra.mxu0 0.0
    %456 = vmatprep.subr.mxu0 0.0
    %457 = vmatpush1.msra.mxu0 0.0
    %458 = vmatprep.subr.mxu0 0.0
    %459 = vmatpush1.msra.mxu0 0.0
    %460 = vmatprep.subr.mxu0 0.0
    %461 = vmatpush1.msra.mxu0 0.0
    %462 = vmatprep.subr.mxu0 0.0
    %463 = vmatpush1.msra.mxu0 0.0
    %464 = vmatprep.subr.mxu0 0.0
    %465 = vmatpush1.msra.mxu0 0.0
    %466 = vmatprep.subr.mxu0 0.0
    %467 = vmatpush1.msra.mxu0 0.0
    %468 = vmatprep.mubr.f32.mxu0 0.0
    %469 = vmatmul.mubr.f32.gmra.mrb[0].mxu0 %v399
    %v470 = vpop.f32.mrb[0].mxu0
    %v471 = vadd.f32 0.0, %v470
    %v472 = vpop.f32.mrb[0].mxu0
    %473 = vmatprep.mubr.f32.mxu0 0.0
    %474 = vmatmul.mubr.f32.gmra.mrb[0].mxu0 %v402
    %v475 = vpop.f32.mrb[0].mxu0
    %v476 = vadd.f32 0.0, %v475
    %v477 = vpop.f32.mrb[0].mxu0
    %478 = vdwg.mxu0
    %479 = vmatprep.subr.mxu0 0.0
    %480 = vmatpush1.msra.mxu0 %v160
    %481 = vmatprep.subr.mxu0 0.0
    %482 = vmatpush1.msra.mxu0 %v161
    %483 = vmatprep.subr.mxu0 0.0
    %484 = vmatpush1.msra.mxu0 %v162
    %485 = vmatprep.subr.mxu0 0.0
    %486 = vmatpush1.msra.mxu0 %v163
    %487 = vmatprep.subr.mxu0 0.0
    %488 = vmatpush1.msra.mxu0 0.0
    %489 = vmatprep.subr.mxu0 0.0
    %490 = vmatpush1.msra.mxu0 0.0
    %491 = vmatprep.subr.mxu0 0.0
    %492 = vmatpush1.msra.mxu0 0.0
    %493 = vmatprep.subr.mxu0 0.0
    %494 = vmatpush1.msra.mxu0 0.0
    %495 = vmatprep.subr.mxu0 0.0
    %496 = vmatpush1.msra.mxu0 0.0
    %497 = vmatprep.subr.mxu0 0.0
    %498 = vmatpush1.msra.mxu0 0.0
    %499 = vmatprep.subr.mxu0 0.0
    %500 = vmatpush1.msra.mxu0 0.0
    %501 = vmatprep.subr.mxu0 0.0
    %502 = vmatpush1.msra.mxu0 0.0
    %503 = vmatprep.subr.mxu0 0.0
    %504 = vmatpush1.msra.mxu0 0.0
    %505 = vmatprep.subr.mxu0 0.0
    %506 = vmatpush1.msra.mxu0 0.0
    %507 = vmatprep.subr.mxu0 0.0
    %508 = vmatpush1.msra.mxu0 0.0
    %509 = vmatprep.subr.mxu0 0.0
    %510 = vmatpush1.msra.mxu0 0.0
    %511 = vmatprep.subr.mxu0 0.0
    %512 = vmatpush1.msra.mxu0 0.0
    %513 = vmatprep.subr.mxu0 0.0
    %514 = vmatpush1.msra.mxu0 0.0
    %515 = vmatprep.subr.mxu0 0.0
    %516 = vmatpush1.msra.mxu0 0.0
    %517 = vmatprep.subr.mxu0 0.0
    %518 = vmatpush1.msra.mxu0 0.0
    %519 = vmatprep.subr.mxu0 0.0
    %520 = vmatpush1.msra.mxu0 0.0
    %521 = vmatprep.subr.mxu0 0.0
    %522 = vmatpush1.msra.mxu0 0.0
    %523 = vmatprep.subr.mxu0 0.0
    %524 = vmatpush1.msra.mxu0 0.0
    %525 = vmatprep.subr.mxu0 0.0
    %526 = vmatpush1.msra.mxu0 0.0
    %527 = vmatprep.subr.mxu0 0.0
    %528 = vmatpush1.msra.mxu0 0.0
    %529 = vmatprep.subr.mxu0 0.0
    %530 = vmatpush1.msra.mxu0 0.0
    %531 = vmatprep.subr.mxu0 0.0
    %532 = vmatpush1.msra.mxu0 0.0
    %533 = vmatprep.subr.mxu0 0.0
    %534 = vmatpush1.msra.mxu0 0.0
    %535 = vmatprep.subr.mxu0 0.0
    %536 = vmatpush1.msra.mxu0 0.0
    %537 = vmatprep.subr.mxu0 0.0
    %538 = vmatpush1.msra.mxu0 0.0
    %539 = vmatprep.subr.mxu0 0.0
    %540 = vmatpush1.msra.mxu0 0.0
    %541 = vmatprep.subr.mxu0 0.0
    %542 = vmatpush1.msra.mxu0 0.0
    %543 = vmatprep.mubr.f32.mxu0 0.0
    %544 = vmatmul.mubr.f32.gmra.mrb[0].mxu0 %v399
    %v545 = vpop.f32.mrb[0].mxu0
    %v546 = vadd.f32 0.0, %v545
    %v547 = vpop.f32.mrb[0].mxu0
    %548 = vmatprep.mubr.f32.mxu0 0.0
    %549 = vmatmul.mubr.f32.gmra.mrb[0].mxu0 %v402
    %v550 = vpop.f32.mrb[0].mxu0
    %v551 = vadd.f32 0.0, %v550
    %v552 = vpop.f32.mrb[0].mxu0
    %553 = vdwg.mxu0
    %555 = vset.pattern.permute.xlu0 0
    %556 = vperm.xlu0 %555, %v546
    %v557 = vpop.permute.xlu0 %556
    %560 = vset.pattern.permute.xlu0 0
    %561 = vperm.xlu0 %560, %v551
    %v562 = vpop.permute.xlu0 %561
    %v564 = vmul.f32 %v137, %v557
    %v565 = vmul.f32 %v138, %v562
    %v566 = vsel %vm199, %v564, 0.0
    %v567 = vsel %vm199, %v565, 0.0
    %v568 = vadd.f32 %v566, %v567
    %v569 = vrot.slane %v568, 4
    %v570 = vadd.f32 %v568, %v569
    %v571 = vrot.slane %v570, 2
    %v572 = vadd.f32 %v570, %v571
    %v573 = vrot.slane %v572, 1
    %v574 = vadd.f32 %v572, %v573
    %576 = vset.pattern.permute.xlu0 0
    %577 = vperm.xlu0 %576, %v471
    %v578 = vpop.permute.xlu0 %577
    %581 = vset.pattern.permute.xlu0 0
    %582 = vperm.xlu0 %581, %v476
    %v583 = vpop.permute.xlu0 %582
    %v585 = vadd.f32 %v578, %v574
    %v586 = vadd.f32 %v583, %v574
    %v588 = vlaneseq
    %v589 = vshrl.u32 %v588, 7
    %v590 = vsub.s32 0, %v589
    %v591 = vrot.slane %v164, %v590
    %592 = vset.pattern.permute.xlu0 0
    %593 = vperm.xlu0 %592, %v591
    %v594 = vpop.permute.xlu0 %593
    %v596 = vadd.f32 %v585, %v594
    %v597 = vadd.f32 %v586, %v594
    %vm598 = vcmp.gt.f32.partialorder %v148, 0.0
    %vm599 = vcmp.gt.f32.partialorder %v149, 0.0
    %v600 = vsel %vm598, %v596, -1e+30
    %v601 = vsel %vm599, %v597, -1e+30
    %v602 = vsel %vm199, %v600, -inf
    %v603 = vsel %vm199, %v601, -inf
    %v604 = vmax.f32 %v602, %v603
    %v605 = vrot.slane %v604, 4
    %v606 = vmax.f32 %v604, %v605
    %v607 = vrot.slane %v606, 2
    %v608 = vmax.f32 %v606, %v607
    %v609 = vrot.slane %v608, 1
    %v610 = vmax.f32 %v608, %v609
    %v611 = vsub.f32 %v600, %v610
    %v612 = vsub.f32 %v601, %v610
    %v613 = vmul.f32 %v611, 1.442695
    %v614 = vpow.pop %v613
    %v615 = vmul.f32 %v612, 1.442695
    %v616 = vpow.pop %v615
    %v617 = vsel %vm598, %v614, 0.0
    %v618 = vsel %vm599, %v616, 0.0
    %v619 = vsel %vm199, %v617, 0.0
    %v620 = vsel %vm199, %v618, 0.0
    %v621 = vadd.f32 %v619, %v620
    %v622 = vrot.slane %v621, 4
    %v623 = vadd.f32 %v621, %v622
    %v624 = vrot.slane %v623, 2
    %v625 = vadd.f32 %v623, %v624
    %v626 = vrot.slane %v625, 1
    %v627 = vadd.f32 %v625, %v626
    %v628 = vadd.f32 %v627, 1e-16
    %v629 = vrcp.pop %v628
    %v630 = vmul.f32 %v617, %v629
    %v631 = vmul.f32 %v618, %v629
    %v632 = vadd.f32 %v630, 0.5
    %v633 = vadd.f32 %v631, 0.5
    loop: start=0, step=1, limit=16
    $region114: #{edgenet_forward.1} parent=1 // loop_pre_header
      _
    $region115: #{edgenet_forward.1} parent=1 // loop_header
      %s635 = sphi 0, %s639
      %p636 = scmp.ge.s32.totalorder %s635, 16
      %v640 = vphi 1.0, %v719
      %v641 = vphi 1.0, %v720
      %v642 = vphi 1.0, %v730
      %v643 = vphi 0.0, %v699
      %v644 = vphi 0.0, %v700
    $region116: #{edgenet_forward.1} parent=1 // loop_header_branch
      %638 = sbr.rel (%p636) target = $region120
    $region117: #{edgenet_forward.1} parent=1 // loop_body
      %v645 = vmul.f32 %v148, %v640
      %v646 = vmul.f32 %v149, %v641
      %v647 = vmul.f32 %v645, %v642
      %v648 = vmul.f32 %v646, %v642
      %vm649 = vcmp.gt.f32.partialorder %v647, 0.0
      %vm650 = vcmp.gt.f32.partialorder %v648, 0.0
      %v651 = vsel %vm649, %v632, -1e+30
      %v652 = vsel %vm650, %v633, -1e+30
      %v653 = vsel %vm199, %v651, -inf
      %654 = vmax.xlane.f32.xlu0 %v653
      %v655 = vpop.xlane.xlu0 %654
      %v656 = vsel %vm199, %v652, -inf
      %657 = vmax.xlane.f32.xlu0 %v656
      %v658 = vpop.xlane.xlu0 %657
      %v659 = vmax.f32 %v655, %v658
      %v660 = vrot.slane %v659, 4
      %v661 = vmax.f32 %v659, %v660
      %v662 = vrot.slane %v661, 2
      %v663 = vmax.f32 %v661, %v662
      %v664 = vrot.slane %v663, 1
      %v665 = vmax.f32 %v663, %v664
      %vm666 = vcmp.ge.f32.partialorder %v651, %v665
      %vm667 = vcmp.ge.f32.partialorder %v652, %v665
      %vm668 = vmand %vm649, %vm666
      %vm669 = vmand %vm650, %vm667
      %v670 = vsel %vm668, %v144, 1e+09
      %v671 = vsel %vm669, %v145, 1e+09
      %v672 = vsel %vm199, %v670, inf
      %673 = vmin.xlane.f32.xlu0 %v672
      %v674 = vpop.xlane.xlu0 %673
      %v675 = vsel %vm199, %v671, inf
      %676 = vmin.xlane.f32.xlu0 %v675
      %v677 = vpop.xlane.xlu0 %676
      %v678 = vmin.f32 %v674, %v677
      %v679 = vrot.slane %v678, 4
      %v680 = vmin.f32 %v678, %v679
      %v681 = vrot.slane %v680, 2
      %v682 = vmin.f32 %v680, %v681
      %v683 = vrot.slane %v682, 1
      %v684 = vmin.f32 %v682, %v683
      %v685 = vmul.f32 %v684, 0.0625
      %v686 = vfloor.f32 %v685
      %v687 = vmul.f32 %v686, 16.0
      %v688 = vsub.f32 %v684, %v687
      %vm689 = vcmp.eq.f32.partialorder %v144, %v684
      %vm690 = vcmp.eq.f32.partialorder %v145, %v684
      %vm691 = vmand %vm668, %vm689
      %vm692 = vmand %vm669, %vm690
      %v693 = vsel %vm691, 1, 0
      %v694 = vsel %vm692, 1, 0
      %v695 = vcvt.s32.f32 %v693
      %v696 = vcvt.s32.f32 %v694
      %v697 = vmul.f32 %v695, %v632
      %v698 = vmul.f32 %v696, %v633
      %v699 = vadd.f32 %v643, %v697
      %v700 = vadd.f32 %v644, %v698
      %vm701 = vcmp.eq.f32.partialorder %v139, %v686
      %vm702 = vcmp.eq.f32.partialorder %v140, %v686
      %v703 = vsel %vm701, 1, 0
      %v704 = vsel %vm702, 1, 0
      %v705 = vcvt.s32.f32 %v703
      %v706 = vcvt.s32.f32 %v704
      %v707 = vsub.f32 1.0, %v705
      %v708 = vsub.f32 1.0, %v706
      %v709 = vmul.f32 %v640, %v707
      %v710 = vmul.f32 %v641, %v708
      %vm711 = vcmp.eq.f32.partialorder %v139, %v688
      %vm712 = vcmp.eq.f32.partialorder %v140, %v688
      %v713 = vsel %vm711, 1, 0
      %v714 = vsel %vm712, 1, 0
      %v715 = vcvt.s32.f32 %v713
      %v716 = vcvt.s32.f32 %v714
      %v717 = vsub.f32 1.0, %v715
      %v718 = vsub.f32 1.0, %v716
      %v719 = vmul.f32 %v709, %v717
      %v720 = vmul.f32 %v710, %v718
      %vm721 = vcmp.eq.f32.partialorder %v141, %v686
      %v722 = vsel %vm721, 1, 0
      %v723 = vcvt.s32.f32 %v722
      %v724 = vsub.f32 1.0, %v723
      %v725 = vmul.f32 %v642, %v724
      %vm726 = vcmp.eq.f32.partialorder %v141, %v688
      %v727 = vsel %vm726, 1, 0
      %v728 = vcvt.s32.f32 %v727
      %v729 = vsub.f32 1.0, %v728
      %v730 = vmul.f32 %v725, %v729
    $region118: #{edgenet_forward.1} parent=1 // loop_footer
      %s639 = sadd.s32 1, %s635
    $region119: #{edgenet_forward.1} parent=1 // loop_footer_branch
      %634 = sbr.rel target = $region115
    $region120: #{edgenet_forward.1} parent=1 // loop_exit
      _
    %vm731 = vcmp.gt.f32.partialorder %v643, 0.0
    %vm732 = vcmp.gt.f32.partialorder %v644, 0.0
    %v733 = vsel %vm731, 1, 0
    %v734 = vsel %vm732, 1, 0
    %v735 = vcvt.s32.f32 %v733
    %v736 = vcvt.s32.f32 %v734
    %v737 = vmul.f32 %v735, %v193
    %v738 = vmul.f32 %v736, %v194
    %v739 = vsel %vm199, %v735, -inf
    %740 = vmax.xlane.f32.xlu0 %v739
    %v741 = vpop.xlane.xlu0 %740
    %v742 = vsel %vm199, %v736, -inf
    %743 = vmax.xlane.f32.xlu0 %v742
    %v744 = vpop.xlane.xlu0 %743
    %v745 = vadd.f32 %v741, %v640
    %v746 = vadd.f32 %v744, %v641
    %v747 = vmul.f32 %v137, %v745
    %v748 = vmul.f32 %v138, %v746
    %v749 = vsel %vm199, %v747, 0.0
    %v750 = vsel %vm199, %v748, 0.0
    %v751 = vadd.f32 %v749, %v750
    %v752 = vrot.slane %v751, 4
    %v753 = vadd.f32 %v751, %v752
    %v754 = vrot.slane %v753, 2
    %v755 = vadd.f32 %v753, %v754
    %v756 = vrot.slane %v755, 1
    %v757 = vadd.f32 %v755, %v756
    %v758 = vadd.f32 %v747, %v737
    %v759 = vadd.f32 %v748, %v738
    %v760 = vsel %vm199, %v643, 0.0
    %761 = vadd.xlane.f32.xlu0 %v760
    %v762 = vpop.xlane.xlu0 %761
    %v763 = vsel %vm199, %v644, 0.0
    %764 = vadd.xlane.f32.xlu0 %v763
    %v765 = vpop.xlane.xlu0 %764
    %v766 = vadd.f32 %v762, %v640
    %v767 = vadd.f32 %v765, %v641
    %v769 = vsel %vm199, %v758, 0
    %v772 = vsel %vm199, %v759, 0
    %774 = vmatprep.subr.mxu0 0.0
    %775 = vmatpush1.msra.mxu0 %v395
    %776 = vmatprep.subr.mxu0 0.0
    %777 = vmatpush1.msra.mxu0 %v396
    %778 = vmatprep.subr.mxu0 0.0
    %779 = vmatpush1.msra.mxu0 0.0
    %780 = vmatprep.subr.mxu0 0.0
    %781 = vmatpush1.msra.mxu0 0.0
    %782 = vmatprep.subr.mxu0 0.0
    %783 = vmatpush1.msra.mxu0 0.0
    %784 = vmatprep.subr.mxu0 0.0
    %785 = vmatpush1.msra.mxu0 0.0
    %786 = vmatprep.subr.mxu0 0.0
    %787 = vmatpush1.msra.mxu0 0.0
    %788 = vmatprep.subr.mxu0 0.0
    %789 = vmatpush1.msra.mxu0 0.0
    %790 = vmatprep.subr.mxu0 0.0
    %791 = vmatpush1.msra.mxu0 0.0
    %792 = vmatprep.subr.mxu0 0.0
    %793 = vmatpush1.msra.mxu0 0.0
    %794 = vmatprep.subr.mxu0 0.0
    %795 = vmatpush1.msra.mxu0 0.0
    %796 = vmatprep.subr.mxu0 0.0
    %797 = vmatpush1.msra.mxu0 0.0
    %798 = vmatprep.subr.mxu0 0.0
    %799 = vmatpush1.msra.mxu0 0.0
    %800 = vmatprep.subr.mxu0 0.0
    %801 = vmatpush1.msra.mxu0 0.0
    %802 = vmatprep.subr.mxu0 0.0
    %803 = vmatpush1.msra.mxu0 0.0
    %804 = vmatprep.subr.mxu0 0.0
    %805 = vmatpush1.msra.mxu0 0.0
    %806 = vmatprep.subr.mxu0 0.0
    %807 = vmatpush1.msra.mxu0 0.0
    %808 = vmatprep.subr.mxu0 0.0
    %809 = vmatpush1.msra.mxu0 0.0
    %810 = vmatprep.subr.mxu0 0.0
    %811 = vmatpush1.msra.mxu0 0.0
    %812 = vmatprep.subr.mxu0 0.0
    %813 = vmatpush1.msra.mxu0 0.0
    %814 = vmatprep.subr.mxu0 0.0
    %815 = vmatpush1.msra.mxu0 0.0
    %816 = vmatprep.subr.mxu0 0.0
    %817 = vmatpush1.msra.mxu0 0.0
    %818 = vmatprep.subr.mxu0 0.0
    %819 = vmatpush1.msra.mxu0 0.0
    %820 = vmatprep.subr.mxu0 0.0
    %821 = vmatpush1.msra.mxu0 0.0
    %822 = vmatprep.subr.mxu0 0.0
    %823 = vmatpush1.msra.mxu0 0.0
    %824 = vmatprep.subr.mxu0 0.0
    %825 = vmatpush1.msra.mxu0 0.0
    %826 = vmatprep.subr.mxu0 0.0
    %827 = vmatpush1.msra.mxu0 0.0
    %828 = vmatprep.subr.mxu0 0.0
    %829 = vmatpush1.msra.mxu0 0.0
    %830 = vmatprep.subr.mxu0 0.0
    %831 = vmatpush1.msra.mxu0 0.0
    %832 = vmatprep.subr.mxu0 0.0
    %833 = vmatpush1.msra.mxu0 0.0
    %834 = vmatprep.subr.mxu0 0.0
    %835 = vmatpush1.msra.mxu0 0.0
    %836 = vmatprep.subr.mxu0 0.0
    %837 = vmatpush1.msra.mxu0 0.0
    %838 = vmatprep.mubr.f32.mxu0 0.0
    %839 = vmatmul.mubr.f32.gmra.mrb[0].mxu0 %v769
    %v840 = vpop.f32.mrb[0].mxu0
    %v841 = vadd.f32 0.0, %v840
    %v842 = vpop.f32.mrb[0].mxu0
    %843 = vmatprep.mubr.f32.mxu0 0.0
    %844 = vmatmul.mubr.f32.gmra.mrb[0].mxu0 %v772
    %v845 = vpop.f32.mrb[0].mxu0
    %v846 = vadd.f32 0.0, %v845
    %v847 = vpop.f32.mrb[0].mxu0
    %848 = vdwg.mxu0
    %v849 = vmul.f32 %v841, %v766
    %v850 = vmul.f32 %v846, %v767
    %851 = vmatprep.subr.mxu0 0.0
    %852 = vmatpush1.msra.mxu0 %v148
    %853 = vmatprep.subr.mxu0 0.0
    %854 = vmatpush1.msra.mxu0 %v149
    %855 = vmatprep.subr.mxu0 0.0
    %856 = vmatpush1.msra.mxu0 0.0
    %857 = vmatprep.subr.mxu0 0.0
    %858 = vmatpush1.msra.mxu0 0.0
    %859 = vmatprep.subr.mxu0 0.0
    %860 = vmatpush1.msra.mxu0 0.0
    %861 = vmatprep.subr.mxu0 0.0
    %862 = vmatpush1.msra.mxu0 0.0
    %863 = vmatprep.subr.mxu0 0.0
    %864 = vmatpush1.msra.mxu0 0.0
    %865 = vmatprep.subr.mxu0 0.0
    %866 = vmatpush1.msra.mxu0 0.0
    %867 = vmatprep.subr.mxu0 0.0
    %868 = vmatpush1.msra.mxu0 0.0
    %869 = vmatprep.subr.mxu0 0.0
    %870 = vmatpush1.msra.mxu0 0.0
    %871 = vmatprep.subr.mxu0 0.0
    %872 = vmatpush1.msra.mxu0 0.0
    %873 = vmatprep.subr.mxu0 0.0
    %874 = vmatpush1.msra.mxu0 0.0
    %875 = vmatprep.subr.mxu0 0.0
    %876 = vmatpush1.msra.mxu0 0.0
    %877 = vmatprep.subr.mxu0 0.0
    %878 = vmatpush1.msra.mxu0 0.0
    %879 = vmatprep.subr.mxu0 0.0
    %880 = vmatpush1.msra.mxu0 0.0
    %881 = vmatprep.subr.mxu0 0.0
    %882 = vmatpush1.msra.mxu0 0.0
    %883 = vmatprep.subr.mxu0 0.0
    %884 = vmatpush1.msra.mxu0 0.0
    %885 = vmatprep.subr.mxu0 0.0
    %886 = vmatpush1.msra.mxu0 0.0
    %887 = vmatprep.subr.mxu0 0.0
    %888 = vmatpush1.msra.mxu0 0.0
    %889 = vmatprep.subr.mxu0 0.0
    %890 = vmatpush1.msra.mxu0 0.0
    %891 = vmatprep.subr.mxu0 0.0
    %892 = vmatpush1.msra.mxu0 0.0
    %893 = vmatprep.subr.mxu0 0.0
    %894 = vmatpush1.msra.mxu0 0.0
    %895 = vmatprep.subr.mxu0 0.0
    %896 = vmatpush1.msra.mxu0 0.0
    %897 = vmatprep.subr.mxu0 0.0
    %898 = vmatpush1.msra.mxu0 0.0
    %899 = vmatprep.subr.mxu0 0.0
    %900 = vmatpush1.msra.mxu0 0.0
    %901 = vmatprep.subr.mxu0 0.0
    %902 = vmatpush1.msra.mxu0 0.0
    %903 = vmatprep.subr.mxu0 0.0
    %904 = vmatpush1.msra.mxu0 0.0
    %905 = vmatprep.subr.mxu0 0.0
    %906 = vmatpush1.msra.mxu0 0.0
    %907 = vmatprep.subr.mxu0 0.0
    %908 = vmatpush1.msra.mxu0 0.0
    %909 = vmatprep.subr.mxu0 0.0
    %910 = vmatpush1.msra.mxu0 0.0
    %911 = vmatprep.subr.mxu0 0.0
    %912 = vmatpush1.msra.mxu0 0.0
    %913 = vmatprep.subr.mxu0 0.0
    %914 = vmatpush1.msra.mxu0 0.0
    %915 = vmatprep.mubr.f32.mxu0 0.0
    %916 = vmatmul.mubr.f32.gmra.mrb[0].mxu0 %v769
    %v917 = vpop.f32.mrb[0].mxu0
    %v918 = vadd.f32 0.0, %v917
    %v919 = vpop.f32.mrb[0].mxu0
    %920 = vmatprep.mubr.f32.mxu0 0.0
    %921 = vmatmul.mubr.f32.gmra.mrb[0].mxu0 %v772
    %v922 = vpop.f32.mrb[0].mxu0
    %v923 = vadd.f32 0.0, %v922
    %v924 = vpop.f32.mrb[0].mxu0
    %925 = vdwg.mxu0
    %v927 = vsel %vm199, %v918, 0
    %v930 = vsel %vm199, %v923, 0
    %932 = vmatprep.subr.mxu0 0.0
    %933 = vmatpush1.xpose.msra.mxu0 %v769
    %934 = vmatprep.subr.mxu0 0.0
    %935 = vmatpush1.xpose.msra.mxu0 %v772
    %936 = vmatprep.subr.mxu0 0.0
    %937 = vmatpush1.xpose.msra.mxu0 0.0
    %938 = vmatprep.subr.mxu0 0.0
    %939 = vmatpush1.xpose.msra.mxu0 0.0
    %940 = vmatprep.subr.mxu0 0.0
    %941 = vmatpush1.xpose.msra.mxu0 0.0
    %942 = vmatprep.subr.mxu0 0.0
    %943 = vmatpush1.xpose.msra.mxu0 0.0
    %944 = vmatprep.subr.mxu0 0.0
    %945 = vmatpush1.xpose.msra.mxu0 0.0
    %946 = vmatprep.subr.mxu0 0.0
    %947 = vmatpush1.xpose.msra.mxu0 0.0
    %948 = vmatprep.subr.mxu0 0.0
    %949 = vmatpush1.xpose.msra.mxu0 0.0
    %950 = vmatprep.subr.mxu0 0.0
    %951 = vmatpush1.xpose.msra.mxu0 0.0
    %952 = vmatprep.subr.mxu0 0.0
    %953 = vmatpush1.xpose.msra.mxu0 0.0
    %954 = vmatprep.subr.mxu0 0.0
    %955 = vmatpush1.xpose.msra.mxu0 0.0
    %956 = vmatprep.subr.mxu0 0.0
    %957 = vmatpush1.xpose.msra.mxu0 0.0
    %958 = vmatprep.subr.mxu0 0.0
    %959 = vmatpush1.xpose.msra.mxu0 0.0
    %960 = vmatprep.subr.mxu0 0.0
    %961 = vmatpush1.xpose.msra.mxu0 0.0
    %962 = vmatprep.subr.mxu0 0.0
    %963 = vmatpush1.xpose.msra.mxu0 0.0
    %964 = vmatprep.subr.mxu0 0.0
    %965 = vmatpush1.xpose.msra.mxu0 0.0
    %966 = vmatprep.subr.mxu0 0.0
    %967 = vmatpush1.xpose.msra.mxu0 0.0
    %968 = vmatprep.subr.mxu0 0.0
    %969 = vmatpush1.xpose.msra.mxu0 0.0
    %970 = vmatprep.subr.mxu0 0.0
    %971 = vmatpush1.xpose.msra.mxu0 0.0
    %972 = vmatprep.subr.mxu0 0.0
    %973 = vmatpush1.xpose.msra.mxu0 0.0
    %974 = vmatprep.subr.mxu0 0.0
    %975 = vmatpush1.xpose.msra.mxu0 0.0
    %976 = vmatprep.subr.mxu0 0.0
    %977 = vmatpush1.xpose.msra.mxu0 0.0
    %978 = vmatprep.subr.mxu0 0.0
    %979 = vmatpush1.xpose.msra.mxu0 0.0
    %980 = vmatprep.subr.mxu0 0.0
    %981 = vmatpush1.xpose.msra.mxu0 0.0
    %982 = vmatprep.subr.mxu0 0.0
    %983 = vmatpush1.xpose.msra.mxu0 0.0
    %984 = vmatprep.subr.mxu0 0.0
    %985 = vmatpush1.xpose.msra.mxu0 0.0
    %986 = vmatprep.subr.mxu0 0.0
    %987 = vmatpush1.xpose.msra.mxu0 0.0
    %988 = vmatprep.subr.mxu0 0.0
    %989 = vmatpush1.xpose.msra.mxu0 0.0
    %990 = vmatprep.subr.mxu0 0.0
    %991 = vmatpush1.xpose.msra.mxu0 0.0
    %992 = vmatprep.subr.mxu0 0.0
    %993 = vmatpush1.xpose.msra.mxu0 0.0
    %994 = vmatprep.subr.mxu0 0.0
    %995 = vmatpush1.xpose.msra.mxu0 0.0
    %996 = vmatprep.mubr.f32.mxu0 0.0
    %997 = vmatmul.mubr.f32.gmra.mrb[0].mxu0 %v927
    %v998 = vpop.f32.mrb[0].mxu0
    %v999 = vadd.f32 0.0, %v998
    %v1000 = vpop.f32.mrb[0].mxu0
    %1001 = vmatprep.mubr.f32.mxu0 0.0
    %1002 = vmatmul.mubr.f32.gmra.mrb[0].mxu0 %v930
    %v1003 = vpop.f32.mrb[0].mxu0
    %v1004 = vadd.f32 0.0, %v1003
    %v1005 = vpop.f32.mrb[0].mxu0
    %1006 = vdwg.mxu0
    %vm1007 = vcmp.gt.f32.partialorder %v999, 0.0
    %vm1008 = vcmp.gt.f32.partialorder %v1004, 0.0
    %v1009 = vsel %vm1007, 1, 0
    %v1010 = vsel %vm1008, 1, 0
    %v1011 = vcvt.s32.f32 %v1009
    %v1012 = vcvt.s32.f32 %v1010
    %v1013 = vmul.f32 %v152, %v757
    %vm1014 = vcmask 123904
    %v1015 = vsel %vm1014, %v1013, 0.0
    %1016 = vadd.xlane.f32.xlu0 %v1015
    %v1017 = vpop.xlane.xlu0 %1016
    %vm1018 = vcmp.gt.f32.partialorder %v1017, 0.0
    %v1019 = vmax.f32 %v1017, 1.0
    %v1020 = vrcp.pop %v1019
    %v1021 = vmul.f32 1.0, %v1020
    %v1022 = vsel %vm1018, %v1021, 0.0
    %v1024 = vsel %vm199, %v1013, 0
    %1026 = vmatprep.subr.mxu0 0.0
    %1027 = vmatpush1.msra.mxu0 %v849
    %1028 = vmatprep.subr.mxu0 0.0
    %1029 = vmatpush1.msra.mxu0 %v850
    %1030 = vmatprep.subr.mxu0 0.0
    %1031 = vmatpush1.msra.mxu0 0.0
    %1032 = vmatprep.subr.mxu0 0.0
    %1033 = vmatpush1.msra.mxu0 0.0
    %1034 = vmatprep.subr.mxu0 0.0
    %1035 = vmatpush1.msra.mxu0 0.0
    %1036 = vmatprep.subr.mxu0 0.0
    %1037 = vmatpush1.msra.mxu0 0.0
    %1038 = vmatprep.subr.mxu0 0.0
    %1039 = vmatpush1.msra.mxu0 0.0
    %1040 = vmatprep.subr.mxu0 0.0
    %1041 = vmatpush1.msra.mxu0 0.0
    %1042 = vmatprep.subr.mxu0 0.0
    %1043 = vmatpush1.msra.mxu0 0.0
    %1044 = vmatprep.subr.mxu0 0.0
    %1045 = vmatpush1.msra.mxu0 0.0
    %1046 = vmatprep.subr.mxu0 0.0
    %1047 = vmatpush1.msra.mxu0 0.0
    %1048 = vmatprep.subr.mxu0 0.0
    %1049 = vmatpush1.msra.mxu0 0.0
    %1050 = vmatprep.subr.mxu0 0.0
    %1051 = vmatpush1.msra.mxu0 0.0
    %1052 = vmatprep.subr.mxu0 0.0
    %1053 = vmatpush1.msra.mxu0 0.0
    %1054 = vmatprep.subr.mxu0 0.0
    %1055 = vmatpush1.msra.mxu0 0.0
    %1056 = vmatprep.subr.mxu0 0.0
    %1057 = vmatpush1.msra.mxu0 0.0
    %1058 = vmatprep.subr.mxu0 0.0
    %1059 = vmatpush1.msra.mxu0 0.0
    %1060 = vmatprep.subr.mxu0 0.0
    %1061 = vmatpush1.msra.mxu0 0.0
    %1062 = vmatprep.subr.mxu0 0.0
    %1063 = vmatpush1.msra.mxu0 0.0
    %1064 = vmatprep.subr.mxu0 0.0
    %1065 = vmatpush1.msra.mxu0 0.0
    %1066 = vmatprep.subr.mxu0 0.0
    %1067 = vmatpush1.msra.mxu0 0.0
    %1068 = vmatprep.subr.mxu0 0.0
    %1069 = vmatpush1.msra.mxu0 0.0
    %1070 = vmatprep.subr.mxu0 0.0
    %1071 = vmatpush1.msra.mxu0 0.0
    %1072 = vmatprep.subr.mxu0 0.0
    %1073 = vmatpush1.msra.mxu0 0.0
    %1074 = vmatprep.subr.mxu0 0.0
    %1075 = vmatpush1.msra.mxu0 0.0
    %1076 = vmatprep.subr.mxu0 0.0
    %1077 = vmatpush1.msra.mxu0 0.0
    %1078 = vmatprep.subr.mxu0 0.0
    %1079 = vmatpush1.msra.mxu0 0.0
    %1080 = vmatprep.subr.mxu0 0.0
    %1081 = vmatpush1.msra.mxu0 0.0
    %1082 = vmatprep.subr.mxu0 0.0
    %1083 = vmatpush1.msra.mxu0 0.0
    %1084 = vmatprep.subr.mxu0 0.0
    %1085 = vmatpush1.msra.mxu0 0.0
    %1086 = vmatprep.subr.mxu0 0.0
    %1087 = vmatpush1.msra.mxu0 0.0
    %1088 = vmatprep.subr.mxu0 0.0
    %1089 = vmatpush1.msra.mxu0 0.0
    %1090 = vmatprep.mubr.f32.mxu0 0.0
    %1091 = vmatmul.mubr.f32.gmra.mrb[0].mxu0 %v1024
    %v1092 = vpop.f32.mrb[0].mxu0
    %v1093 = vadd.f32 0.0, %v1092
    %v1094 = vpop.f32.mrb[0].mxu0
    %1095 = vdwg.mxu0
    %v1096 = vmul.f32 %v1093, %v1022
    %v1097 = vmul.f32 %v150, %v745
    %v1098 = vmul.f32 %v151, %v746
    %vm1099 = vcmp.gt.f32.partialorder %v1097, 0.0
    %vm1100 = vcmp.gt.f32.partialorder %v1098, 0.0
    %v1101 = vsel %vm1099, 1, 0
    %v1102 = vsel %vm1100, 1, 0
    %1103 = vset.pattern.permute.xlu0 0
    %1104 = vperm.xlu0 %1103, %v1101
    %v1105 = vpop.permute.xlu0 %1104
    %1106 = vset.pattern.permute.xlu0 0
    %1107 = vperm.xlu0 %1106, %v1102
    %v1108 = vpop.permute.xlu0 %1107
    %vm1109 = vcmp.eq.s32.totalorder %v1105, 1
    %vm1110 = vcmp.eq.s32.totalorder %v1108, 1
    %v1111 = vsel %vm1109, %v849, -1e+30
    %v1112 = vsel %vm1110, %v850, -1e+30
    %v1113 = vsel %vm397, %v1111, -inf
    %v1114 = vsel %vm397, %v1112, -inf
    %v1115 = vmax.f32 %v1113, %v1114
    %v1116 = vrot.slane %v1115, 4
    %v1117 = vmax.f32 %v1115, %v1116
    %v1118 = vrot.slane %v1117, 2
    %v1119 = vmax.f32 %v1117, %v1118
    %v1120 = vrot.slane %v1119, 1
    %v1121 = vmax.f32 %v1119, %v1120
    %v1122 = vsel %vm1018, 1, 0
    %vm1123 = vcmp.eq.s32.totalorder %v1122, 1
    %v1124 = vsel %vm1123, %v1121, 0.0
    %1125 = vset.pattern.permute.xlu0 1
    %1126 = vperm.xlu0 %1125, %v1101
    %v1127 = vpop.permute.xlu0 %1126
    %1128 = vset.pattern.permute.xlu0 1
    %1129 = vperm.xlu0 %1128, %v1102
    %v1130 = vpop.permute.xlu0 %1129
    %vm1131 = vcmp.eq.s32.totalorder %v1127, 1
    %vm1132 = vcmp.eq.s32.totalorder %v1130, 1
    %v1133 = vsel %vm1131, %v849, -1e+30
    %v1134 = vsel %vm1132, %v850, -1e+30
    %v1135 = vsel %vm397, %v1133, -inf
    %v1136 = vsel %vm397, %v1134, -inf
    %v1137 = vmax.f32 %v1135, %v1136
    %v1138 = vrot.slane %v1137, 4
    %v1139 = vmax.f32 %v1137, %v1138
    %v1140 = vrot.slane %v1139, 2
    %v1141 = vmax.f32 %v1139, %v1140
    %v1142 = vrot.slane %v1141, 1
    %v1143 = vmax.f32 %v1141, %v1142
    %v1144 = vsel %vm1123, %v1143, 0.0
    %vm1145 = vcmask 1040384
    %v1146 = vsel %vm1145, %v1124, %v1144
    %1148 = vrot.lane.b32.xlu0 %v1096, 32
    %v1149 = vpop.permute.xlu0 %1148
    %v1151 = vsel %vm397, %v1146, %v1149
    %v1152 = vadd.f32 %v1151, 0.0
    %v1153 = vmul.f32 %v1011, %v193
    %v1154 = vmul.f32 %v1012, %v194
    %v1155 = vadd.f32 %v1153, %v747
    %v1156 = vadd.f32 %v1154, %v748
    %v1157 = vsel %vm199, %v1155, 0.0
    %1158 = vadd.xlane.f32.xlu0 %v1157
    %v1159 = vpop.xlane.xlu0 %1158
    %v1160 = vsel %vm199, %v1156, 0.0
    %1161 = vadd.xlane.f32.xlu0 %v1160
    %v1162 = vpop.xlane.xlu0 %1161
    %v1163 = vadd.f32 %v1157, %v1160
    %v1164 = vrot.slane %v1163, 4
    %v1165 = vadd.f32 %v1163, %v1164
    %v1166 = vrot.slane %v1165, 2
    %v1167 = vadd.f32 %v1165, %v1166
    %v1168 = vrot.slane %v1167, 1
    %v1169 = vadd.f32 %v1167, %v1168
    %vm1170 = vcmp.gt.f32.partialorder %v745, 0.0
    %vm1171 = vcmp.gt.f32.partialorder %v746, 0.0
    %v1172 = vmax.f32 %v1159, 1e-12
    %v1173 = vmax.f32 %v1162, 1e-12
    %v1174 = vrsqrt.pop %v1172
    %v1175 = vrsqrt.pop %v1173
    %v1176 = vsel %vm1170, %v1174, 0.0
    %v1177 = vsel %vm1171, %v1175, 0.0
    %vm1178 = vcmp.gt.f32.partialorder %v757, 0.0
    %v1179 = vmax.f32 %v1169, 1e-12
    %v1180 = vrsqrt.pop %v1179
    %v1181 = vsel %vm1178, %v1180, 0.0
    %v1182 = vmul.f32 %v1176, %v1155
    %v1183 = vmul.f32 %v1177, %v1156
    %v1184 = vmul.f32 %v1182, %v1181
    %v1185 = vmul.f32 %v1183, %v1181
    %v1187 = vsel %vm397, %v849, 0
    %v1190 = vsel %vm397, %v850, 0
    %1192 = vmatprep.subr.mxu0 0.0
    %1193 = vmatpush1.msra.mxu0 %v165
    %1194 = vmatprep.subr.mxu0 0.0
    %1195 = vmatpush1.msra.mxu0 %v166
    %1196 = vmatprep.subr.mxu0 0.0
    %1197 = vmatpush1.msra.mxu0 %v167
    %1198 = vmatprep.subr.mxu0 0.0
    %1199 = vmatpush1.msra.mxu0 %v168
    %1200 = vmatprep.subr.mxu0 0.0
    %1201 = vmatpush1.msra.mxu0 0.0
    %1202 = vmatprep.subr.mxu0 0.0
    %1203 = vmatpush1.msra.mxu0 0.0
    %1204 = vmatprep.subr.mxu0 0.0
    %1205 = vmatpush1.msra.mxu0 0.0
    %1206 = vmatprep.subr.mxu0 0.0
    %1207 = vmatpush1.msra.mxu0 0.0
    %1208 = vmatprep.subr.mxu0 0.0
    %1209 = vmatpush1.msra.mxu0 0.0
    %1210 = vmatprep.subr.mxu0 0.0
    %1211 = vmatpush1.msra.mxu0 0.0
    %1212 = vmatprep.subr.mxu0 0.0
    %1213 = vmatpush1.msra.mxu0 0.0
    %1214 = vmatprep.subr.mxu0 0.0
    %1215 = vmatpush1.msra.mxu0 0.0
    %1216 = vmatprep.subr.mxu0 0.0
    %1217 = vmatpush1.msra.mxu0 0.0
    %1218 = vmatprep.subr.mxu0 0.0
    %1219 = vmatpush1.msra.mxu0 0.0
    %1220 = vmatprep.subr.mxu0 0.0
    %1221 = vmatpush1.msra.mxu0 0.0
    %1222 = vmatprep.subr.mxu0 0.0
    %1223 = vmatpush1.msra.mxu0 0.0
    %1224 = vmatprep.subr.mxu0 0.0
    %1225 = vmatpush1.msra.mxu0 0.0
    %1226 = vmatprep.subr.mxu0 0.0
    %1227 = vmatpush1.msra.mxu0 0.0
    %1228 = vmatprep.subr.mxu0 0.0
    %1229 = vmatpush1.msra.mxu0 0.0
    %1230 = vmatprep.subr.mxu0 0.0
    %1231 = vmatpush1.msra.mxu0 0.0
    %1232 = vmatprep.subr.mxu0 0.0
    %1233 = vmatpush1.msra.mxu0 0.0
    %1234 = vmatprep.subr.mxu0 0.0
    %1235 = vmatpush1.msra.mxu0 0.0
    %1236 = vmatprep.subr.mxu0 0.0
    %1237 = vmatpush1.msra.mxu0 0.0
    %1238 = vmatprep.subr.mxu0 0.0
    %1239 = vmatpush1.msra.mxu0 0.0
    %1240 = vmatprep.subr.mxu0 0.0
    %1241 = vmatpush1.msra.mxu0 0.0
    %1242 = vmatprep.subr.mxu0 0.0
    %1243 = vmatpush1.msra.mxu0 0.0
    %1244 = vmatprep.subr.mxu0 0.0
    %1245 = vmatpush1.msra.mxu0 0.0
    %1246 = vmatprep.subr.mxu0 0.0
    %1247 = vmatpush1.msra.mxu0 0.0
    %1248 = vmatprep.subr.mxu0 0.0
    %1249 = vmatpush1.msra.mxu0 0.0
    %1250 = vmatprep.subr.mxu0 0.0
    %1251 = vmatpush1.msra.mxu0 0.0
    %1252 = vmatprep.subr.mxu0 0.0
    %1253 = vmatpush1.msra.mxu0 0.0
    %1254 = vmatprep.subr.mxu0 0.0
    %1255 = vmatpush1.msra.mxu0 0.0
    %1256 = vmatprep.mubr.f32.mxu0 0.0
    %1257 = vmatmul.mubr.f32.gmra.mrb[0].mxu0 %v1187
    %v1258 = vpop.f32.mrb[0].mxu0
    %v1259 = vadd.f32 0.0, %v1258
    %v1260 = vpop.f32.mrb[0].mxu0
    %1261 = vmatprep.mubr.f32.mxu0 0.0
    %1262 = vmatmul.mubr.f32.gmra.mrb[0].mxu0 %v1190
    %v1263 = vpop.f32.mrb[0].mxu0
    %v1264 = vadd.f32 0.0, %v1263
    %v1265 = vpop.f32.mrb[0].mxu0
    %1266 = vdwg.mxu0
    %v1268 = vlaneseq
    %v1269 = vshrl.u32 %v1268, 7
    %v1270 = vsub.s32 0, %v1269
    %v1271 = vrot.slane %v169, %v1270
    %v1274 = vsel %vm199, %v1184, 0
    %v1277 = vsel %vm199, %v1185, 0
    %1279 = vmatprep.subr.mxu0 0.0
    %1280 = vmatpush1.msra.mxu0 %v1259
    %1281 = vmatprep.subr.mxu0 0.0
    %1282 = vmatpush1.msra.mxu0 %v1264
    %1283 = vmatprep.subr.mxu0 0.0
    %1284 = vmatpush1.msra.mxu0 0.0
    %1285 = vmatprep.subr.mxu0 0.0
    %1286 = vmatpush1.msra.mxu0 0.0
    %1287 = vmatprep.subr.mxu0 0.0
    %1288 = vmatpush1.msra.mxu0 0.0
    %1289 = vmatprep.subr.mxu0 0.0
    %1290 = vmatpush1.msra.mxu0 0.0
    %1291 = vmatprep.subr.mxu0 0.0
    %1292 = vmatpush1.msra.mxu0 0.0
    %1293 = vmatprep.subr.mxu0 0.0
    %1294 = vmatpush1.msra.mxu0 0.0
    %1295 = vmatprep.subr.mxu0 0.0
    %1296 = vmatpush1.msra.mxu0 0.0
    %1297 = vmatprep.subr.mxu0 0.0
    %1298 = vmatpush1.msra.mxu0 0.0
    %1299 = vmatprep.subr.mxu0 0.0
    %1300 = vmatpush1.msra.mxu0 0.0
    %1301 = vmatprep.subr.mxu0 0.0
    %1302 = vmatpush1.msra.mxu0 0.0
    %1303 = vmatprep.subr.mxu0 0.0
    %1304 = vmatpush1.msra.mxu0 0.0
    %1305 = vmatprep.subr.mxu0 0.0
    %1306 = vmatpush1.msra.mxu0 0.0
    %1307 = vmatprep.subr.mxu0 0.0
    %1308 = vmatpush1.msra.mxu0 0.0
    %1309 = vmatprep.subr.mxu0 0.0
    %1310 = vmatpush1.msra.mxu0 0.0
    %1311 = vmatprep.subr.mxu0 0.0
    %1312 = vmatpush1.msra.mxu0 0.0
    %1313 = vmatprep.subr.mxu0 0.0
    %1314 = vmatpush1.msra.mxu0 0.0
    %1315 = vmatprep.subr.mxu0 0.0
    %1316 = vmatpush1.msra.mxu0 0.0
    %1317 = vmatprep.subr.mxu0 0.0
    %1318 = vmatpush1.msra.mxu0 0.0
    %1319 = vmatprep.subr.mxu0 0.0
    %1320 = vmatpush1.msra.mxu0 0.0
    %1321 = vmatprep.subr.mxu0 0.0
    %1322 = vmatpush1.msra.mxu0 0.0
    %1323 = vmatprep.subr.mxu0 0.0
    %1324 = vmatpush1.msra.mxu0 0.0
    %1325 = vmatprep.subr.mxu0 0.0
    %1326 = vmatpush1.msra.mxu0 0.0
    %1327 = vmatprep.subr.mxu0 0.0
    %1328 = vmatpush1.msra.mxu0 0.0
    %1329 = vmatprep.subr.mxu0 0.0
    %1330 = vmatpush1.msra.mxu0 0.0
    %1331 = vmatprep.subr.mxu0 0.0
    %1332 = vmatpush1.msra.mxu0 0.0
    %1333 = vmatprep.subr.mxu0 0.0
    %1334 = vmatpush1.msra.mxu0 0.0
    %1335 = vmatprep.subr.mxu0 0.0
    %1336 = vmatpush1.msra.mxu0 0.0
    %1337 = vmatprep.subr.mxu0 0.0
    %1338 = vmatpush1.msra.mxu0 0.0
    %1339 = vmatprep.subr.mxu0 0.0
    %1340 = vmatpush1.msra.mxu0 0.0
    %1341 = vmatprep.subr.mxu0 0.0
    %1342 = vmatpush1.msra.mxu0 0.0
    %1343 = vmatprep.mubr.f32.mxu0 0.0
    %1344 = vmatmul.mubr.f32.gmra.mrb[0].mxu0 %v1274
    %v1345 = vpop.f32.mrb[0].mxu0
    %v1346 = vadd.f32 %v1271, %v1345
    %v1347 = vpop.f32.mrb[0].mxu0
    %1348 = vmatprep.mubr.f32.mxu0 0.0
    %1349 = vmatmul.mubr.f32.gmra.mrb[0].mxu0 %v1277
    %v1350 = vpop.f32.mrb[0].mxu0
    %v1351 = vadd.f32 %v1271, %v1350
    %v1352 = vpop.f32.mrb[0].mxu0
    %1353 = vdwg.mxu0
    %v1354 = vmax.f32 %v1346, 0.0
    %v1355 = vmax.f32 %v1351, 0.0
    %v1356 = vmul.f32 %v1354, %v745
    %v1357 = vmul.f32 %v1355, %v746
    %v1359 = vsel %vm397, %v1356, 0
    %v1362 = vsel %vm397, %v1357, 0
    %1364 = vmatprep.subr.mxu0 0.0
    %1365 = vmatpush1.msra.mxu0 %v170
    %1366 = vmatprep.subr.mxu0 0.0
    %1367 = vmatpush1.msra.mxu0 %v171
    %1368 = vmatprep.subr.mxu0 0.0
    %1369 = vmatpush1.msra.mxu0 %v172
    %1370 = vmatprep.subr.mxu0 0.0
    %1371 = vmatpush1.msra.mxu0 %v173
    %1372 = vmatprep.subr.mxu0 0.0
    %1373 = vmatpush1.msra.mxu0 0.0
    %1374 = vmatprep.subr.mxu0 0.0
    %1375 = vmatpush1.msra.mxu0 0.0
    %1376 = vmatprep.subr.mxu0 0.0
    %1377 = vmatpush1.msra.mxu0 0.0
    %1378 = vmatprep.subr.mxu0 0.0
    %1379 = vmatpush1.msra.mxu0 0.0
    %1380 = vmatprep.subr.mxu0 0.0
    %1381 = vmatpush1.msra.mxu0 0.0
    %1382 = vmatprep.subr.mxu0 0.0
    %1383 = vmatpush1.msra.mxu0 0.0
    %1384 = vmatprep.subr.mxu0 0.0
    %1385 = vmatpush1.msra.mxu0 0.0
    %1386 = vmatprep.subr.mxu0 0.0
    %1387 = vmatpush1.msra.mxu0 0.0
    %1388 = vmatprep.subr.mxu0 0.0
    %1389 = vmatpush1.msra.mxu0 0.0
    %1390 = vmatprep.subr.mxu0 0.0
    %1391 = vmatpush1.msra.mxu0 0.0
    %1392 = vmatprep.subr.mxu0 0.0
    %1393 = vmatpush1.msra.mxu0 0.0
    %1394 = vmatprep.subr.mxu0 0.0
    %1395 = vmatpush1.msra.mxu0 0.0
    %1396 = vmatprep.subr.mxu0 0.0
    %1397 = vmatpush1.msra.mxu0 0.0
    %1398 = vmatprep.subr.mxu0 0.0
    %1399 = vmatpush1.msra.mxu0 0.0
    %1400 = vmatprep.subr.mxu0 0.0
    %1401 = vmatpush1.msra.mxu0 0.0
    %1402 = vmatprep.subr.mxu0 0.0
    %1403 = vmatpush1.msra.mxu0 0.0
    %1404 = vmatprep.subr.mxu0 0.0
    %1405 = vmatpush1.msra.mxu0 0.0
    %1406 = vmatprep.subr.mxu0 0.0
    %1407 = vmatpush1.msra.mxu0 0.0
    %1408 = vmatprep.subr.mxu0 0.0
    %1409 = vmatpush1.msra.mxu0 0.0
    %1410 = vmatprep.subr.mxu0 0.0
    %1411 = vmatpush1.msra.mxu0 0.0
    %1412 = vmatprep.subr.mxu0 0.0
    %1413 = vmatpush1.msra.mxu0 0.0
    %1414 = vmatprep.subr.mxu0 0.0
    %1415 = vmatpush1.msra.mxu0 0.0
    %1416 = vmatprep.subr.mxu0 0.0
    %1417 = vmatpush1.msra.mxu0 0.0
    %1418 = vmatprep.subr.mxu0 0.0
    %1419 = vmatpush1.msra.mxu0 0.0
    %1420 = vmatprep.subr.mxu0 0.0
    %1421 = vmatpush1.msra.mxu0 0.0
    %1422 = vmatprep.subr.mxu0 0.0
    %1423 = vmatpush1.msra.mxu0 0.0
    %1424 = vmatprep.subr.mxu0 0.0
    %1425 = vmatpush1.msra.mxu0 0.0
    %1426 = vmatprep.subr.mxu0 0.0
    %1427 = vmatpush1.msra.mxu0 0.0
    %1428 = vmatprep.mubr.f32.mxu0 0.0
    %1429 = vmatmul.mubr.f32.gmra.mrb[0].mxu0 %v1359
    %v1430 = vpop.f32.mrb[0].mxu0
    %v1431 = vadd.f32 0.0, %v1430
    %v1432 = vpop.f32.mrb[0].mxu0
    %1433 = vmatprep.mubr.f32.mxu0 0.0
    %1434 = vmatmul.mubr.f32.gmra.mrb[0].mxu0 %v1362
    %v1435 = vpop.f32.mrb[0].mxu0
    %v1436 = vadd.f32 0.0, %v1435
    %v1437 = vpop.f32.mrb[0].mxu0
    %1438 = vdwg.mxu0
    %1439 = vmatprep.subr.mxu0 0.0
    %1440 = vmatpush1.msra.mxu0 %v174
    %1441 = vmatprep.subr.mxu0 0.0
    %1442 = vmatpush1.msra.mxu0 %v175
    %1443 = vmatprep.subr.mxu0 0.0
    %1444 = vmatpush1.msra.mxu0 %v176
    %1445 = vmatprep.subr.mxu0 0.0
    %1446 = vmatpush1.msra.mxu0 %v177
    %1447 = vmatprep.subr.mxu0 0.0
    %1448 = vmatpush1.msra.mxu0 0.0
    %1449 = vmatprep.subr.mxu0 0.0
    %1450 = vmatpush1.msra.mxu0 0.0
    %1451 = vmatprep.subr.mxu0 0.0
    %1452 = vmatpush1.msra.mxu0 0.0
    %1453 = vmatprep.subr.mxu0 0.0
    %1454 = vmatpush1.msra.mxu0 0.0
    %1455 = vmatprep.subr.mxu0 0.0
    %1456 = vmatpush1.msra.mxu0 0.0
    %1457 = vmatprep.subr.mxu0 0.0
    %1458 = vmatpush1.msra.mxu0 0.0
    %1459 = vmatprep.subr.mxu0 0.0
    %1460 = vmatpush1.msra.mxu0 0.0
    %1461 = vmatprep.subr.mxu0 0.0
    %1462 = vmatpush1.msra.mxu0 0.0
    %1463 = vmatprep.subr.mxu0 0.0
    %1464 = vmatpush1.msra.mxu0 0.0
    %1465 = vmatprep.subr.mxu0 0.0
    %1466 = vmatpush1.msra.mxu0 0.0
    %1467 = vmatprep.subr.mxu0 0.0
    %1468 = vmatpush1.msra.mxu0 0.0
    %1469 = vmatprep.subr.mxu0 0.0
    %1470 = vmatpush1.msra.mxu0 0.0
    %1471 = vmatprep.subr.mxu0 0.0
    %1472 = vmatpush1.msra.mxu0 0.0
    %1473 = vmatprep.subr.mxu0 0.0
    %1474 = vmatpush1.msra.mxu0 0.0
    %1475 = vmatprep.subr.mxu0 0.0
    %1476 = vmatpush1.msra.mxu0 0.0
    %1477 = vmatprep.subr.mxu0 0.0
    %1478 = vmatpush1.msra.mxu0 0.0
    %1479 = vmatprep.subr.mxu0 0.0
    %1480 = vmatpush1.msra.mxu0 0.0
    %1481 = vmatprep.subr.mxu0 0.0
    %1482 = vmatpush1.msra.mxu0 0.0
    %1483 = vmatprep.subr.mxu0 0.0
    %1484 = vmatpush1.msra.mxu0 0.0
    %1485 = vmatprep.subr.mxu0 0.0
    %1486 = vmatpush1.msra.mxu0 0.0
    %1487 = vmatprep.subr.mxu0 0.0
    %1488 = vmatpush1.msra.mxu0 0.0
    %1489 = vmatprep.subr.mxu0 0.0
    %1490 = vmatpush1.msra.mxu0 0.0
    %1491 = vmatprep.subr.mxu0 0.0
    %1492 = vmatpush1.msra.mxu0 0.0
    %1493 = vmatprep.subr.mxu0 0.0
    %1494 = vmatpush1.msra.mxu0 0.0
    %1495 = vmatprep.subr.mxu0 0.0
    %1496 = vmatpush1.msra.mxu0 0.0
    %1497 = vmatprep.subr.mxu0 0.0
    %1498 = vmatpush1.msra.mxu0 0.0
    %1499 = vmatprep.subr.mxu0 0.0
    %1500 = vmatpush1.msra.mxu0 0.0
    %1501 = vmatprep.subr.mxu0 0.0
    %1502 = vmatpush1.msra.mxu0 0.0
    %1503 = vmatprep.mubr.f32.mxu0 0.0
    %1504 = vmatmul.mubr.f32.gmra.mrb[0].mxu0 %v1359
    %v1505 = vpop.f32.mrb[0].mxu0
    %v1506 = vadd.f32 0.0, %v1505
    %v1507 = vpop.f32.mrb[0].mxu0
    %1508 = vmatprep.mubr.f32.mxu0 0.0
    %1509 = vmatmul.mubr.f32.gmra.mrb[0].mxu0 %v1362
    %v1510 = vpop.f32.mrb[0].mxu0
    %v1511 = vadd.f32 0.0, %v1510
    %v1512 = vpop.f32.mrb[0].mxu0
    %1513 = vdwg.mxu0
    %1515 = vset.pattern.permute.xlu0 0
    %1516 = vperm.xlu0 %1515, %v1506
    %v1517 = vpop.permute.xlu0 %1516
    %1520 = vset.pattern.permute.xlu0 0
    %1521 = vperm.xlu0 %1520, %v1511
    %v1522 = vpop.permute.xlu0 %1521
    %v1524 = vmul.f32 %v137, %v1517
    %v1525 = vmul.f32 %v138, %v1522
    %v1526 = vsel %vm199, %v1524, 0.0
    %v1527 = vsel %vm199, %v1525, 0.0
    %v1528 = vadd.f32 %v1526, %v1527
    %v1529 = vrot.slane %v1528, 4
    %v1530 = vadd.f32 %v1528, %v1529
    %v1531 = vrot.slane %v1530, 2
    %v1532 = vadd.f32 %v1530, %v1531
    %v1533 = vrot.slane %v1532, 1
    %v1534 = vadd.f32 %v1532, %v1533
    %1536 = vset.pattern.permute.xlu0 0
    %1537 = vperm.xlu0 %1536, %v1431
    %v1538 = vpop.permute.xlu0 %1537
    %1541 = vset.pattern.permute.xlu0 0
    %1542 = vperm.xlu0 %1541, %v1436
    %v1543 = vpop.permute.xlu0 %1542
    %v1545 = vadd.f32 %v1538, %v1534
    %v1546 = vadd.f32 %v1543, %v1534
    %v1548 = vlaneseq
    %v1549 = vshrl.u32 %v1548, 7
    %v1550 = vsub.s32 0, %v1549
    %v1551 = vrot.slane %v178, %v1550
    %1552 = vset.pattern.permute.xlu0 0
    %1553 = vperm.xlu0 %1552, %v1551
    %v1554 = vpop.permute.xlu0 %1553
    %v1556 = vadd.f32 %v1545, %v1554
    %v1557 = vadd.f32 %v1546, %v1554
    %vm1558 = vcmp.gt.f32.partialorder %v1011, 0.0
    %vm1559 = vcmp.gt.f32.partialorder %v1012, 0.0
    %v1560 = vsel %vm1558, %v1556, -1e+30
    %v1561 = vsel %vm1559, %v1557, -1e+30
    %v1562 = vsel %vm199, %v1560, -inf
    %v1563 = vsel %vm199, %v1561, -inf
    %v1564 = vmax.f32 %v1562, %v1563
    %v1565 = vrot.slane %v1564, 4
    %v1566 = vmax.f32 %v1564, %v1565
    %v1567 = vrot.slane %v1566, 2
    %v1568 = vmax.f32 %v1566, %v1567
    %v1569 = vrot.slane %v1568, 1
    %v1570 = vmax.f32 %v1568, %v1569
    %v1571 = vsub.f32 %v1560, %v1570
    %v1572 = vsub.f32 %v1561, %v1570
    %v1573 = vmul.f32 %v1571, 1.442695
    %v1574 = vpow.pop %v1573
    %v1575 = vmul.f32 %v1572, 1.442695
    %v1576 = vpow.pop %v1575
    %v1577 = vsel %vm1558, %v1574, 0.0
    %v1578 = vsel %vm1559, %v1576, 0.0
    %v1579 = vsel %vm199, %v1577, 0.0
    %v1580 = vsel %vm199, %v1578, 0.0
    %v1581 = vadd.f32 %v1579, %v1580
    %v1582 = vrot.slane %v1581, 4
    %v1583 = vadd.f32 %v1581, %v1582
    %v1584 = vrot.slane %v1583, 2
    %v1585 = vadd.f32 %v1583, %v1584
    %v1586 = vrot.slane %v1585, 1
    %v1587 = vadd.f32 %v1585, %v1586
    %v1588 = vadd.f32 %v1587, 1e-16
    %v1589 = vrcp.pop %v1588
    %v1590 = vmul.f32 %v1577, %v1589
    %v1591 = vmul.f32 %v1578, %v1589
    %v1592 = vadd.f32 %v1590, 0.5
    %v1593 = vadd.f32 %v1591, 0.5
    loop: start=0, step=1, limit=16
    $region121: #{edgenet_forward.1} parent=1 // loop_pre_header
      _
    $region122: #{edgenet_forward.1} parent=1 // loop_header
      %s1595 = sphi 0, %s1599
      %p1596 = scmp.ge.s32.totalorder %s1595, 16
      %v1600 = vphi %v745, %v1679
      %v1601 = vphi %v746, %v1680
      %v1602 = vphi %v757, %v1690
      %v1603 = vphi 0.0, %v1659
      %v1604 = vphi 0.0, %v1660
    $region123: #{edgenet_forward.1} parent=1 // loop_header_branch
      %1598 = sbr.rel (%p1596) target = $region127
    $region124: #{edgenet_forward.1} parent=1 // loop_body
      %v1605 = vmul.f32 %v1011, %v1600
      %v1606 = vmul.f32 %v1012, %v1601
      %v1607 = vmul.f32 %v1605, %v1602
      %v1608 = vmul.f32 %v1606, %v1602
      %vm1609 = vcmp.gt.f32.partialorder %v1607, 0.0
      %vm1610 = vcmp.gt.f32.partialorder %v1608, 0.0
      %v1611 = vsel %vm1609, %v1592, -1e+30
      %v1612 = vsel %vm1610, %v1593, -1e+30
      %v1613 = vsel %vm199, %v1611, -inf
      %1614 = vmax.xlane.f32.xlu0 %v1613
      %v1615 = vpop.xlane.xlu0 %1614
      %v1616 = vsel %vm199, %v1612, -inf
      %1617 = vmax.xlane.f32.xlu0 %v1616
      %v1618 = vpop.xlane.xlu0 %1617
      %v1619 = vmax.f32 %v1615, %v1618
      %v1620 = vrot.slane %v1619, 4
      %v1621 = vmax.f32 %v1619, %v1620
      %v1622 = vrot.slane %v1621, 2
      %v1623 = vmax.f32 %v1621, %v1622
      %v1624 = vrot.slane %v1623, 1
      %v1625 = vmax.f32 %v1623, %v1624
      %vm1626 = vcmp.ge.f32.partialorder %v1611, %v1625
      %vm1627 = vcmp.ge.f32.partialorder %v1612, %v1625
      %vm1628 = vmand %vm1609, %vm1626
      %vm1629 = vmand %vm1610, %vm1627
      %v1630 = vsel %vm1628, %v144, 1e+09
      %v1631 = vsel %vm1629, %v145, 1e+09
      %v1632 = vsel %vm199, %v1630, inf
      %1633 = vmin.xlane.f32.xlu0 %v1632
      %v1634 = vpop.xlane.xlu0 %1633
      %v1635 = vsel %vm199, %v1631, inf
      %1636 = vmin.xlane.f32.xlu0 %v1635
      %v1637 = vpop.xlane.xlu0 %1636
      %v1638 = vmin.f32 %v1634, %v1637
      %v1639 = vrot.slane %v1638, 4
      %v1640 = vmin.f32 %v1638, %v1639
      %v1641 = vrot.slane %v1640, 2
      %v1642 = vmin.f32 %v1640, %v1641
      %v1643 = vrot.slane %v1642, 1
      %v1644 = vmin.f32 %v1642, %v1643
      %v1645 = vmul.f32 %v1644, 0.0625
      %v1646 = vfloor.f32 %v1645
      %v1647 = vmul.f32 %v1646, 16.0
      %v1648 = vsub.f32 %v1644, %v1647
      %vm1649 = vcmp.eq.f32.partialorder %v144, %v1644
      %vm1650 = vcmp.eq.f32.partialorder %v145, %v1644
      %vm1651 = vmand %vm1628, %vm1649
      %vm1652 = vmand %vm1629, %vm1650
      %v1653 = vsel %vm1651, 1, 0
      %v1654 = vsel %vm1652, 1, 0
      %v1655 = vcvt.s32.f32 %v1653
      %v1656 = vcvt.s32.f32 %v1654
      %v1657 = vmul.f32 %v1655, %v1592
      %v1658 = vmul.f32 %v1656, %v1593
      %v1659 = vadd.f32 %v1603, %v1657
      %v1660 = vadd.f32 %v1604, %v1658
      %vm1661 = vcmp.eq.f32.partialorder %v139, %v1646
      %vm1662 = vcmp.eq.f32.partialorder %v140, %v1646
      %v1663 = vsel %vm1661, 1, 0
      %v1664 = vsel %vm1662, 1, 0
      %v1665 = vcvt.s32.f32 %v1663
      %v1666 = vcvt.s32.f32 %v1664
      %v1667 = vsub.f32 1.0, %v1665
      %v1668 = vsub.f32 1.0, %v1666
      %v1669 = vmul.f32 %v1600, %v1667
      %v1670 = vmul.f32 %v1601, %v1668
      %vm1671 = vcmp.eq.f32.partialorder %v139, %v1648
      %vm1672 = vcmp.eq.f32.partialorder %v140, %v1648
      %v1673 = vsel %vm1671, 1, 0
      %v1674 = vsel %vm1672, 1, 0
      %v1675 = vcvt.s32.f32 %v1673
      %v1676 = vcvt.s32.f32 %v1674
      %v1677 = vsub.f32 1.0, %v1675
      %v1678 = vsub.f32 1.0, %v1676
      %v1679 = vmul.f32 %v1669, %v1677
      %v1680 = vmul.f32 %v1670, %v1678
      %vm1681 = vcmp.eq.f32.partialorder %v141, %v1646
      %v1682 = vsel %vm1681, 1, 0
      %v1683 = vcvt.s32.f32 %v1682
      %v1684 = vsub.f32 1.0, %v1683
      %v1685 = vmul.f32 %v1602, %v1684
      %vm1686 = vcmp.eq.f32.partialorder %v141, %v1648
      %v1687 = vsel %vm1686, 1, 0
      %v1688 = vcvt.s32.f32 %v1687
      %v1689 = vsub.f32 1.0, %v1688
      %v1690 = vmul.f32 %v1685, %v1689
    $region125: #{edgenet_forward.1} parent=1 // loop_footer
      %s1599 = sadd.s32 1, %s1595
    $region126: #{edgenet_forward.1} parent=1 // loop_footer_branch
      %1594 = sbr.rel target = $region122
    $region127: #{edgenet_forward.1} parent=1 // loop_exit
      _
    %vm1691 = vcmp.gt.f32.partialorder %v1603, 0.0
    %vm1692 = vcmp.gt.f32.partialorder %v1604, 0.0
    %v1693 = vsel %vm1691, 1, 0
    %v1694 = vsel %vm1692, 1, 0
    %v1695 = vcvt.s32.f32 %v1693
    %v1696 = vcvt.s32.f32 %v1694
    %v1697 = vmul.f32 %v1695, %v193
    %v1698 = vmul.f32 %v1696, %v194
    %v1699 = vsel %vm199, %v1695, -inf
    %1700 = vmax.xlane.f32.xlu0 %v1699
    %v1701 = vpop.xlane.xlu0 %1700
    %v1702 = vsel %vm199, %v1696, -inf
    %1703 = vmax.xlane.f32.xlu0 %v1702
    %v1704 = vpop.xlane.xlu0 %1703
    %v1705 = vmul.f32 %v745, %v1600
    %v1706 = vmul.f32 %v746, %v1601
    %v1707 = vadd.f32 %v1701, %v1705
    %v1708 = vadd.f32 %v1704, %v1706
    %v1709 = vmul.f32 %v137, %v1707
    %v1710 = vmul.f32 %v138, %v1708
    %v1711 = vsel %vm199, %v1709, 0.0
    %v1712 = vsel %vm199, %v1710, 0.0
    %v1713 = vadd.f32 %v1711, %v1712
    %v1714 = vrot.slane %v1713, 4
    %v1715 = vadd.f32 %v1713, %v1714
    %v1716 = vrot.slane %v1715, 2
    %v1717 = vadd.f32 %v1715, %v1716
    %v1718 = vrot.slane %v1717, 1
    %v1719 = vadd.f32 %v1717, %v1718
    %v1720 = vadd.f32 %v1709, %v1697
    %v1721 = vadd.f32 %v1710, %v1698
    %v1722 = vsel %vm199, %v1603, 0.0
    %1723 = vadd.xlane.f32.xlu0 %v1722
    %v1724 = vpop.xlane.xlu0 %1723
    %v1725 = vsel %vm199, %v1604, 0.0
    %1726 = vadd.xlane.f32.xlu0 %v1725
    %v1727 = vpop.xlane.xlu0 %1726
    %v1728 = vadd.f32 %v1724, %v1705
    %v1729 = vadd.f32 %v1727, %v1706
    %v1731 = vsel %vm199, %v1720, 0
    %v1734 = vsel %vm199, %v1721, 0
    %1736 = vmatprep.subr.mxu0 0.0
    %1737 = vmatpush1.msra.mxu0 %v1356
    %1738 = vmatprep.subr.mxu0 0.0
    %1739 = vmatpush1.msra.mxu0 %v1357
    %1740 = vmatprep.subr.mxu0 0.0
    %1741 = vmatpush1.msra.mxu0 0.0
    %1742 = vmatprep.subr.mxu0 0.0
    %1743 = vmatpush1.msra.mxu0 0.0
    %1744 = vmatprep.subr.mxu0 0.0
    %1745 = vmatpush1.msra.mxu0 0.0
    %1746 = vmatprep.subr.mxu0 0.0
    %1747 = vmatpush1.msra.mxu0 0.0
    %1748 = vmatprep.subr.mxu0 0.0
    %1749 = vmatpush1.msra.mxu0 0.0
    %1750 = vmatprep.subr.mxu0 0.0
    %1751 = vmatpush1.msra.mxu0 0.0
    %1752 = vmatprep.subr.mxu0 0.0
    %1753 = vmatpush1.msra.mxu0 0.0
    %1754 = vmatprep.subr.mxu0 0.0
    %1755 = vmatpush1.msra.mxu0 0.0
    %1756 = vmatprep.subr.mxu0 0.0
    %1757 = vmatpush1.msra.mxu0 0.0
    %1758 = vmatprep.subr.mxu0 0.0
    %1759 = vmatpush1.msra.mxu0 0.0
    %1760 = vmatprep.subr.mxu0 0.0
    %1761 = vmatpush1.msra.mxu0 0.0
    %1762 = vmatprep.subr.mxu0 0.0
    %1763 = vmatpush1.msra.mxu0 0.0
    %1764 = vmatprep.subr.mxu0 0.0
    %1765 = vmatpush1.msra.mxu0 0.0
    %1766 = vmatprep.subr.mxu0 0.0
    %1767 = vmatpush1.msra.mxu0 0.0
    %1768 = vmatprep.subr.mxu0 0.0
    %1769 = vmatpush1.msra.mxu0 0.0
    %1770 = vmatprep.subr.mxu0 0.0
    %1771 = vmatpush1.msra.mxu0 0.0
    %1772 = vmatprep.subr.mxu0 0.0
    %1773 = vmatpush1.msra.mxu0 0.0
    %1774 = vmatprep.subr.mxu0 0.0
    %1775 = vmatpush1.msra.mxu0 0.0
    %1776 = vmatprep.subr.mxu0 0.0
    %1777 = vmatpush1.msra.mxu0 0.0
    %1778 = vmatprep.subr.mxu0 0.0
    %1779 = vmatpush1.msra.mxu0 0.0
    %1780 = vmatprep.subr.mxu0 0.0
    %1781 = vmatpush1.msra.mxu0 0.0
    %1782 = vmatprep.subr.mxu0 0.0
    %1783 = vmatpush1.msra.mxu0 0.0
    %1784 = vmatprep.subr.mxu0 0.0
    %1785 = vmatpush1.msra.mxu0 0.0
    %1786 = vmatprep.subr.mxu0 0.0
    %1787 = vmatpush1.msra.mxu0 0.0
    %1788 = vmatprep.subr.mxu0 0.0
    %1789 = vmatpush1.msra.mxu0 0.0
    %1790 = vmatprep.subr.mxu0 0.0
    %1791 = vmatpush1.msra.mxu0 0.0
    %1792 = vmatprep.subr.mxu0 0.0
    %1793 = vmatpush1.msra.mxu0 0.0
    %1794 = vmatprep.subr.mxu0 0.0
    %1795 = vmatpush1.msra.mxu0 0.0
    %1796 = vmatprep.subr.mxu0 0.0
    %1797 = vmatpush1.msra.mxu0 0.0
    %1798 = vmatprep.subr.mxu0 0.0
    %1799 = vmatpush1.msra.mxu0 0.0
    %1800 = vmatprep.mubr.f32.mxu0 0.0
    %1801 = vmatmul.mubr.f32.gmra.mrb[0].mxu0 %v1731
    %v1802 = vpop.f32.mrb[0].mxu0
    %v1803 = vadd.f32 0.0, %v1802
    %v1804 = vpop.f32.mrb[0].mxu0
    %1805 = vmatprep.mubr.f32.mxu0 0.0
    %1806 = vmatmul.mubr.f32.gmra.mrb[0].mxu0 %v1734
    %v1807 = vpop.f32.mrb[0].mxu0
    %v1808 = vadd.f32 0.0, %v1807
    %v1809 = vpop.f32.mrb[0].mxu0
    %1810 = vdwg.mxu0
    %v1811 = vmul.f32 %v1803, %v1728
    %v1812 = vmul.f32 %v1808, %v1729
    %1813 = vmatprep.subr.mxu0 0.0
    %1814 = vmatpush1.msra.mxu0 %v1011
    %1815 = vmatprep.subr.mxu0 0.0
    %1816 = vmatpush1.msra.mxu0 %v1012
    %1817 = vmatprep.subr.mxu0 0.0
    %1818 = vmatpush1.msra.mxu0 0.0
    %1819 = vmatprep.subr.mxu0 0.0
    %1820 = vmatpush1.msra.mxu0 0.0
    %1821 = vmatprep.subr.mxu0 0.0
    %1822 = vmatpush1.msra.mxu0 0.0
    %1823 = vmatprep.subr.mxu0 0.0
    %1824 = vmatpush1.msra.mxu0 0.0
    %1825 = vmatprep.subr.mxu0 0.0
    %1826 = vmatpush1.msra.mxu0 0.0
    %1827 = vmatprep.subr.mxu0 0.0
    %1828 = vmatpush1.msra.mxu0 0.0
    %1829 = vmatprep.subr.mxu0 0.0
    %1830 = vmatpush1.msra.mxu0 0.0
    %1831 = vmatprep.subr.mxu0 0.0
    %1832 = vmatpush1.msra.mxu0 0.0
    %1833 = vmatprep.subr.mxu0 0.0
    %1834 = vmatpush1.msra.mxu0 0.0
    %1835 = vmatprep.subr.mxu0 0.0
    %1836 = vmatpush1.msra.mxu0 0.0
    %1837 = vmatprep.subr.mxu0 0.0
    %1838 = vmatpush1.msra.mxu0 0.0
    %1839 = vmatprep.subr.mxu0 0.0
    %1840 = vmatpush1.msra.mxu0 0.0
    %1841 = vmatprep.subr.mxu0 0.0
    %1842 = vmatpush1.msra.mxu0 0.0
    %1843 = vmatprep.subr.mxu0 0.0
    %1844 = vmatpush1.msra.mxu0 0.0
    %1845 = vmatprep.subr.mxu0 0.0
    %1846 = vmatpush1.msra.mxu0 0.0
    %1847 = vmatprep.subr.mxu0 0.0
    %1848 = vmatpush1.msra.mxu0 0.0
    %1849 = vmatprep.subr.mxu0 0.0
    %1850 = vmatpush1.msra.mxu0 0.0
    %1851 = vmatprep.subr.mxu0 0.0
    %1852 = vmatpush1.msra.mxu0 0.0
    %1853 = vmatprep.subr.mxu0 0.0
    %1854 = vmatpush1.msra.mxu0 0.0
    %1855 = vmatprep.subr.mxu0 0.0
    %1856 = vmatpush1.msra.mxu0 0.0
    %1857 = vmatprep.subr.mxu0 0.0
    %1858 = vmatpush1.msra.mxu0 0.0
    %1859 = vmatprep.subr.mxu0 0.0
    %1860 = vmatpush1.msra.mxu0 0.0
    %1861 = vmatprep.subr.mxu0 0.0
    %1862 = vmatpush1.msra.mxu0 0.0
    %1863 = vmatprep.subr.mxu0 0.0
    %1864 = vmatpush1.msra.mxu0 0.0
    %1865 = vmatprep.subr.mxu0 0.0
    %1866 = vmatpush1.msra.mxu0 0.0
    %1867 = vmatprep.subr.mxu0 0.0
    %1868 = vmatpush1.msra.mxu0 0.0
    %1869 = vmatprep.subr.mxu0 0.0
    %1870 = vmatpush1.msra.mxu0 0.0
    %1871 = vmatprep.subr.mxu0 0.0
    %1872 = vmatpush1.msra.mxu0 0.0
    %1873 = vmatprep.subr.mxu0 0.0
    %1874 = vmatpush1.msra.mxu0 0.0
    %1875 = vmatprep.subr.mxu0 0.0
    %1876 = vmatpush1.msra.mxu0 0.0
    %1877 = vmatprep.mubr.f32.mxu0 0.0
    %1878 = vmatmul.mubr.f32.gmra.mrb[0].mxu0 %v1731
    %v1879 = vpop.f32.mrb[0].mxu0
    %v1880 = vadd.f32 0.0, %v1879
    %v1881 = vpop.f32.mrb[0].mxu0
    %1882 = vmatprep.mubr.f32.mxu0 0.0
    %1883 = vmatmul.mubr.f32.gmra.mrb[0].mxu0 %v1734
    %v1884 = vpop.f32.mrb[0].mxu0
    %v1885 = vadd.f32 0.0, %v1884
    %v1886 = vpop.f32.mrb[0].mxu0
    %1887 = vdwg.mxu0
    %v1889 = vsel %vm199, %v1880, 0
    %v1892 = vsel %vm199, %v1885, 0
    %1894 = vmatprep.subr.mxu0 0.0
    %1895 = vmatpush1.xpose.msra.mxu0 %v1731
    %1896 = vmatprep.subr.mxu0 0.0
    %1897 = vmatpush1.xpose.msra.mxu0 %v1734
    %1898 = vmatprep.subr.mxu0 0.0
    %1899 = vmatpush1.xpose.msra.mxu0 0.0
    %1900 = vmatprep.subr.mxu0 0.0
    %1901 = vmatpush1.xpose.msra.mxu0 0.0
    %1902 = vmatprep.subr.mxu0 0.0
    %1903 = vmatpush1.xpose.msra.mxu0 0.0
    %1904 = vmatprep.subr.mxu0 0.0
    %1905 = vmatpush1.xpose.msra.mxu0 0.0
    %1906 = vmatprep.subr.mxu0 0.0
    %1907 = vmatpush1.xpose.msra.mxu0 0.0
    %1908 = vmatprep.subr.mxu0 0.0
    %1909 = vmatpush1.xpose.msra.mxu0 0.0
    %1910 = vmatprep.subr.mxu0 0.0
    %1911 = vmatpush1.xpose.msra.mxu0 0.0
    %1912 = vmatprep.subr.mxu0 0.0
    %1913 = vmatpush1.xpose.msra.mxu0 0.0
    %1914 = vmatprep.subr.mxu0 0.0
    %1915 = vmatpush1.xpose.msra.mxu0 0.0
    %1916 = vmatprep.subr.mxu0 0.0
    %1917 = vmatpush1.xpose.msra.mxu0 0.0
    %1918 = vmatprep.subr.mxu0 0.0
    %1919 = vmatpush1.xpose.msra.mxu0 0.0
    %1920 = vmatprep.subr.mxu0 0.0
    %1921 = vmatpush1.xpose.msra.mxu0 0.0
    %1922 = vmatprep.subr.mxu0 0.0
    %1923 = vmatpush1.xpose.msra.mxu0 0.0
    %1924 = vmatprep.subr.mxu0 0.0
    %1925 = vmatpush1.xpose.msra.mxu0 0.0
    %1926 = vmatprep.subr.mxu0 0.0
    %1927 = vmatpush1.xpose.msra.mxu0 0.0
    %1928 = vmatprep.subr.mxu0 0.0
    %1929 = vmatpush1.xpose.msra.mxu0 0.0
    %1930 = vmatprep.subr.mxu0 0.0
    %1931 = vmatpush1.xpose.msra.mxu0 0.0
    %1932 = vmatprep.subr.mxu0 0.0
    %1933 = vmatpush1.xpose.msra.mxu0 0.0
    %1934 = vmatprep.subr.mxu0 0.0
    %1935 = vmatpush1.xpose.msra.mxu0 0.0
    %1936 = vmatprep.subr.mxu0 0.0
    %1937 = vmatpush1.xpose.msra.mxu0 0.0
    %1938 = vmatprep.subr.mxu0 0.0
    %1939 = vmatpush1.xpose.msra.mxu0 0.0
    %1940 = vmatprep.subr.mxu0 0.0
    %1941 = vmatpush1.xpose.msra.mxu0 0.0
    %1942 = vmatprep.subr.mxu0 0.0
    %1943 = vmatpush1.xpose.msra.mxu0 0.0
    %1944 = vmatprep.subr.mxu0 0.0
    %1945 = vmatpush1.xpose.msra.mxu0 0.0
    %1946 = vmatprep.subr.mxu0 0.0
    %1947 = vmatpush1.xpose.msra.mxu0 0.0
    %1948 = vmatprep.subr.mxu0 0.0
    %1949 = vmatpush1.xpose.msra.mxu0 0.0
    %1950 = vmatprep.subr.mxu0 0.0
    %1951 = vmatpush1.xpose.msra.mxu0 0.0
    %1952 = vmatprep.subr.mxu0 0.0
    %1953 = vmatpush1.xpose.msra.mxu0 0.0
    %1954 = vmatprep.subr.mxu0 0.0
    %1955 = vmatpush1.xpose.msra.mxu0 0.0
    %1956 = vmatprep.subr.mxu0 0.0
    %1957 = vmatpush1.xpose.msra.mxu0 0.0
    %1958 = vmatprep.mubr.f32.mxu0 0.0
    %1959 = vmatmul.mubr.f32.gmra.mrb[0].mxu0 %v1889
    %v1960 = vpop.f32.mrb[0].mxu0
    %v1961 = vadd.f32 0.0, %v1960
    %v1962 = vpop.f32.mrb[0].mxu0
    %1963 = vmatprep.mubr.f32.mxu0 0.0
    %1964 = vmatmul.mubr.f32.gmra.mrb[0].mxu0 %v1892
    %v1965 = vpop.f32.mrb[0].mxu0
    %v1966 = vadd.f32 0.0, %v1965
    %v1967 = vpop.f32.mrb[0].mxu0
    %1968 = vdwg.mxu0
    %vm1969 = vcmp.gt.f32.partialorder %v1961, 0.0
    %vm1970 = vcmp.gt.f32.partialorder %v1966, 0.0
    %v1971 = vsel %vm1969, 1, 0
    %v1972 = vsel %vm1970, 1, 0
    %v1973 = vcvt.s32.f32 %v1971
    %v1974 = vcvt.s32.f32 %v1972
    %v1975 = vmul.f32 %v152, %v1719
    %v1976 = vsel %vm1014, %v1975, 0.0
    %1977 = vadd.xlane.f32.xlu0 %v1976
    %v1978 = vpop.xlane.xlu0 %1977
    %vm1979 = vcmp.gt.f32.partialorder %v1978, 0.0
    %v1980 = vmax.f32 %v1978, 1.0
    %v1981 = vrcp.pop %v1980
    %v1982 = vmul.f32 1.0, %v1981
    %v1983 = vsel %vm1979, %v1982, 0.0
    %v1985 = vsel %vm199, %v1975, 0
    %1987 = vmatprep.subr.mxu0 0.0
    %1988 = vmatpush1.msra.mxu0 %v1811
    %1989 = vmatprep.subr.mxu0 0.0
    %1990 = vmatpush1.msra.mxu0 %v1812
    %1991 = vmatprep.subr.mxu0 0.0
    %1992 = vmatpush1.msra.mxu0 0.0
    %1993 = vmatprep.subr.mxu0 0.0
    %1994 = vmatpush1.msra.mxu0 0.0
    %1995 = vmatprep.subr.mxu0 0.0
    %1996 = vmatpush1.msra.mxu0 0.0
    %1997 = vmatprep.subr.mxu0 0.0
    %1998 = vmatpush1.msra.mxu0 0.0
    %1999 = vmatprep.subr.mxu0 0.0
    %2000 = vmatpush1.msra.mxu0 0.0
    %2001 = vmatprep.subr.mxu0 0.0
    %2002 = vmatpush1.msra.mxu0 0.0
    %2003 = vmatprep.subr.mxu0 0.0
    %2004 = vmatpush1.msra.mxu0 0.0
    %2005 = vmatprep.subr.mxu0 0.0
    %2006 = vmatpush1.msra.mxu0 0.0
    %2007 = vmatprep.subr.mxu0 0.0
    %2008 = vmatpush1.msra.mxu0 0.0
    %2009 = vmatprep.subr.mxu0 0.0
    %2010 = vmatpush1.msra.mxu0 0.0
    %2011 = vmatprep.subr.mxu0 0.0
    %2012 = vmatpush1.msra.mxu0 0.0
    %2013 = vmatprep.subr.mxu0 0.0
    %2014 = vmatpush1.msra.mxu0 0.0
    %2015 = vmatprep.subr.mxu0 0.0
    %2016 = vmatpush1.msra.mxu0 0.0
    %2017 = vmatprep.subr.mxu0 0.0
    %2018 = vmatpush1.msra.mxu0 0.0
    %2019 = vmatprep.subr.mxu0 0.0
    %2020 = vmatpush1.msra.mxu0 0.0
    %2021 = vmatprep.subr.mxu0 0.0
    %2022 = vmatpush1.msra.mxu0 0.0
    %2023 = vmatprep.subr.mxu0 0.0
    %2024 = vmatpush1.msra.mxu0 0.0
    %2025 = vmatprep.subr.mxu0 0.0
    %2026 = vmatpush1.msra.mxu0 0.0
    %2027 = vmatprep.subr.mxu0 0.0
    %2028 = vmatpush1.msra.mxu0 0.0
    %2029 = vmatprep.subr.mxu0 0.0
    %2030 = vmatpush1.msra.mxu0 0.0
    %2031 = vmatprep.subr.mxu0 0.0
    %2032 = vmatpush1.msra.mxu0 0.0
    %2033 = vmatprep.subr.mxu0 0.0
    %2034 = vmatpush1.msra.mxu0 0.0
    %2035 = vmatprep.subr.mxu0 0.0
    %2036 = vmatpush1.msra.mxu0 0.0
    %2037 = vmatprep.subr.mxu0 0.0
    %2038 = vmatpush1.msra.mxu0 0.0
    %2039 = vmatprep.subr.mxu0 0.0
    %2040 = vmatpush1.msra.mxu0 0.0
    %2041 = vmatprep.subr.mxu0 0.0
    %2042 = vmatpush1.msra.mxu0 0.0
    %2043 = vmatprep.subr.mxu0 0.0
    %2044 = vmatpush1.msra.mxu0 0.0
    %2045 = vmatprep.subr.mxu0 0.0
    %2046 = vmatpush1.msra.mxu0 0.0
    %2047 = vmatprep.subr.mxu0 0.0
    %2048 = vmatpush1.msra.mxu0 0.0
    %2049 = vmatprep.subr.mxu0 0.0
    %2050 = vmatpush1.msra.mxu0 0.0
    %2051 = vmatprep.mubr.f32.mxu0 0.0
    %2052 = vmatmul.mubr.f32.gmra.mrb[0].mxu0 %v1985
    %v2053 = vpop.f32.mrb[0].mxu0
    %v2054 = vadd.f32 0.0, %v2053
    %v2055 = vpop.f32.mrb[0].mxu0
    %2056 = vdwg.mxu0
    %v2057 = vmul.f32 %v2054, %v1983
    %v2058 = vmul.f32 %v150, %v1707
    %v2059 = vmul.f32 %v151, %v1708
    %vm2060 = vcmp.gt.f32.partialorder %v2058, 0.0
    %vm2061 = vcmp.gt.f32.partialorder %v2059, 0.0
    %v2062 = vsel %vm2060, 1, 0
    %v2063 = vsel %vm2061, 1, 0
    %2064 = vset.pattern.permute.xlu0 0
    %2065 = vperm.xlu0 %2064, %v2062
    %v2066 = vpop.permute.xlu0 %2065
    %2067 = vset.pattern.permute.xlu0 0
    %2068 = vperm.xlu0 %2067, %v2063
    %v2069 = vpop.permute.xlu0 %2068
    %vm2070 = vcmp.eq.s32.totalorder %v2066, 1
    %vm2071 = vcmp.eq.s32.totalorder %v2069, 1
    %v2072 = vsel %vm2070, %v1811, -1e+30
    %v2073 = vsel %vm2071, %v1812, -1e+30
    %v2074 = vsel %vm397, %v2072, -inf
    %v2075 = vsel %vm397, %v2073, -inf
    %v2076 = vmax.f32 %v2074, %v2075
    %v2077 = vrot.slane %v2076, 4
    %v2078 = vmax.f32 %v2076, %v2077
    %v2079 = vrot.slane %v2078, 2
    %v2080 = vmax.f32 %v2078, %v2079
    %v2081 = vrot.slane %v2080, 1
    %v2082 = vmax.f32 %v2080, %v2081
    %v2083 = vsel %vm1979, 1, 0
    %vm2084 = vcmp.eq.s32.totalorder %v2083, 1
    %v2085 = vsel %vm2084, %v2082, 0.0
    %2086 = vset.pattern.permute.xlu0 1
    %2087 = vperm.xlu0 %2086, %v2062
    %v2088 = vpop.permute.xlu0 %2087
    %2089 = vset.pattern.permute.xlu0 1
    %2090 = vperm.xlu0 %2089, %v2063
    %v2091 = vpop.permute.xlu0 %2090
    %vm2092 = vcmp.eq.s32.totalorder %v2088, 1
    %vm2093 = vcmp.eq.s32.totalorder %v2091, 1
    %v2094 = vsel %vm2092, %v1811, -1e+30
    %v2095 = vsel %vm2093, %v1812, -1e+30
    %v2096 = vsel %vm397, %v2094, -inf
    %v2097 = vsel %vm397, %v2095, -inf
    %v2098 = vmax.f32 %v2096, %v2097
    %v2099 = vrot.slane %v2098, 4
    %v2100 = vmax.f32 %v2098, %v2099
    %v2101 = vrot.slane %v2100, 2
    %v2102 = vmax.f32 %v2100, %v2101
    %v2103 = vrot.slane %v2102, 1
    %v2104 = vmax.f32 %v2102, %v2103
    %v2105 = vsel %vm2084, %v2104, 0.0
    %v2106 = vsel %vm1145, %v2085, %v2105
    %2108 = vrot.lane.b32.xlu0 %v2057, 32
    %v2109 = vpop.permute.xlu0 %2108
    %v2111 = vsel %vm397, %v2106, %v2109
    %v2112 = vadd.f32 %v1152, %v2111
    %v2113 = vmul.f32 %v1973, %v193
    %v2114 = vmul.f32 %v1974, %v194
    %v2115 = vadd.f32 %v2113, %v1709
    %v2116 = vadd.f32 %v2114, %v1710
    %v2117 = vsel %vm199, %v2115, 0.0
    %2118 = vadd.xlane.f32.xlu0 %v2117
    %v2119 = vpop.xlane.xlu0 %2118
    %v2120 = vsel %vm199, %v2116, 0.0
    %2121 = vadd.xlane.f32.xlu0 %v2120
    %v2122 = vpop.xlane.xlu0 %2121
    %v2123 = vadd.f32 %v2117, %v2120
    %v2124 = vrot.slane %v2123, 4
    %v2125 = vadd.f32 %v2123, %v2124
    %v2126 = vrot.slane %v2125, 2
    %v2127 = vadd.f32 %v2125, %v2126
    %v2128 = vrot.slane %v2127, 1
    %v2129 = vadd.f32 %v2127, %v2128
    %vm2130 = vcmp.gt.f32.partialorder %v1707, 0.0
    %vm2131 = vcmp.gt.f32.partialorder %v1708, 0.0
    %v2132 = vmax.f32 %v2119, 1e-12
    %v2133 = vmax.f32 %v2122, 1e-12
    %v2134 = vrsqrt.pop %v2132
    %v2135 = vrsqrt.pop %v2133
    %v2136 = vsel %vm2130, %v2134, 0.0
    %v2137 = vsel %vm2131, %v2135, 0.0
    %vm2138 = vcmp.gt.f32.partialorder %v1719, 0.0
    %v2139 = vmax.f32 %v2129, 1e-12
    %v2140 = vrsqrt.pop %v2139
    %v2141 = vsel %vm2138, %v2140, 0.0
    %v2142 = vmul.f32 %v2136, %v2115
    %v2143 = vmul.f32 %v2137, %v2116
    %v2144 = vmul.f32 %v2142, %v2141
    %v2145 = vmul.f32 %v2143, %v2141
    %v2147 = vsel %vm397, %v1811, 0
    %v2150 = vsel %vm397, %v1812, 0
    %2152 = vmatprep.subr.mxu0 0.0
    %2153 = vmatpush1.msra.mxu0 %v179
    %2154 = vmatprep.subr.mxu0 0.0
    %2155 = vmatpush1.msra.mxu0 %v180
    %2156 = vmatprep.subr.mxu0 0.0
    %2157 = vmatpush1.msra.mxu0 %v181
    %2158 = vmatprep.subr.mxu0 0.0
    %2159 = vmatpush1.msra.mxu0 %v182
    %2160 = vmatprep.subr.mxu0 0.0
    %2161 = vmatpush1.msra.mxu0 0.0
    %2162 = vmatprep.subr.mxu0 0.0
    %2163 = vmatpush1.msra.mxu0 0.0
    %2164 = vmatprep.subr.mxu0 0.0
    %2165 = vmatpush1.msra.mxu0 0.0
    %2166 = vmatprep.subr.mxu0 0.0
    %2167 = vmatpush1.msra.mxu0 0.0
    %2168 = vmatprep.subr.mxu0 0.0
    %2169 = vmatpush1.msra.mxu0 0.0
    %2170 = vmatprep.subr.mxu0 0.0
    %2171 = vmatpush1.msra.mxu0 0.0
    %2172 = vmatprep.subr.mxu0 0.0
    %2173 = vmatpush1.msra.mxu0 0.0
    %2174 = vmatprep.subr.mxu0 0.0
    %2175 = vmatpush1.msra.mxu0 0.0
    %2176 = vmatprep.subr.mxu0 0.0
    %2177 = vmatpush1.msra.mxu0 0.0
    %2178 = vmatprep.subr.mxu0 0.0
    %2179 = vmatpush1.msra.mxu0 0.0
    %2180 = vmatprep.subr.mxu0 0.0
    %2181 = vmatpush1.msra.mxu0 0.0
    %2182 = vmatprep.subr.mxu0 0.0
    %2183 = vmatpush1.msra.mxu0 0.0
    %2184 = vmatprep.subr.mxu0 0.0
    %2185 = vmatpush1.msra.mxu0 0.0
    %2186 = vmatprep.subr.mxu0 0.0
    %2187 = vmatpush1.msra.mxu0 0.0
    %2188 = vmatprep.subr.mxu0 0.0
    %2189 = vmatpush1.msra.mxu0 0.0
    %2190 = vmatprep.subr.mxu0 0.0
    %2191 = vmatpush1.msra.mxu0 0.0
    %2192 = vmatprep.subr.mxu0 0.0
    %2193 = vmatpush1.msra.mxu0 0.0
    %2194 = vmatprep.subr.mxu0 0.0
    %2195 = vmatpush1.msra.mxu0 0.0
    %2196 = vmatprep.subr.mxu0 0.0
    %2197 = vmatpush1.msra.mxu0 0.0
    %2198 = vmatprep.subr.mxu0 0.0
    %2199 = vmatpush1.msra.mxu0 0.0
    %2200 = vmatprep.subr.mxu0 0.0
    %2201 = vmatpush1.msra.mxu0 0.0
    %2202 = vmatprep.subr.mxu0 0.0
    %2203 = vmatpush1.msra.mxu0 0.0
    %2204 = vmatprep.subr.mxu0 0.0
    %2205 = vmatpush1.msra.mxu0 0.0
    %2206 = vmatprep.subr.mxu0 0.0
    %2207 = vmatpush1.msra.mxu0 0.0
    %2208 = vmatprep.subr.mxu0 0.0
    %2209 = vmatpush1.msra.mxu0 0.0
    %2210 = vmatprep.subr.mxu0 0.0
    %2211 = vmatpush1.msra.mxu0 0.0
    %2212 = vmatprep.subr.mxu0 0.0
    %2213 = vmatpush1.msra.mxu0 0.0
    %2214 = vmatprep.subr.mxu0 0.0
    %2215 = vmatpush1.msra.mxu0 0.0
    %2216 = vmatprep.mubr.f32.mxu0 0.0
    %2217 = vmatmul.mubr.f32.gmra.mrb[0].mxu0 %v2147
    %v2218 = vpop.f32.mrb[0].mxu0
    %v2219 = vadd.f32 0.0, %v2218
    %v2220 = vpop.f32.mrb[0].mxu0
    %2221 = vmatprep.mubr.f32.mxu0 0.0
    %2222 = vmatmul.mubr.f32.gmra.mrb[0].mxu0 %v2150
    %v2223 = vpop.f32.mrb[0].mxu0
    %v2224 = vadd.f32 0.0, %v2223
    %v2225 = vpop.f32.mrb[0].mxu0
    %2226 = vdwg.mxu0
    %v2228 = vlaneseq
    %v2229 = vshrl.u32 %v2228, 7
    %v2230 = vsub.s32 0, %v2229
    %v2231 = vrot.slane %v183, %v2230
    %v2234 = vsel %vm199, %v2144, 0
    %v2237 = vsel %vm199, %v2145, 0
    %2239 = vmatprep.subr.mxu0 0.0
    %2240 = vmatpush1.msra.mxu0 %v2219
    %2241 = vmatprep.subr.mxu0 0.0
    %2242 = vmatpush1.msra.mxu0 %v2224
    %2243 = vmatprep.subr.mxu0 0.0
    %2244 = vmatpush1.msra.mxu0 0.0
    %2245 = vmatprep.subr.mxu0 0.0
    %2246 = vmatpush1.msra.mxu0 0.0
    %2247 = vmatprep.subr.mxu0 0.0
    %2248 = vmatpush1.msra.mxu0 0.0
    %2249 = vmatprep.subr.mxu0 0.0
    %2250 = vmatpush1.msra.mxu0 0.0
    %2251 = vmatprep.subr.mxu0 0.0
    %2252 = vmatpush1.msra.mxu0 0.0
    %2253 = vmatprep.subr.mxu0 0.0
    %2254 = vmatpush1.msra.mxu0 0.0
    %2255 = vmatprep.subr.mxu0 0.0
    %2256 = vmatpush1.msra.mxu0 0.0
    %2257 = vmatprep.subr.mxu0 0.0
    %2258 = vmatpush1.msra.mxu0 0.0
    %2259 = vmatprep.subr.mxu0 0.0
    %2260 = vmatpush1.msra.mxu0 0.0
    %2261 = vmatprep.subr.mxu0 0.0
    %2262 = vmatpush1.msra.mxu0 0.0
    %2263 = vmatprep.subr.mxu0 0.0
    %2264 = vmatpush1.msra.mxu0 0.0
    %2265 = vmatprep.subr.mxu0 0.0
    %2266 = vmatpush1.msra.mxu0 0.0
    %2267 = vmatprep.subr.mxu0 0.0
    %2268 = vmatpush1.msra.mxu0 0.0
    %2269 = vmatprep.subr.mxu0 0.0
    %2270 = vmatpush1.msra.mxu0 0.0
    %2271 = vmatprep.subr.mxu0 0.0
    %2272 = vmatpush1.msra.mxu0 0.0
    %2273 = vmatprep.subr.mxu0 0.0
    %2274 = vmatpush1.msra.mxu0 0.0
    %2275 = vmatprep.subr.mxu0 0.0
    %2276 = vmatpush1.msra.mxu0 0.0
    %2277 = vmatprep.subr.mxu0 0.0
    %2278 = vmatpush1.msra.mxu0 0.0
    %2279 = vmatprep.subr.mxu0 0.0
    %2280 = vmatpush1.msra.mxu0 0.0
    %2281 = vmatprep.subr.mxu0 0.0
    %2282 = vmatpush1.msra.mxu0 0.0
    %2283 = vmatprep.subr.mxu0 0.0
    %2284 = vmatpush1.msra.mxu0 0.0
    %2285 = vmatprep.subr.mxu0 0.0
    %2286 = vmatpush1.msra.mxu0 0.0
    %2287 = vmatprep.subr.mxu0 0.0
    %2288 = vmatpush1.msra.mxu0 0.0
    %2289 = vmatprep.subr.mxu0 0.0
    %2290 = vmatpush1.msra.mxu0 0.0
    %2291 = vmatprep.subr.mxu0 0.0
    %2292 = vmatpush1.msra.mxu0 0.0
    %2293 = vmatprep.subr.mxu0 0.0
    %2294 = vmatpush1.msra.mxu0 0.0
    %2295 = vmatprep.subr.mxu0 0.0
    %2296 = vmatpush1.msra.mxu0 0.0
    %2297 = vmatprep.subr.mxu0 0.0
    %2298 = vmatpush1.msra.mxu0 0.0
    %2299 = vmatprep.subr.mxu0 0.0
    %2300 = vmatpush1.msra.mxu0 0.0
    %2301 = vmatprep.subr.mxu0 0.0
    %2302 = vmatpush1.msra.mxu0 0.0
    %2303 = vmatprep.mubr.f32.mxu0 0.0
    %2304 = vmatmul.mubr.f32.gmra.mrb[0].mxu0 %v2234
    %v2305 = vpop.f32.mrb[0].mxu0
    %v2306 = vadd.f32 %v2231, %v2305
    %v2307 = vpop.f32.mrb[0].mxu0
    %2308 = vmatprep.mubr.f32.mxu0 0.0
    %2309 = vmatmul.mubr.f32.gmra.mrb[0].mxu0 %v2237
    %v2310 = vpop.f32.mrb[0].mxu0
    %v2311 = vadd.f32 %v2231, %v2310
    %v2312 = vpop.f32.mrb[0].mxu0
    %2313 = vdwg.mxu0
    %v2314 = vmax.f32 %v2306, 0.0
    %v2315 = vmax.f32 %v2311, 0.0
    %v2316 = vmul.f32 %v2314, %v1707
    %v2317 = vmul.f32 %v2315, %v1708
    %v2319 = vsel %vm397, %v2316, 0
    %v2322 = vsel %vm397, %v2317, 0
    %2324 = vmatprep.subr.mxu0 0.0
    %2325 = vmatpush1.msra.mxu0 %v184
    %2326 = vmatprep.subr.mxu0 0.0
    %2327 = vmatpush1.msra.mxu0 %v185
    %2328 = vmatprep.subr.mxu0 0.0
    %2329 = vmatpush1.msra.mxu0 %v186
    %2330 = vmatprep.subr.mxu0 0.0
    %2331 = vmatpush1.msra.mxu0 %v187
    %2332 = vmatprep.subr.mxu0 0.0
    %2333 = vmatpush1.msra.mxu0 0.0
    %2334 = vmatprep.subr.mxu0 0.0
    %2335 = vmatpush1.msra.mxu0 0.0
    %2336 = vmatprep.subr.mxu0 0.0
    %2337 = vmatpush1.msra.mxu0 0.0
    %2338 = vmatprep.subr.mxu0 0.0
    %2339 = vmatpush1.msra.mxu0 0.0
    %2340 = vmatprep.subr.mxu0 0.0
    %2341 = vmatpush1.msra.mxu0 0.0
    %2342 = vmatprep.subr.mxu0 0.0
    %2343 = vmatpush1.msra.mxu0 0.0
    %2344 = vmatprep.subr.mxu0 0.0
    %2345 = vmatpush1.msra.mxu0 0.0
    %2346 = vmatprep.subr.mxu0 0.0
    %2347 = vmatpush1.msra.mxu0 0.0
    %2348 = vmatprep.subr.mxu0 0.0
    %2349 = vmatpush1.msra.mxu0 0.0
    %2350 = vmatprep.subr.mxu0 0.0
    %2351 = vmatpush1.msra.mxu0 0.0
    %2352 = vmatprep.subr.mxu0 0.0
    %2353 = vmatpush1.msra.mxu0 0.0
    %2354 = vmatprep.subr.mxu0 0.0
    %2355 = vmatpush1.msra.mxu0 0.0
    %2356 = vmatprep.subr.mxu0 0.0
    %2357 = vmatpush1.msra.mxu0 0.0
    %2358 = vmatprep.subr.mxu0 0.0
    %2359 = vmatpush1.msra.mxu0 0.0
    %2360 = vmatprep.subr.mxu0 0.0
    %2361 = vmatpush1.msra.mxu0 0.0
    %2362 = vmatprep.subr.mxu0 0.0
    %2363 = vmatpush1.msra.mxu0 0.0
    %2364 = vmatprep.subr.mxu0 0.0
    %2365 = vmatpush1.msra.mxu0 0.0
    %2366 = vmatprep.subr.mxu0 0.0
    %2367 = vmatpush1.msra.mxu0 0.0
    %2368 = vmatprep.subr.mxu0 0.0
    %2369 = vmatpush1.msra.mxu0 0.0
    %2370 = vmatprep.subr.mxu0 0.0
    %2371 = vmatpush1.msra.mxu0 0.0
    %2372 = vmatprep.subr.mxu0 0.0
    %2373 = vmatpush1.msra.mxu0 0.0
    %2374 = vmatprep.subr.mxu0 0.0
    %2375 = vmatpush1.msra.mxu0 0.0
    %2376 = vmatprep.subr.mxu0 0.0
    %2377 = vmatpush1.msra.mxu0 0.0
    %2378 = vmatprep.subr.mxu0 0.0
    %2379 = vmatpush1.msra.mxu0 0.0
    %2380 = vmatprep.subr.mxu0 0.0
    %2381 = vmatpush1.msra.mxu0 0.0
    %2382 = vmatprep.subr.mxu0 0.0
    %2383 = vmatpush1.msra.mxu0 0.0
    %2384 = vmatprep.subr.mxu0 0.0
    %2385 = vmatpush1.msra.mxu0 0.0
    %2386 = vmatprep.subr.mxu0 0.0
    %2387 = vmatpush1.msra.mxu0 0.0
    %2388 = vmatprep.mubr.f32.mxu0 0.0
    %2389 = vmatmul.mubr.f32.gmra.mrb[0].mxu0 %v2319
    %v2390 = vpop.f32.mrb[0].mxu0
    %v2391 = vadd.f32 0.0, %v2390
    %v2392 = vpop.f32.mrb[0].mxu0
    %2393 = vmatprep.mubr.f32.mxu0 0.0
    %2394 = vmatmul.mubr.f32.gmra.mrb[0].mxu0 %v2322
    %v2395 = vpop.f32.mrb[0].mxu0
    %v2396 = vadd.f32 0.0, %v2395
    %v2397 = vpop.f32.mrb[0].mxu0
    %2398 = vdwg.mxu0
    %2399 = vmatprep.subr.mxu0 0.0
    %2400 = vmatpush1.msra.mxu0 %v188
    %2401 = vmatprep.subr.mxu0 0.0
    %2402 = vmatpush1.msra.mxu0 %v189
    %2403 = vmatprep.subr.mxu0 0.0
    %2404 = vmatpush1.msra.mxu0 %v190
    %2405 = vmatprep.subr.mxu0 0.0
    %2406 = vmatpush1.msra.mxu0 %v191
    %2407 = vmatprep.subr.mxu0 0.0
    %2408 = vmatpush1.msra.mxu0 0.0
    %2409 = vmatprep.subr.mxu0 0.0
    %2410 = vmatpush1.msra.mxu0 0.0
    %2411 = vmatprep.subr.mxu0 0.0
    %2412 = vmatpush1.msra.mxu0 0.0
    %2413 = vmatprep.subr.mxu0 0.0
    %2414 = vmatpush1.msra.mxu0 0.0
    %2415 = vmatprep.subr.mxu0 0.0
    %2416 = vmatpush1.msra.mxu0 0.0
    %2417 = vmatprep.subr.mxu0 0.0
    %2418 = vmatpush1.msra.mxu0 0.0
    %2419 = vmatprep.subr.mxu0 0.0
    %2420 = vmatpush1.msra.mxu0 0.0
    %2421 = vmatprep.subr.mxu0 0.0
    %2422 = vmatpush1.msra.mxu0 0.0
    %2423 = vmatprep.subr.mxu0 0.0
    %2424 = vmatpush1.msra.mxu0 0.0
    %2425 = vmatprep.subr.mxu0 0.0
    %2426 = vmatpush1.msra.mxu0 0.0
    %2427 = vmatprep.subr.mxu0 0.0
    %2428 = vmatpush1.msra.mxu0 0.0
    %2429 = vmatprep.subr.mxu0 0.0
    %2430 = vmatpush1.msra.mxu0 0.0
    %2431 = vmatprep.subr.mxu0 0.0
    %2432 = vmatpush1.msra.mxu0 0.0
    %2433 = vmatprep.subr.mxu0 0.0
    %2434 = vmatpush1.msra.mxu0 0.0
    %2435 = vmatprep.subr.mxu0 0.0
    %2436 = vmatpush1.msra.mxu0 0.0
    %2437 = vmatprep.subr.mxu0 0.0
    %2438 = vmatpush1.msra.mxu0 0.0
    %2439 = vmatprep.subr.mxu0 0.0
    %2440 = vmatpush1.msra.mxu0 0.0
    %2441 = vmatprep.subr.mxu0 0.0
    %2442 = vmatpush1.msra.mxu0 0.0
    %2443 = vmatprep.subr.mxu0 0.0
    %2444 = vmatpush1.msra.mxu0 0.0
    %2445 = vmatprep.subr.mxu0 0.0
    %2446 = vmatpush1.msra.mxu0 0.0
    %2447 = vmatprep.subr.mxu0 0.0
    %2448 = vmatpush1.msra.mxu0 0.0
    %2449 = vmatprep.subr.mxu0 0.0
    %2450 = vmatpush1.msra.mxu0 0.0
    %2451 = vmatprep.subr.mxu0 0.0
    %2452 = vmatpush1.msra.mxu0 0.0
    %2453 = vmatprep.subr.mxu0 0.0
    %2454 = vmatpush1.msra.mxu0 0.0
    %2455 = vmatprep.subr.mxu0 0.0
    %2456 = vmatpush1.msra.mxu0 0.0
    %2457 = vmatprep.subr.mxu0 0.0
    %2458 = vmatpush1.msra.mxu0 0.0
    %2459 = vmatprep.subr.mxu0 0.0
    %2460 = vmatpush1.msra.mxu0 0.0
    %2461 = vmatprep.subr.mxu0 0.0
    %2462 = vmatpush1.msra.mxu0 0.0
    %2463 = vmatprep.mubr.f32.mxu0 0.0
    %2464 = vmatmul.mubr.f32.gmra.mrb[0].mxu0 %v2319
    %v2465 = vpop.f32.mrb[0].mxu0
    %v2466 = vadd.f32 0.0, %v2465
    %v2467 = vpop.f32.mrb[0].mxu0
    %2468 = vmatprep.mubr.f32.mxu0 0.0
    %2469 = vmatmul.mubr.f32.gmra.mrb[0].mxu0 %v2322
    %v2470 = vpop.f32.mrb[0].mxu0
    %v2471 = vadd.f32 0.0, %v2470
    %v2472 = vpop.f32.mrb[0].mxu0
    %2473 = vdwg.mxu0
    %2475 = vset.pattern.permute.xlu0 0
    %2476 = vperm.xlu0 %2475, %v2466
    %v2477 = vpop.permute.xlu0 %2476
    %2480 = vset.pattern.permute.xlu0 0
    %2481 = vperm.xlu0 %2480, %v2471
    %v2482 = vpop.permute.xlu0 %2481
    %v2484 = vmul.f32 %v137, %v2477
    %v2485 = vmul.f32 %v138, %v2482
    %v2486 = vsel %vm199, %v2484, 0.0
    %v2487 = vsel %vm199, %v2485, 0.0
    %v2488 = vadd.f32 %v2486, %v2487
    %v2489 = vrot.slane %v2488, 4
    %v2490 = vadd.f32 %v2488, %v2489
    %v2491 = vrot.slane %v2490, 2
    %v2492 = vadd.f32 %v2490, %v2491
    %v2493 = vrot.slane %v2492, 1
    %v2494 = vadd.f32 %v2492, %v2493
    %2496 = vset.pattern.permute.xlu0 0
    %2497 = vperm.xlu0 %2496, %v2391
    %v2498 = vpop.permute.xlu0 %2497
    %2501 = vset.pattern.permute.xlu0 0
    %2502 = vperm.xlu0 %2501, %v2396
    %v2503 = vpop.permute.xlu0 %2502
    %v2505 = vadd.f32 %v2498, %v2494
    %v2506 = vadd.f32 %v2503, %v2494
    %v2508 = vlaneseq
    %v2509 = vshrl.u32 %v2508, 7
    %v2510 = vsub.s32 0, %v2509
    %v2511 = vrot.slane %v192, %v2510
    %2512 = vset.pattern.permute.xlu0 0
    %2513 = vperm.xlu0 %2512, %v2511
    %v2514 = vpop.permute.xlu0 %2513
    %v2516 = vadd.f32 %v2505, %v2514
    %v2517 = vadd.f32 %v2506, %v2514
    %vm2518 = vcmp.gt.f32.partialorder %v1973, 0.0
    %vm2519 = vcmp.gt.f32.partialorder %v1974, 0.0
    %v2520 = vsel %vm2518, %v2516, -1e+30
    %v2521 = vsel %vm2519, %v2517, -1e+30
    %v2522 = vsel %vm199, %v2520, -inf
    %v2523 = vsel %vm199, %v2521, -inf
    %v2524 = vmax.f32 %v2522, %v2523
    %v2525 = vrot.slane %v2524, 4
    %v2526 = vmax.f32 %v2524, %v2525
    %v2527 = vrot.slane %v2526, 2
    %v2528 = vmax.f32 %v2526, %v2527
    %v2529 = vrot.slane %v2528, 1
    %v2530 = vmax.f32 %v2528, %v2529
    %v2531 = vsub.f32 %v2520, %v2530
    %v2532 = vsub.f32 %v2521, %v2530
    %v2533 = vmul.f32 %v2531, 1.442695
    %v2534 = vpow.pop %v2533
    %v2535 = vmul.f32 %v2532, 1.442695
    %v2536 = vpow.pop %v2535
    %v2537 = vsel %vm2518, %v2534, 0.0
    %v2538 = vsel %vm2519, %v2536, 0.0
    %v2539 = vsel %vm199, %v2537, 0.0
    %v2540 = vsel %vm199, %v2538, 0.0
    %v2541 = vadd.f32 %v2539, %v2540
    %v2542 = vrot.slane %v2541, 4
    %v2543 = vadd.f32 %v2541, %v2542
    %v2544 = vrot.slane %v2543, 2
    %v2545 = vadd.f32 %v2543, %v2544
    %v2546 = vrot.slane %v2545, 1
    %v2547 = vadd.f32 %v2545, %v2546
    %v2548 = vadd.f32 %v2547, 1e-16
    %v2549 = vrcp.pop %v2548
    %v2550 = vmul.f32 %v2537, %v2549
    %v2551 = vmul.f32 %v2538, %v2549
    %v2552 = vadd.f32 %v2550, 0.5
    %v2553 = vadd.f32 %v2551, 0.5
    loop: start=0, step=1, limit=16
    $region128: #{edgenet_forward.1} parent=1 // loop_pre_header
      _
    $region129: #{edgenet_forward.1} parent=1 // loop_header
      %s2555 = sphi 0, %s2559
      %p2556 = scmp.ge.s32.totalorder %s2555, 16
      %v2560 = vphi %v1707, %v2639
      %v2561 = vphi %v1708, %v2640
      %v2562 = vphi %v1719, %v2650
      %v2563 = vphi 0.0, %v2619
      %v2564 = vphi 0.0, %v2620
    $region130: #{edgenet_forward.1} parent=1 // loop_header_branch
      %2558 = sbr.rel (%p2556) target = $region134
    $region131: #{edgenet_forward.1} parent=1 // loop_body
      %v2565 = vmul.f32 %v1973, %v2560
      %v2566 = vmul.f32 %v1974, %v2561
      %v2567 = vmul.f32 %v2565, %v2562
      %v2568 = vmul.f32 %v2566, %v2562
      %vm2569 = vcmp.gt.f32.partialorder %v2567, 0.0
      %vm2570 = vcmp.gt.f32.partialorder %v2568, 0.0
      %v2571 = vsel %vm2569, %v2552, -1e+30
      %v2572 = vsel %vm2570, %v2553, -1e+30
      %v2573 = vsel %vm199, %v2571, -inf
      %2574 = vmax.xlane.f32.xlu0 %v2573
      %v2575 = vpop.xlane.xlu0 %2574
      %v2576 = vsel %vm199, %v2572, -inf
      %2577 = vmax.xlane.f32.xlu0 %v2576
      %v2578 = vpop.xlane.xlu0 %2577
      %v2579 = vmax.f32 %v2575, %v2578
      %v2580 = vrot.slane %v2579, 4
      %v2581 = vmax.f32 %v2579, %v2580
      %v2582 = vrot.slane %v2581, 2
      %v2583 = vmax.f32 %v2581, %v2582
      %v2584 = vrot.slane %v2583, 1
      %v2585 = vmax.f32 %v2583, %v2584
      %vm2586 = vcmp.ge.f32.partialorder %v2571, %v2585
      %vm2587 = vcmp.ge.f32.partialorder %v2572, %v2585
      %vm2588 = vmand %vm2569, %vm2586
      %vm2589 = vmand %vm2570, %vm2587
      %v2590 = vsel %vm2588, %v144, 1e+09
      %v2591 = vsel %vm2589, %v145, 1e+09
      %v2592 = vsel %vm199, %v2590, inf
      %2593 = vmin.xlane.f32.xlu0 %v2592
      %v2594 = vpop.xlane.xlu0 %2593
      %v2595 = vsel %vm199, %v2591, inf
      %2596 = vmin.xlane.f32.xlu0 %v2595
      %v2597 = vpop.xlane.xlu0 %2596
      %v2598 = vmin.f32 %v2594, %v2597
      %v2599 = vrot.slane %v2598, 4
      %v2600 = vmin.f32 %v2598, %v2599
      %v2601 = vrot.slane %v2600, 2
      %v2602 = vmin.f32 %v2600, %v2601
      %v2603 = vrot.slane %v2602, 1
      %v2604 = vmin.f32 %v2602, %v2603
      %v2605 = vmul.f32 %v2604, 0.0625
      %v2606 = vfloor.f32 %v2605
      %v2607 = vmul.f32 %v2606, 16.0
      %v2608 = vsub.f32 %v2604, %v2607
      %vm2609 = vcmp.eq.f32.partialorder %v144, %v2604
      %vm2610 = vcmp.eq.f32.partialorder %v145, %v2604
      %vm2611 = vmand %vm2588, %vm2609
      %vm2612 = vmand %vm2589, %vm2610
      %v2613 = vsel %vm2611, 1, 0
      %v2614 = vsel %vm2612, 1, 0
      %v2615 = vcvt.s32.f32 %v2613
      %v2616 = vcvt.s32.f32 %v2614
      %v2617 = vmul.f32 %v2615, %v2552
      %v2618 = vmul.f32 %v2616, %v2553
      %v2619 = vadd.f32 %v2563, %v2617
      %v2620 = vadd.f32 %v2564, %v2618
      %vm2621 = vcmp.eq.f32.partialorder %v139, %v2606
      %vm2622 = vcmp.eq.f32.partialorder %v140, %v2606
      %v2623 = vsel %vm2621, 1, 0
      %v2624 = vsel %vm2622, 1, 0
      %v2625 = vcvt.s32.f32 %v2623
      %v2626 = vcvt.s32.f32 %v2624
      %v2627 = vsub.f32 1.0, %v2625
      %v2628 = vsub.f32 1.0, %v2626
      %v2629 = vmul.f32 %v2560, %v2627
      %v2630 = vmul.f32 %v2561, %v2628
      %vm2631 = vcmp.eq.f32.partialorder %v139, %v2608
      %vm2632 = vcmp.eq.f32.partialorder %v140, %v2608
      %v2633 = vsel %vm2631, 1, 0
      %v2634 = vsel %vm2632, 1, 0
      %v2635 = vcvt.s32.f32 %v2633
      %v2636 = vcvt.s32.f32 %v2634
      %v2637 = vsub.f32 1.0, %v2635
      %v2638 = vsub.f32 1.0, %v2636
      %v2639 = vmul.f32 %v2629, %v2637
      %v2640 = vmul.f32 %v2630, %v2638
      %vm2641 = vcmp.eq.f32.partialorder %v141, %v2606
      %v2642 = vsel %vm2641, 1, 0
      %v2643 = vcvt.s32.f32 %v2642
      %v2644 = vsub.f32 1.0, %v2643
      %v2645 = vmul.f32 %v2562, %v2644
      %vm2646 = vcmp.eq.f32.partialorder %v141, %v2608
      %v2647 = vsel %vm2646, 1, 0
      %v2648 = vcvt.s32.f32 %v2647
      %v2649 = vsub.f32 1.0, %v2648
      %v2650 = vmul.f32 %v2645, %v2649
    $region132: #{edgenet_forward.1} parent=1 // loop_footer
      %s2559 = sadd.s32 1, %s2555
    $region133: #{edgenet_forward.1} parent=1 // loop_footer_branch
      %2554 = sbr.rel target = $region129
    $region134: #{edgenet_forward.1} parent=1 // loop_exit
      _
    %vm2651 = vcmp.gt.f32.partialorder %v2563, 0.0
    %vm2652 = vcmp.gt.f32.partialorder %v2564, 0.0
    %v2653 = vsel %vm2651, 1, 0
    %v2654 = vsel %vm2652, 1, 0
    %v2655 = vcvt.s32.f32 %v2653
    %v2656 = vcvt.s32.f32 %v2654
    %v2657 = vmul.f32 %v2655, %v193
    %v2658 = vmul.f32 %v2656, %v194
    %v2659 = vsel %vm199, %v2655, -inf
    %2660 = vmax.xlane.f32.xlu0 %v2659
    %v2661 = vpop.xlane.xlu0 %2660
    %v2662 = vsel %vm199, %v2656, -inf
    %2663 = vmax.xlane.f32.xlu0 %v2662
    %v2664 = vpop.xlane.xlu0 %2663
    %v2665 = vmul.f32 %v1707, %v2560
    %v2666 = vmul.f32 %v1708, %v2561
    %v2667 = vadd.f32 %v2661, %v2665
    %v2668 = vadd.f32 %v2664, %v2666
    %v2669 = vmul.f32 %v137, %v2667
    %v2670 = vmul.f32 %v138, %v2668
    %v2671 = vsel %vm199, %v2669, 0.0
    %v2672 = vsel %vm199, %v2670, 0.0
    %v2673 = vadd.f32 %v2671, %v2672
    %v2674 = vrot.slane %v2673, 4
    %v2675 = vadd.f32 %v2673, %v2674
    %v2676 = vrot.slane %v2675, 2
    %v2677 = vadd.f32 %v2675, %v2676
    %v2678 = vrot.slane %v2677, 1
    %v2679 = vadd.f32 %v2677, %v2678
    %v2680 = vadd.f32 %v2669, %v2657
    %v2681 = vadd.f32 %v2670, %v2658
    %v2682 = vsel %vm199, %v2563, 0.0
    %2683 = vadd.xlane.f32.xlu0 %v2682
    %v2684 = vpop.xlane.xlu0 %2683
    %v2685 = vsel %vm199, %v2564, 0.0
    %2686 = vadd.xlane.f32.xlu0 %v2685
    %v2687 = vpop.xlane.xlu0 %2686
    %v2688 = vadd.f32 %v2684, %v2665
    %v2689 = vadd.f32 %v2687, %v2666
    %v2691 = vsel %vm199, %v2680, 0
    %v2694 = vsel %vm199, %v2681, 0
    %2696 = vmatprep.subr.mxu0 0.0
    %2697 = vmatpush1.msra.mxu0 %v2316
    %2698 = vmatprep.subr.mxu0 0.0
    %2699 = vmatpush1.msra.mxu0 %v2317
    %2700 = vmatprep.subr.mxu0 0.0
    %2701 = vmatpush1.msra.mxu0 0.0
    %2702 = vmatprep.subr.mxu0 0.0
    %2703 = vmatpush1.msra.mxu0 0.0
    %2704 = vmatprep.subr.mxu0 0.0
    %2705 = vmatpush1.msra.mxu0 0.0
    %2706 = vmatprep.subr.mxu0 0.0
    %2707 = vmatpush1.msra.mxu0 0.0
    %2708 = vmatprep.subr.mxu0 0.0
    %2709 = vmatpush1.msra.mxu0 0.0
    %2710 = vmatprep.subr.mxu0 0.0
    %2711 = vmatpush1.msra.mxu0 0.0
    %2712 = vmatprep.subr.mxu0 0.0
    %2713 = vmatpush1.msra.mxu0 0.0
    %2714 = vmatprep.subr.mxu0 0.0
    %2715 = vmatpush1.msra.mxu0 0.0
    %2716 = vmatprep.subr.mxu0 0.0
    %2717 = vmatpush1.msra.mxu0 0.0
    %2718 = vmatprep.subr.mxu0 0.0
    %2719 = vmatpush1.msra.mxu0 0.0
    %2720 = vmatprep.subr.mxu0 0.0
    %2721 = vmatpush1.msra.mxu0 0.0
    %2722 = vmatprep.subr.mxu0 0.0
    %2723 = vmatpush1.msra.mxu0 0.0
    %2724 = vmatprep.subr.mxu0 0.0
    %2725 = vmatpush1.msra.mxu0 0.0
    %2726 = vmatprep.subr.mxu0 0.0
    %2727 = vmatpush1.msra.mxu0 0.0
    %2728 = vmatprep.subr.mxu0 0.0
    %2729 = vmatpush1.msra.mxu0 0.0
    %2730 = vmatprep.subr.mxu0 0.0
    %2731 = vmatpush1.msra.mxu0 0.0
    %2732 = vmatprep.subr.mxu0 0.0
    %2733 = vmatpush1.msra.mxu0 0.0
    %2734 = vmatprep.subr.mxu0 0.0
    %2735 = vmatpush1.msra.mxu0 0.0
    %2736 = vmatprep.subr.mxu0 0.0
    %2737 = vmatpush1.msra.mxu0 0.0
    %2738 = vmatprep.subr.mxu0 0.0
    %2739 = vmatpush1.msra.mxu0 0.0
    %2740 = vmatprep.subr.mxu0 0.0
    %2741 = vmatpush1.msra.mxu0 0.0
    %2742 = vmatprep.subr.mxu0 0.0
    %2743 = vmatpush1.msra.mxu0 0.0
    %2744 = vmatprep.subr.mxu0 0.0
    %2745 = vmatpush1.msra.mxu0 0.0
    %2746 = vmatprep.subr.mxu0 0.0
    %2747 = vmatpush1.msra.mxu0 0.0
    %2748 = vmatprep.subr.mxu0 0.0
    %2749 = vmatpush1.msra.mxu0 0.0
    %2750 = vmatprep.subr.mxu0 0.0
    %2751 = vmatpush1.msra.mxu0 0.0
    %2752 = vmatprep.subr.mxu0 0.0
    %2753 = vmatpush1.msra.mxu0 0.0
    %2754 = vmatprep.subr.mxu0 0.0
    %2755 = vmatpush1.msra.mxu0 0.0
    %2756 = vmatprep.subr.mxu0 0.0
    %2757 = vmatpush1.msra.mxu0 0.0
    %2758 = vmatprep.subr.mxu0 0.0
    %2759 = vmatpush1.msra.mxu0 0.0
    %2760 = vmatprep.mubr.f32.mxu0 0.0
    %2761 = vmatmul.mubr.f32.gmra.mrb[0].mxu0 %v2691
    %v2762 = vpop.f32.mrb[0].mxu0
    %v2763 = vadd.f32 0.0, %v2762
    %v2764 = vpop.f32.mrb[0].mxu0
    %2765 = vmatprep.mubr.f32.mxu0 0.0
    %2766 = vmatmul.mubr.f32.gmra.mrb[0].mxu0 %v2694
    %v2767 = vpop.f32.mrb[0].mxu0
    %v2768 = vadd.f32 0.0, %v2767
    %v2769 = vpop.f32.mrb[0].mxu0
    %2770 = vdwg.mxu0
    %v2771 = vmul.f32 %v2763, %v2688
    %v2772 = vmul.f32 %v2768, %v2689
    %v2773 = vmul.f32 %v152, %v2679
    %v2774 = vsel %vm1014, %v2773, 0.0
    %2775 = vadd.xlane.f32.xlu0 %v2774
    %v2776 = vpop.xlane.xlu0 %2775
    %vm2777 = vcmp.gt.f32.partialorder %v2776, 0.0
    %v2778 = vmax.f32 %v2776, 1.0
    %v2779 = vrcp.pop %v2778
    %v2780 = vmul.f32 1.0, %v2779
    %v2781 = vsel %vm2777, %v2780, 0.0
    %v2783 = vsel %vm199, %v2773, 0
    %2785 = vmatprep.subr.mxu0 0.0
    %2786 = vmatpush1.msra.mxu0 %v2771
    %2787 = vmatprep.subr.mxu0 0.0
    %2788 = vmatpush1.msra.mxu0 %v2772
    %2789 = vmatprep.subr.mxu0 0.0
    %2790 = vmatpush1.msra.mxu0 0.0
    %2791 = vmatprep.subr.mxu0 0.0
    %2792 = vmatpush1.msra.mxu0 0.0
    %2793 = vmatprep.subr.mxu0 0.0
    %2794 = vmatpush1.msra.mxu0 0.0
    %2795 = vmatprep.subr.mxu0 0.0
    %2796 = vmatpush1.msra.mxu0 0.0
    %2797 = vmatprep.subr.mxu0 0.0
    %2798 = vmatpush1.msra.mxu0 0.0
    %2799 = vmatprep.subr.mxu0 0.0
    %2800 = vmatpush1.msra.mxu0 0.0
    %2801 = vmatprep.subr.mxu0 0.0
    %2802 = vmatpush1.msra.mxu0 0.0
    %2803 = vmatprep.subr.mxu0 0.0
    %2804 = vmatpush1.msra.mxu0 0.0
    %2805 = vmatprep.subr.mxu0 0.0
    %2806 = vmatpush1.msra.mxu0 0.0
    %2807 = vmatprep.subr.mxu0 0.0
    %2808 = vmatpush1.msra.mxu0 0.0
    %2809 = vmatprep.subr.mxu0 0.0
    %2810 = vmatpush1.msra.mxu0 0.0
    %2811 = vmatprep.subr.mxu0 0.0
    %2812 = vmatpush1.msra.mxu0 0.0
    %2813 = vmatprep.subr.mxu0 0.0
    %2814 = vmatpush1.msra.mxu0 0.0
    %2815 = vmatprep.subr.mxu0 0.0
    %2816 = vmatpush1.msra.mxu0 0.0
    %2817 = vmatprep.subr.mxu0 0.0
    %2818 = vmatpush1.msra.mxu0 0.0
    %2819 = vmatprep.subr.mxu0 0.0
    %2820 = vmatpush1.msra.mxu0 0.0
    %2821 = vmatprep.subr.mxu0 0.0
    %2822 = vmatpush1.msra.mxu0 0.0
    %2823 = vmatprep.subr.mxu0 0.0
    %2824 = vmatpush1.msra.mxu0 0.0
    %2825 = vmatprep.subr.mxu0 0.0
    %2826 = vmatpush1.msra.mxu0 0.0
    %2827 = vmatprep.subr.mxu0 0.0
    %2828 = vmatpush1.msra.mxu0 0.0
    %2829 = vmatprep.subr.mxu0 0.0
    %2830 = vmatpush1.msra.mxu0 0.0
    %2831 = vmatprep.subr.mxu0 0.0
    %2832 = vmatpush1.msra.mxu0 0.0
    %2833 = vmatprep.subr.mxu0 0.0
    %2834 = vmatpush1.msra.mxu0 0.0
    %2835 = vmatprep.subr.mxu0 0.0
    %2836 = vmatpush1.msra.mxu0 0.0
    %2837 = vmatprep.subr.mxu0 0.0
    %2838 = vmatpush1.msra.mxu0 0.0
    %2839 = vmatprep.subr.mxu0 0.0
    %2840 = vmatpush1.msra.mxu0 0.0
    %2841 = vmatprep.subr.mxu0 0.0
    %2842 = vmatpush1.msra.mxu0 0.0
    %2843 = vmatprep.subr.mxu0 0.0
    %2844 = vmatpush1.msra.mxu0 0.0
    %2845 = vmatprep.subr.mxu0 0.0
    %2846 = vmatpush1.msra.mxu0 0.0
    %2847 = vmatprep.subr.mxu0 0.0
    %2848 = vmatpush1.msra.mxu0 0.0
    %2849 = vmatprep.mubr.f32.mxu0 0.0
    %2850 = vmatmul.mubr.f32.gmra.mrb[0].mxu0 %v2783
    %v2851 = vpop.f32.mrb[0].mxu0
    %v2852 = vadd.f32 0.0, %v2851
    %v2853 = vpop.f32.mrb[0].mxu0
    %2854 = vdwg.mxu0
    %v2855 = vmul.f32 %v2852, %v2781
    %v2856 = vmul.f32 %v150, %v2667
    %v2857 = vmul.f32 %v151, %v2668
    %vm2858 = vcmp.gt.f32.partialorder %v2856, 0.0
    %vm2859 = vcmp.gt.f32.partialorder %v2857, 0.0
    %v2860 = vsel %vm2858, 1, 0
    %v2861 = vsel %vm2859, 1, 0
    %2862 = vset.pattern.permute.xlu0 0
    %2863 = vperm.xlu0 %2862, %v2860
    %v2864 = vpop.permute.xlu0 %2863
    %2865 = vset.pattern.permute.xlu0 0
    %2866 = vperm.xlu0 %2865, %v2861
    %v2867 = vpop.permute.xlu0 %2866
    %vm2868 = vcmp.eq.s32.totalorder %v2864, 1
    %vm2869 = vcmp.eq.s32.totalorder %v2867, 1
    %v2870 = vsel %vm2868, %v2771, -1e+30
    %v2871 = vsel %vm2869, %v2772, -1e+30
    %v2872 = vsel %vm397, %v2870, -inf
    %v2873 = vsel %vm397, %v2871, -inf
    %v2874 = vmax.f32 %v2872, %v2873
    %v2875 = vrot.slane %v2874, 4
    %v2876 = vmax.f32 %v2874, %v2875
    %v2877 = vrot.slane %v2876, 2
    %v2878 = vmax.f32 %v2876, %v2877
    %v2879 = vrot.slane %v2878, 1
    %v2880 = vmax.f32 %v2878, %v2879
    %v2881 = vsel %vm2777, 1, 0
    %vm2882 = vcmp.eq.s32.totalorder %v2881, 1
    %v2883 = vsel %vm2882, %v2880, 0.0
    %2884 = vset.pattern.permute.xlu0 1
    %2885 = vperm.xlu0 %2884, %v2860
    %v2886 = vpop.permute.xlu0 %2885
    %2887 = vset.pattern.permute.xlu0 1
    %2888 = vperm.xlu0 %2887, %v2861
    %v2889 = vpop.permute.xlu0 %2888
    %vm2890 = vcmp.eq.s32.totalorder %v2886, 1
    %vm2891 = vcmp.eq.s32.totalorder %v2889, 1
    %v2892 = vsel %vm2890, %v2771, -1e+30
    %v2893 = vsel %vm2891, %v2772, -1e+30
    %v2894 = vsel %vm397, %v2892, -inf
    %v2895 = vsel %vm397, %v2893, -inf
    %v2896 = vmax.f32 %v2894, %v2895
    %v2897 = vrot.slane %v2896, 4
    %v2898 = vmax.f32 %v2896, %v2897
    %v2899 = vrot.slane %v2898, 2
    %v2900 = vmax.f32 %v2898, %v2899
    %v2901 = vrot.slane %v2900, 1
    %v2902 = vmax.f32 %v2900, %v2901
    %v2903 = vsel %vm2882, %v2902, 0.0
    %v2904 = vsel %vm1145, %v2883, %v2903
    %2906 = vrot.lane.b32.xlu0 %v2855, 32
    %v2907 = vpop.permute.xlu0 %2906
    %v2909 = vsel %vm397, %v2904, %v2907
    %v2910 = vadd.f32 %v2112, %v2909
    %v2911 = vld [vmem:[%s19] sm:$0xff]
    %v2912 = vld [vmem:[%s19 + $0x8] sm:$0xff]
    %v2913 = vld [vmem:[%s19 + $0x10] sm:$0xff]
    %v2914 = vld [vmem:[%s19 + $0x18] sm:$0xff]
    %v2915 = vld [vmem:[%s19 + $0x20] sm:$0xff]
    %v2916 = vld [vmem:[%s19 + $0x28] sm:$0xff]
    %v2917 = vld [vmem:[%s19 + $0x30] sm:$0xff]
    %v2918 = vld [vmem:[%s19 + $0x38] sm:$0xff]
    %v2919 = vld [vmem:[%s20] sm:$0x1]
    %v2921 = vlaneseq
    %v2922 = vshrl.u32 %v2921, 7
    %v2923 = vsub.s32 0, %v2922
    %v2924 = vrot.slane %v2919, %v2923
    %vm2926 = vcmask 523264
    %v2928 = vsel %vm2926, %v2910, 0
    %2930 = vmatprep.subr.mxu0 0.0
    %2931 = vmatpush1.msra.mxu0 %v2911
    %2932 = vmatprep.subr.mxu0 0.0
    %2933 = vmatpush1.msra.mxu0 %v2912
    %2934 = vmatprep.subr.mxu0 0.0
    %2935 = vmatpush1.msra.mxu0 %v2913
    %2936 = vmatprep.subr.mxu0 0.0
    %2937 = vmatpush1.msra.mxu0 %v2914
    %2938 = vmatprep.subr.mxu0 0.0
    %2939 = vmatpush1.msra.mxu0 %v2915
    %2940 = vmatprep.subr.mxu0 0.0
    %2941 = vmatpush1.msra.mxu0 %v2916
    %2942 = vmatprep.subr.mxu0 0.0
    %2943 = vmatpush1.msra.mxu0 %v2917
    %2944 = vmatprep.subr.mxu0 0.0
    %2945 = vmatpush1.msra.mxu0 %v2918
    %2946 = vmatprep.subr.mxu0 0.0
    %2947 = vmatpush1.msra.mxu0 0.0
    %2948 = vmatprep.subr.mxu0 0.0
    %2949 = vmatpush1.msra.mxu0 0.0
    %2950 = vmatprep.subr.mxu0 0.0
    %2951 = vmatpush1.msra.mxu0 0.0
    %2952 = vmatprep.subr.mxu0 0.0
    %2953 = vmatpush1.msra.mxu0 0.0
    %2954 = vmatprep.subr.mxu0 0.0
    %2955 = vmatpush1.msra.mxu0 0.0
    %2956 = vmatprep.subr.mxu0 0.0
    %2957 = vmatpush1.msra.mxu0 0.0
    %2958 = vmatprep.subr.mxu0 0.0
    %2959 = vmatpush1.msra.mxu0 0.0
    %2960 = vmatprep.subr.mxu0 0.0
    %2961 = vmatpush1.msra.mxu0 0.0
    %2962 = vmatprep.subr.mxu0 0.0
    %2963 = vmatpush1.msra.mxu0 0.0
    %2964 = vmatprep.subr.mxu0 0.0
    %2965 = vmatpush1.msra.mxu0 0.0
    %2966 = vmatprep.subr.mxu0 0.0
    %2967 = vmatpush1.msra.mxu0 0.0
    %2968 = vmatprep.subr.mxu0 0.0
    %2969 = vmatpush1.msra.mxu0 0.0
    %2970 = vmatprep.subr.mxu0 0.0
    %2971 = vmatpush1.msra.mxu0 0.0
    %2972 = vmatprep.subr.mxu0 0.0
    %2973 = vmatpush1.msra.mxu0 0.0
    %2974 = vmatprep.subr.mxu0 0.0
    %2975 = vmatpush1.msra.mxu0 0.0
    %2976 = vmatprep.subr.mxu0 0.0
    %2977 = vmatpush1.msra.mxu0 0.0
    %2978 = vmatprep.subr.mxu0 0.0
    %2979 = vmatpush1.msra.mxu0 0.0
    %2980 = vmatprep.subr.mxu0 0.0
    %2981 = vmatpush1.msra.mxu0 0.0
    %2982 = vmatprep.subr.mxu0 0.0
    %2983 = vmatpush1.msra.mxu0 0.0
    %2984 = vmatprep.subr.mxu0 0.0
    %2985 = vmatpush1.msra.mxu0 0.0
    %2986 = vmatprep.subr.mxu0 0.0
    %2987 = vmatpush1.msra.mxu0 0.0
    %2988 = vmatprep.subr.mxu0 0.0
    %2989 = vmatpush1.msra.mxu0 0.0
    %2990 = vmatprep.subr.mxu0 0.0
    %2991 = vmatpush1.msra.mxu0 0.0
    %2992 = vmatprep.subr.mxu0 0.0
    %2993 = vmatpush1.msra.mxu0 0.0
    %2994 = vmatprep.mubr.f32.mxu0 0.0
    %2995 = vmatmul.mubr.f32.gmra.mrb[0].mxu0 %v2928
    %v2996 = vpop.f32.mrb[0].mxu0
    %v2997 = vadd.f32 %v2924, %v2996
    %v2998 = vpop.f32.mrb[0].mxu0
    %2999 = vdwg.mxu0
    %v3000 = vmax.f32 %v2997, 0.0
    %v3001 = vld [vmem:[%s21] sm:$0xff]
    %v3002 = vld [vmem:[%s21 + $0x8] sm:$0xff]
    %v3003 = vld [vmem:[%s21 + $0x10] sm:$0xff]
    %v3004 = vld [vmem:[%s21 + $0x18] sm:$0xff]
    %v3005 = vld [vmem:[%s22] sm:$0x1]
    %v3007 = vlaneseq
    %v3008 = vshrl.u32 %v3007, 7
    %v3009 = vsub.s32 0, %v3008
    %v3010 = vrot.slane %v3005, %v3009
    %v3013 = vsel %vm397, %v3000, 0
    %3015 = vmatprep.subr.mxu0 0.0
    %3016 = vmatpush1.msra.mxu0 %v3001
    %3017 = vmatprep.subr.mxu0 0.0
    %3018 = vmatpush1.msra.mxu0 %v3002
    %3019 = vmatprep.subr.mxu0 0.0
    %3020 = vmatpush1.msra.mxu0 %v3003
    %3021 = vmatprep.subr.mxu0 0.0
    %3022 = vmatpush1.msra.mxu0 %v3004
    %3023 = vmatprep.subr.mxu0 0.0
    %3024 = vmatpush1.msra.mxu0 0.0
    %3025 = vmatprep.subr.mxu0 0.0
    %3026 = vmatpush1.msra.mxu0 0.0
    %3027 = vmatprep.subr.mxu0 0.0
    %3028 = vmatpush1.msra.mxu0 0.0
    %3029 = vmatprep.subr.mxu0 0.0
    %3030 = vmatpush1.msra.mxu0 0.0
    %3031 = vmatprep.subr.mxu0 0.0
    %3032 = vmatpush1.msra.mxu0 0.0
    %3033 = vmatprep.subr.mxu0 0.0
    %3034 = vmatpush1.msra.mxu0 0.0
    %3035 = vmatprep.subr.mxu0 0.0
    %3036 = vmatpush1.msra.mxu0 0.0
    %3037 = vmatprep.subr.mxu0 0.0
    %3038 = vmatpush1.msra.mxu0 0.0
    %3039 = vmatprep.subr.mxu0 0.0
    %3040 = vmatpush1.msra.mxu0 0.0
    %3041 = vmatprep.subr.mxu0 0.0
    %3042 = vmatpush1.msra.mxu0 0.0
    %3043 = vmatprep.subr.mxu0 0.0
    %3044 = vmatpush1.msra.mxu0 0.0
    %3045 = vmatprep.subr.mxu0 0.0
    %3046 = vmatpush1.msra.mxu0 0.0
    %3047 = vmatprep.subr.mxu0 0.0
    %3048 = vmatpush1.msra.mxu0 0.0
    %3049 = vmatprep.subr.mxu0 0.0
    %3050 = vmatpush1.msra.mxu0 0.0
    %3051 = vmatprep.subr.mxu0 0.0
    %3052 = vmatpush1.msra.mxu0 0.0
    %3053 = vmatprep.subr.mxu0 0.0
    %3054 = vmatpush1.msra.mxu0 0.0
    %3055 = vmatprep.subr.mxu0 0.0
    %3056 = vmatpush1.msra.mxu0 0.0
    %3057 = vmatprep.subr.mxu0 0.0
    %3058 = vmatpush1.msra.mxu0 0.0
    %3059 = vmatprep.subr.mxu0 0.0
    %3060 = vmatpush1.msra.mxu0 0.0
    %3061 = vmatprep.subr.mxu0 0.0
    %3062 = vmatpush1.msra.mxu0 0.0
    %3063 = vmatprep.subr.mxu0 0.0
    %3064 = vmatpush1.msra.mxu0 0.0
    %3065 = vmatprep.subr.mxu0 0.0
    %3066 = vmatpush1.msra.mxu0 0.0
    %3067 = vmatprep.subr.mxu0 0.0
    %3068 = vmatpush1.msra.mxu0 0.0
    %3069 = vmatprep.subr.mxu0 0.0
    %3070 = vmatpush1.msra.mxu0 0.0
    %3071 = vmatprep.subr.mxu0 0.0
    %3072 = vmatpush1.msra.mxu0 0.0
    %3073 = vmatprep.subr.mxu0 0.0
    %3074 = vmatpush1.msra.mxu0 0.0
    %3075 = vmatprep.subr.mxu0 0.0
    %3076 = vmatpush1.msra.mxu0 0.0
    %3077 = vmatprep.subr.mxu0 0.0
    %3078 = vmatpush1.msra.mxu0 0.0
    %3079 = vmatprep.mubr.f32.mxu0 0.0
    %3080 = vmatmul.mubr.f32.gmra.mrb[0].mxu0 %v3013
    %v3081 = vpop.f32.mrb[0].mxu0
    %v3082 = vadd.f32 %v3010, %v3081
    %v3083 = vpop.f32.mrb[0].mxu0
    %3084 = vdwg.mxu0
    %v3085 = vmax.f32 %v3082, 0.0
    %v3086 = vld [vmem:[%s23] sm:$0xff]
    %v3087 = vld [vmem:[%s23 + $0x8] sm:$0xff]
    %v3088 = vld [vmem:[%s24] sm:$0x1]
    %v3090 = vlaneseq
    %v3091 = vshrl.u32 %v3090, 7
    %v3092 = vsub.s32 0, %v3091
    %v3093 = vrot.slane %v3088, %v3092
    %v3096 = vsel %vm199, %v3085, 0
    %3098 = vmatprep.subr.mxu0 0.0
    %3099 = vmatpush1.msra.mxu0 %v3086
    %3100 = vmatprep.subr.mxu0 0.0
    %3101 = vmatpush1.msra.mxu0 %v3087
    %3102 = vmatprep.subr.mxu0 0.0
    %3103 = vmatpush1.msra.mxu0 0.0
    %3104 = vmatprep.subr.mxu0 0.0
    %3105 = vmatpush1.msra.mxu0 0.0
    %3106 = vmatprep.subr.mxu0 0.0
    %3107 = vmatpush1.msra.mxu0 0.0
    %3108 = vmatprep.subr.mxu0 0.0
    %3109 = vmatpush1.msra.mxu0 0.0
    %3110 = vmatprep.subr.mxu0 0.0
    %3111 = vmatpush1.msra.mxu0 0.0
    %3112 = vmatprep.subr.mxu0 0.0
    %3113 = vmatpush1.msra.mxu0 0.0
    %3114 = vmatprep.subr.mxu0 0.0
    %3115 = vmatpush1.msra.mxu0 0.0
    %3116 = vmatprep.subr.mxu0 0.0
    %3117 = vmatpush1.msra.mxu0 0.0
    %3118 = vmatprep.subr.mxu0 0.0
    %3119 = vmatpush1.msra.mxu0 0.0
    %3120 = vmatprep.subr.mxu0 0.0
    %3121 = vmatpush1.msra.mxu0 0.0
    %3122 = vmatprep.subr.mxu0 0.0
    %3123 = vmatpush1.msra.mxu0 0.0
    %3124 = vmatprep.subr.mxu0 0.0
    %3125 = vmatpush1.msra.mxu0 0.0
    %3126 = vmatprep.subr.mxu0 0.0
    %3127 = vmatpush1.msra.mxu0 0.0
    %3128 = vmatprep.subr.mxu0 0.0
    %3129 = vmatpush1.msra.mxu0 0.0
    %3130 = vmatprep.subr.mxu0 0.0
    %3131 = vmatpush1.msra.mxu0 0.0
    %3132 = vmatprep.subr.mxu0 0.0
    %3133 = vmatpush1.msra.mxu0 0.0
    %3134 = vmatprep.subr.mxu0 0.0
    %3135 = vmatpush1.msra.mxu0 0.0
    %3136 = vmatprep.subr.mxu0 0.0
    %3137 = vmatpush1.msra.mxu0 0.0
    %3138 = vmatprep.subr.mxu0 0.0
    %3139 = vmatpush1.msra.mxu0 0.0
    %3140 = vmatprep.subr.mxu0 0.0
    %3141 = vmatpush1.msra.mxu0 0.0
    %3142 = vmatprep.subr.mxu0 0.0
    %3143 = vmatpush1.msra.mxu0 0.0
    %3144 = vmatprep.subr.mxu0 0.0
    %3145 = vmatpush1.msra.mxu0 0.0
    %3146 = vmatprep.subr.mxu0 0.0
    %3147 = vmatpush1.msra.mxu0 0.0
    %3148 = vmatprep.subr.mxu0 0.0
    %3149 = vmatpush1.msra.mxu0 0.0
    %3150 = vmatprep.subr.mxu0 0.0
    %3151 = vmatpush1.msra.mxu0 0.0
    %3152 = vmatprep.subr.mxu0 0.0
    %3153 = vmatpush1.msra.mxu0 0.0
    %3154 = vmatprep.subr.mxu0 0.0
    %3155 = vmatpush1.msra.mxu0 0.0
    %3156 = vmatprep.subr.mxu0 0.0
    %3157 = vmatpush1.msra.mxu0 0.0
    %3158 = vmatprep.subr.mxu0 0.0
    %3159 = vmatpush1.msra.mxu0 0.0
    %3160 = vmatprep.subr.mxu0 0.0
    %3161 = vmatpush1.msra.mxu0 0.0
    %3162 = vmatprep.mubr.f32.mxu0 0.0
    %3163 = vmatmul.mubr.f32.gmra.mrb[0].mxu0 %v3096
    %v3164 = vpop.f32.mrb[0].mxu0
    %v3165 = vadd.f32 %v3093, %v3164
    %v3166 = vpop.f32.mrb[0].mxu0
    %3167 = vdwg.mxu0
    %vm3168 = vcmask 25600
    %v3169 = vsel %vm3168, %v3165, -inf
    %3170 = vmax.xlane.f32.xlu0 %v3169
    %v3171 = vpop.xlane.xlu0 %3170
    %v3172 = vsub.f32 %v3165, %v3171
    %v3173 = vmul.f32 %v3172, 1.442695
    %v3174 = vpow.pop %v3173
    %v3175 = vsel %vm3168, %v3174, 0.0
    %3176 = vadd.xlane.f32.xlu0 %v3175
    %v3177 = vpop.xlane.xlu0 %3176
    %v3178 = vlog2.pop %v3177
    %v3179 = vmul.f32 %v3178, 0.6931472
    %v3180 = vsub.f32 %v3172, %v3179
    %3181 = vst.msk [vmem:[#allocation11] sm:$0x3] %vm3168, %v3180
    // Predicated region
    $region135: #{edgenet_forward.1} parent=1 // pred_check
      _
    $region136: #{edgenet_forward.1} parent=1 // pred_check_branch
      %3183 = sbr.rel (0) target = $region138
    $region137: #{edgenet_forward.1} parent=1 // pred_region
      %s3185 = ssub.s32 32, 32
      %3186 = vsyncadd [#allocation7], %s3185
      %s3188 = sshll.u32 [#allocation11], 4
      %s3189 = int_to_ptr.vmem [resolvable:$true] %s3188
      %3191 = dma.vmem_to_hbm [thread:$0]  %s3189, 32, %s25, [#allocation7]
    $region138: #{edgenet_forward.1} parent=1 // pred_fallthru
      _
    // Predicated region
    $region139: #{edgenet_forward.1} parent=1 // pred_check
      _
    $region140: #{edgenet_forward.1} parent=1 // pred_check_branch
      %3193 = sbr.rel (0) target = $region142
    $region141: #{edgenet_forward.1} parent=1 // pred_region
      %3194 = dma.done [#allocation7], 32
    $region142: #{edgenet_forward.1} parent=1 // pred_fallthru
      _
    %3195 = vsyncpa [#allocation6], 1
    %3196 = vsyncpa [#allocation9], 1
    %3197 = vsyncpa [#allocation7], 1

</llo_original>
